<compile_context>
chip_gen: v7x
topology: tpu7x:2x2x1
jax: 0.10.0
libtpu: 0.0.40
codegen_flags: <defaults>
</compile_context>

<pallas_src>
import functools

import jax
import jax.numpy as jnp
from jax.experimental import pallas as pl
from jax.experimental.pallas import tpu as pltpu


def addition_kernel(x2d_ref,                          # (T*Bp, IN)  time-major, flattened
                    wih_e_ref, whh_e_ref, b_e_ref,    # encoder LSTM params
                    wih_d_ref, whh_d_ref, b_d_ref,    # decoder LSTM params
                    w_out_ref, b_out_ref,             # output Linear params
                    out_ref,                          # (T_dec*Bp, OUT) 2D slab
                    *, T, Bp, T_dec):
    H = whh_e_ref.shape[0]

    wih_e = wih_e_ref[...]
    whh_e = whh_e_ref[...]
    b_e = b_e_ref[...]
    wih_d = wih_d_ref[...]
    whh_d = whh_d_ref[...]
    b_d = b_d_ref[...]
    w_out = w_out_ref[...]
    b_out = b_out_ref[...]

    def gate_update(gates, c):
        # PyTorch gate order: i, f, g, o
        i_g = jax.nn.sigmoid(gates[:, 0 * H:1 * H])
        f_g = jax.nn.sigmoid(gates[:, 1 * H:2 * H])
        g_g = jnp.tanh(gates[:, 2 * H:3 * H])
        o_g = jax.nn.sigmoid(gates[:, 3 * H:4 * H])
        c_new = f_g * c + i_g * g_g
        h_new = o_g * jnp.tanh(c_new)
        return h_new, c_new

    # ---- encoder: input projection for ALL timesteps in one matmul (off critical path) ----
    gates_x_e = jnp.dot(x2d_ref[...], wih_e,
                        preferred_element_type=jnp.float32) + b_e        # (T*Bp, 4H)

    h = jnp.zeros((Bp, H), jnp.float32)
    c = jnp.zeros((Bp, H), jnp.float32)
    for t in range(T):                                 # fully unrolled (static trip count)
        gates = gates_x_e[t * Bp:(t + 1) * Bp, :] + jnp.dot(
            h, whh_e, preferred_element_type=jnp.float32)
        h, c = gate_update(gates, c)
    h_enc_last = h                                     # (Bp, H)

    # ---- decoder: its input is constant across steps -> hoist the input projection ----
    gates_x_d = jnp.dot(h_enc_last, wih_d,
                        preferred_element_type=jnp.float32) + b_d        # (Bp, 4H)

    hd = jnp.zeros((Bp, H), jnp.float32)
    cd = jnp.zeros((Bp, H), jnp.float32)
    hs = []
    for _ in range(T_dec):                             # fully unrolled
        gates = gates_x_d + jnp.dot(hd, whh_d, preferred_element_type=jnp.float32)
        hd, cd = gate_update(gates, cd)
        hs.append(hd)

    # ---- output projection + log_softmax once, outside the recurrence ----
    h_all = jnp.concatenate(hs, axis=0)                # (T_dec*Bp, H)
    logits = jnp.dot(h_all, w_out, preferred_element_type=jnp.float32) + b_out
    m = jnp.max(logits, axis=-1, keepdims=True)
    z = logits - m
    logp = z - jnp.log(jnp.sum(jnp.exp(z), axis=-1, keepdims=True))
    out_ref[...] = logp                                # single dense store


def addition_model_forward(x, params):
    """x: (B, T, IN) batch-first, float32. Returns (B, T//2+1, OUT) log-probs."""
    B, T, IN = x.shape
    OUT = params["w_out"].shape[1]
    T_dec = T // 2 + 1

    # Pad batch to a full sublane (multiple of 8) so activations use whole vregs.
    Bp = max(8, ((B + 7) // 8) * 8)
    x_p = jnp.zeros((Bp, T, IN), jnp.float32).at[:B].set(x.astype(jnp.float32))
    x2d = jnp.transpose(x_p, (1, 0, 2)).reshape(T * Bp, IN)   # time-major, flattened

    kernel = functools.partial(addition_kernel, T=T, Bp=Bp, T_dec=T_dec)
    vmem = pl.BlockSpec(memory_space=pltpu.MemorySpace.VMEM)

    out2d = pl.pallas_call(
        kernel,
        out_shape=jax.ShapeDtypeStruct((T_dec * Bp, OUT), jnp.float32),
        in_specs=[vmem] * 9,
        out_specs=vmem,
    )(x2d,
      params["wih_e"], params["whh_e"], params["b_e"],
      params["wih_d"], params["whh_d"], params["b_d"],
      params["w_out"], params["b_out"])

    out = out2d.reshape(T_dec, Bp, OUT)
    return jnp.transpose(out, (1, 0, 2))[:B]                  # (B, T_dec, OUT)


def init_params(key, input_size=11, hidden_size=128, output_size=10):
    """Deterministic init mimicking PyTorch's U(-1/sqrt(H), 1/sqrt(H)).
    Weights stored pre-transposed as (in_dim, 4H) / (H, 4H) / (H, OUT)
    so the kernel computes x @ W. The two LSTM biases (b_ih + b_hh) are folded
    into a single (1, 4H) bias."""
    ks = jax.random.split(key, 8)
    s = 1.0 / jnp.sqrt(jnp.array(hidden_size, jnp.float32))

    def u(k, shape):
        return jax.random.uniform(k, shape, jnp.float32, -s, s)

    return {
        "wih_e": u(ks[0], (input_size, 4 * hidden_size)),
        "whh_e": u(ks[1], (hidden_size, 4 * hidden_size)),
        "b_e":   u(ks[2], (1, 4 * hidden_size)) + u(ks[3], (1, 4 * hidden_size)),
        "wih_d": u(ks[4], (hidden_size, 4 * hidden_size)),
        "whh_d": u(ks[5], (hidden_size, 4 * hidden_size)),
        "b_d":   u(ks[6], (1, 4 * hidden_size)) + u(ks[7], (1, 4 * hidden_size)),
        "w_out": u(jax.random.fold_in(key, 100), (hidden_size, output_size)),
        "b_out": u(jax.random.fold_in(key, 101), (1, output_size)),
    }


def reference_forward(x, params):
    """Pure-JAX reference of the PyTorch forward, for correctness checking."""
    B, T, IN = x.shape
    H = params["whh_e"].shape[0]

    def cell(x_t, h, c, wih, whh, b):
        g = x_t @ wih + h @ whh + b
        i = jax.nn.sigmoid(g[:, 0 * H:1 * H])
        f = jax.nn.sigmoid(g[:, 1 * H:2 * H])
        gg = jnp.tanh(g[:, 2 * H:3 * H])
        o = jax.nn.sigmoid(g[:, 3 * H:4 * H])
        c = f * c + i * gg
        h = o * jnp.tanh(c)
        return h, c

    h = jnp.zeros((B, H), jnp.float32)
    c = jnp.zeros((B, H), jnp.float32)
    for t in range(T):
        h, c = cell(x[:, t, :], h, c, params["wih_e"], params["whh_e"], params["b_e"])
    h_last = h

    T_dec = T // 2 + 1
    hd = jnp.zeros((B, H), jnp.float32)
    cd = jnp.zeros((B, H), jnp.float32)
    outs = []
    for _ in range(T_dec):
        hd, cd = cell(h_last, hd, cd, params["wih_d"], params["whh_d"], params["b_d"])
        logits = hd @ params["w_out"] + params["b_out"]
        outs.append(jax.nn.log_softmax(logits, axis=-1))
    return jnp.stack(outs, axis=1)                            # (B, T_dec, OUT)


if __name__ == "__main__":
    B, T, IN, H, OUT = 2, 8, 11, 128, 10

    key = jax.random.PRNGKey(0)
    k_x, k_p = jax.random.split(key)
    x = jax.random.normal(k_x, (B, T, IN), jnp.float32)
    params = init_params(k_p, input_size=IN, hidden_size=H, output_size=OUT)

    out = addition_model_forward(x, params)
    out = jax.block_until_ready(out)

    ref = reference_forward(x, params)
    assert out.shape == (B, T // 2 + 1, OUT), out.shape
    assert jnp.allclose(out, ref, rtol=1e-4, atol=1e-4), float(jnp.abs(out - ref).max())

    print("KERNEL_OK")
</pallas_src>

<mosaic_0001>
module attributes {stable_mosaic.version = 11 : i64} {
  func.func @addition_kernel(%arg0: memref<64x11xf32, #tpu.memory_space<vmem>>, %arg1: memref<11x512xf32, #tpu.memory_space<vmem>>, %arg2: memref<128x512xf32, #tpu.memory_space<vmem>>, %arg3: memref<1x512xf32, #tpu.memory_space<vmem>>, %arg4: memref<128x512xf32, #tpu.memory_space<vmem>>, %arg5: memref<128x512xf32, #tpu.memory_space<vmem>>, %arg6: memref<1x512xf32, #tpu.memory_space<vmem>>, %arg7: memref<128x10xf32, #tpu.memory_space<vmem>>, %arg8: memref<1x10xf32, #tpu.memory_space<vmem>>, %arg9: memref<40x10xf32, #tpu.memory_space<vmem>>) attributes {dimension_semantics = [], scalar_prefetch = 0 : i64, scratch_operands = 0 : i64, tpu.core_type = #tpu.core_type<tc>} {
    %c0 = arith.constant 0 : index
    %c0_0 = arith.constant 0 : index
    %0 = vector.load %arg1[%c0, %c0_0] : memref<11x512xf32, #tpu.memory_space<vmem>>, vector<11x512xf32>
    %c0_1 = arith.constant 0 : index
    %c0_2 = arith.constant 0 : index
    %1 = vector.load %arg2[%c0_1, %c0_2] : memref<128x512xf32, #tpu.memory_space<vmem>>, vector<128x512xf32>
    %c0_3 = arith.constant 0 : index
    %c0_4 = arith.constant 0 : index
    %2 = vector.load %arg3[%c0_3, %c0_4] : memref<1x512xf32, #tpu.memory_space<vmem>>, vector<1x512xf32>
    %c0_5 = arith.constant 0 : index
    %c0_6 = arith.constant 0 : index
    %3 = vector.load %arg4[%c0_5, %c0_6] : memref<128x512xf32, #tpu.memory_space<vmem>>, vector<128x512xf32>
    %c0_7 = arith.constant 0 : index
    %c0_8 = arith.constant 0 : index
    %4 = vector.load %arg5[%c0_7, %c0_8] : memref<128x512xf32, #tpu.memory_space<vmem>>, vector<128x512xf32>
    %c0_9 = arith.constant 0 : index
    %c0_10 = arith.constant 0 : index
    %5 = vector.load %arg6[%c0_9, %c0_10] : memref<1x512xf32, #tpu.memory_space<vmem>>, vector<1x512xf32>
    %c0_11 = arith.constant 0 : index
    %c0_12 = arith.constant 0 : index
    %6 = vector.load %arg7[%c0_11, %c0_12] : memref<128x10xf32, #tpu.memory_space<vmem>>, vector<128x10xf32>
    %c0_13 = arith.constant 0 : index
    %c0_14 = arith.constant 0 : index
    %7 = vector.load %arg8[%c0_13, %c0_14] : memref<1x10xf32, #tpu.memory_space<vmem>>, vector<1x10xf32>
    %c0_15 = arith.constant 0 : index
    %c0_16 = arith.constant 0 : index
    %8 = vector.load %arg0[%c0_15, %c0_16] : memref<64x11xf32, #tpu.memory_space<vmem>>, vector<64x11xf32>
    %cst = arith.constant dense<0.000000e+00> : vector<64x512xf32>
    %9 = tpu.matmul %8, %0, %cst {dimension_numbers = #tpu.dot_dimension_numbers<[1], [0], [0], [1], [0, 0, 1, 1], [], []>} : vector<64x11xf32>, vector<11x512xf32>, vector<64x512xf32> -> vector<64x512xf32>
    %10 = vector.broadcast %2 : vector<1x512xf32> to vector<64x512xf32>
    %11 = arith.addf %9, %10 : vector<64x512xf32>
    %cst_17 = arith.constant 0.000000e+00 : f32
    %12 = vector.broadcast %cst_17 : f32 to vector<8x128xf32>
    %cst_18 = arith.constant 0.000000e+00 : f32
    %13 = vector.broadcast %cst_18 : f32 to vector<8x128xf32>
    %14 = vector.extract_strided_slice %11 {offsets = [0, 0], sizes = [8, 512], strides = [1, 1]} : vector<64x512xf32> to vector<8x512xf32>
    %cst_19 = arith.constant dense<0.000000e+00> : vector<8x512xf32>
    %15 = tpu.matmul %12, %1, %cst_19 {dimension_numbers = #tpu.dot_dimension_numbers<[1], [0], [0], [1], [0, 0, 1, 1], [], []>} : vector<8x128xf32>, vector<128x512xf32>, vector<8x512xf32> -> vector<8x512xf32>
    %16 = arith.addf %14, %15 : vector<8x512xf32>
    %17 = vector.extract_strided_slice %16 {offsets = [0, 0], sizes = [8, 128], strides = [1, 1]} : vector<8x512xf32> to vector<8x128xf32>
    %18 = arith.negf %17 : vector<8x128xf32>
    %19 = math.exp %18 : vector<8x128xf32>
    %cst_20 = arith.constant 1.000000e+00 : f32
    %20 = vector.broadcast %cst_20 : f32 to vector<8x128xf32>
    %21 = arith.addf %20, %19 : vector<8x128xf32>
    %22 = arith.divf %20, %21 : vector<8x128xf32>
    %23 = vector.extract_strided_slice %16 {offsets = [0, 128], sizes = [8, 128], strides = [1, 1]} : vector<8x512xf32> to vector<8x128xf32>
    %24 = arith.negf %23 : vector<8x128xf32>
    %25 = math.exp %24 : vector<8x128xf32>
    %cst_21 = arith.constant 1.000000e+00 : f32
    %26 = vector.broadcast %cst_21 : f32 to vector<8x128xf32>
    %27 = arith.addf %26, %25 : vector<8x128xf32>
    %28 = arith.divf %26, %27 : vector<8x128xf32>
    %29 = vector.extract_strided_slice %16 {offsets = [0, 256], sizes = [8, 128], strides = [1, 1]} : vector<8x512xf32> to vector<8x128xf32>
    %30 = math.tanh %29 : vector<8x128xf32>
    %31 = vector.extract_strided_slice %16 {offsets = [0, 384], sizes = [8, 128], strides = [1, 1]} : vector<8x512xf32> to vector<8x128xf32>
    %32 = arith.negf %31 : vector<8x128xf32>
    %33 = math.exp %32 : vector<8x128xf32>
    %cst_22 = arith.constant 1.000000e+00 : f32
    %34 = vector.broadcast %cst_22 : f32 to vector<8x128xf32>
    %35 = arith.addf %34, %33 : vector<8x128xf32>
    %36 = arith.divf %34, %35 : vector<8x128xf32>
    %37 = arith.mulf %28, %13 : vector<8x128xf32>
    %38 = arith.mulf %22, %30 : vector<8x128xf32>
    %39 = arith.addf %37, %38 : vector<8x128xf32>
    %40 = math.tanh %39 : vector<8x128xf32>
    %41 = arith.mulf %36, %40 : vector<8x128xf32>
    %42 = vector.extract_strided_slice %11 {offsets = [8, 0], sizes = [8, 512], strides = [1, 1]} : vector<64x512xf32> to vector<8x512xf32>
    %cst_23 = arith.constant dense<0.000000e+00> : vector<8x512xf32>
    %43 = tpu.matmul %41, %1, %cst_23 {dimension_numbers = #tpu.dot_dimension_numbers<[1], [0], [0], [1], [0, 0, 1, 1], [], []>} : vector<8x128xf32>, vector<128x512xf32>, vector<8x512xf32> -> vector<8x512xf32>
    %44 = arith.addf %42, %43 : vector<8x512xf32>
    %45 = vector.extract_strided_slice %44 {offsets = [0, 0], sizes = [8, 128], strides = [1, 1]} : vector<8x512xf32> to vector<8x128xf32>
    %46 = arith.negf %45 : vector<8x128xf32>
    %47 = math.exp %46 : vector<8x128xf32>
    %cst_24 = arith.constant 1.000000e+00 : f32
    %48 = vector.broadcast %cst_24 : f32 to vector<8x128xf32>
    %49 = arith.addf %48, %47 : vector<8x128xf32>
    %50 = arith.divf %48, %49 : vector<8x128xf32>
    %51 = vector.extract_strided_slice %44 {offsets = [0, 128], sizes = [8, 128], strides = [1, 1]} : vector<8x512xf32> to vector<8x128xf32>
    %52 = arith.negf %51 : vector<8x128xf32>
    %53 = math.exp %52 : vector<8x128xf32>
    %cst_25 = arith.constant 1.000000e+00 : f32
    %54 = vector.broadcast %cst_25 : f32 to vector<8x128xf32>
    %55 = arith.addf %54, %53 : vector<8x128xf32>
    %56 = arith.divf %54, %55 : vector<8x128xf32>
    %57 = vector.extract_strided_slice %44 {offsets = [0, 256], sizes = [8, 128], strides = [1, 1]} : vector<8x512xf32> to vector<8x128xf32>
    %58 = math.tanh %57 : vector<8x128xf32>
    %59 = vector.extract_strided_slice %44 {offsets = [0, 384], sizes = [8, 128], strides = [1, 1]} : vector<8x512xf32> to vector<8x128xf32>
    %60 = arith.negf %59 : vector<8x128xf32>
    %61 = math.exp %60 : vector<8x128xf32>
    %cst_26 = arith.constant 1.000000e+00 : f32
    %62 = vector.broadcast %cst_26 : f32 to vector<8x128xf32>
    %63 = arith.addf %62, %61 : vector<8x128xf32>
    %64 = arith.divf %62, %63 : vector<8x128xf32>
    %65 = arith.mulf %56, %39 : vector<8x128xf32>
    %66 = arith.mulf %50, %58 : vector<8x128xf32>
    %67 = arith.addf %65, %66 : vector<8x128xf32>
    %68 = math.tanh %67 : vector<8x128xf32>
    %69 = arith.mulf %64, %68 : vector<8x128xf32>
    %70 = vector.extract_strided_slice %11 {offsets = [16, 0], sizes = [8, 512], strides = [1, 1]} : vector<64x512xf32> to vector<8x512xf32>
    %cst_27 = arith.constant dense<0.000000e+00> : vector<8x512xf32>
    %71 = tpu.matmul %69, %1, %cst_27 {dimension_numbers = #tpu.dot_dimension_numbers<[1], [0], [0], [1], [0, 0, 1, 1], [], []>} : vector<8x128xf32>, vector<128x512xf32>, vector<8x512xf32> -> vector<8x512xf32>
    %72 = arith.addf %70, %71 : vector<8x512xf32>
    %73 = vector.extract_strided_slice %72 {offsets = [0, 0], sizes = [8, 128], strides = [1, 1]} : vector<8x512xf32> to vector<8x128xf32>
    %74 = arith.negf %73 : vector<8x128xf32>
    %75 = math.exp %74 : vector<8x128xf32>
    %cst_28 = arith.constant 1.000000e+00 : f32
    %76 = vector.broadcast %cst_28 : f32 to vector<8x128xf32>
    %77 = arith.addf %76, %75 : vector<8x128xf32>
    %78 = arith.divf %76, %77 : vector<8x128xf32>
    %79 = vector.extract_strided_slice %72 {offsets = [0, 128], sizes = [8, 128], strides = [1, 1]} : vector<8x512xf32> to vector<8x128xf32>
    %80 = arith.negf %79 : vector<8x128xf32>
    %81 = math.exp %80 : vector<8x128xf32>
    %cst_29 = arith.constant 1.000000e+00 : f32
    %82 = vector.broadcast %cst_29 : f32 to vector<8x128xf32>
    %83 = arith.addf %82, %81 : vector<8x128xf32>
    %84 = arith.divf %82, %83 : vector<8x128xf32>
    %85 = vector.extract_strided_slice %72 {offsets = [0, 256], sizes = [8, 128], strides = [1, 1]} : vector<8x512xf32> to vector<8x128xf32>
    %86 = math.tanh %85 : vector<8x128xf32>
    %87 = vector.extract_strided_slice %72 {offsets = [0, 384], sizes = [8, 128], strides = [1, 1]} : vector<8x512xf32> to vector<8x128xf32>
    %88 = arith.negf %87 : vector<8x128xf32>
    %89 = math.exp %88 : vector<8x128xf32>
    %cst_30 = arith.constant 1.000000e+00 : f32
    %90 = vector.broadcast %cst_30 : f32 to vector<8x128xf32>
    %91 = arith.addf %90, %89 : vector<8x128xf32>
    %92 = arith.divf %90, %91 : vector<8x128xf32>
    %93 = arith.mulf %84, %67 : vector<8x128xf32>
    %94 = arith.mulf %78, %86 : vector<8x128xf32>
    %95 = arith.addf %93, %94 : vector<8x128xf32>
    %96 = math.tanh %95 : vector<8x128xf32>
    %97 = arith.mulf %92, %96 : vector<8x128xf32>
    %98 = vector.extract_strided_slice %11 {offsets = [24, 0], sizes = [8, 512], strides = [1, 1]} : vector<64x512xf32> to vector<8x512xf32>
    %cst_31 = arith.constant dense<0.000000e+00> : vector<8x512xf32>
    %99 = tpu.matmul %97, %1, %cst_31 {dimension_numbers = #tpu.dot_dimension_numbers<[1], [0], [0], [1], [0, 0, 1, 1], [], []>} : vector<8x128xf32>, vector<128x512xf32>, vector<8x512xf32> -> vector<8x512xf32>
    %100 = arith.addf %98, %99 : vector<8x512xf32>
    %101 = vector.extract_strided_slice %100 {offsets = [0, 0], sizes = [8, 128], strides = [1, 1]} : vector<8x512xf32> to vector<8x128xf32>
    %102 = arith.negf %101 : vector<8x128xf32>
    %103 = math.exp %102 : vector<8x128xf32>
    %cst_32 = arith.constant 1.000000e+00 : f32
    %104 = vector.broadcast %cst_32 : f32 to vector<8x128xf32>
    %105 = arith.addf %104, %103 : vector<8x128xf32>
    %106 = arith.divf %104, %105 : vector<8x128xf32>
    %107 = vector.extract_strided_slice %100 {offsets = [0, 128], sizes = [8, 128], strides = [1, 1]} : vector<8x512xf32> to vector<8x128xf32>
    %108 = arith.negf %107 : vector<8x128xf32>
    %109 = math.exp %108 : vector<8x128xf32>
    %cst_33 = arith.constant 1.000000e+00 : f32
    %110 = vector.broadcast %cst_33 : f32 to vector<8x128xf32>
    %111 = arith.addf %110, %109 : vector<8x128xf32>
    %112 = arith.divf %110, %111 : vector<8x128xf32>
    %113 = vector.extract_strided_slice %100 {offsets = [0, 256], sizes = [8, 128], strides = [1, 1]} : vector<8x512xf32> to vector<8x128xf32>
    %114 = math.tanh %113 : vector<8x128xf32>
    %115 = vector.extract_strided_slice %100 {offsets = [0, 384], sizes = [8, 128], strides = [1, 1]} : vector<8x512xf32> to vector<8x128xf32>
    %116 = arith.negf %115 : vector<8x128xf32>
    %117 = math.exp %116 : vector<8x128xf32>
    %cst_34 = arith.constant 1.000000e+00 : f32
    %118 = vector.broadcast %cst_34 : f32 to vector<8x128xf32>
    %119 = arith.addf %118, %117 : vector<8x128xf32>
    %120 = arith.divf %118, %119 : vector<8x128xf32>
    %121 = arith.mulf %112, %95 : vector<8x128xf32>
    %122 = arith.mulf %106, %114 : vector<8x128xf32>
    %123 = arith.addf %121, %122 : vector<8x128xf32>
    %124 = math.tanh %123 : vector<8x128xf32>
    %125 = arith.mulf %120, %124 : vector<8x128xf32>
    %126 = vector.extract_strided_slice %11 {offsets = [32, 0], sizes = [8, 512], strides = [1, 1]} : vector<64x512xf32> to vector<8x512xf32>
    %cst_35 = arith.constant dense<0.000000e+00> : vector<8x512xf32>
    %127 = tpu.matmul %125, %1, %cst_35 {dimension_numbers = #tpu.dot_dimension_numbers<[1], [0], [0], [1], [0, 0, 1, 1], [], []>} : vector<8x128xf32>, vector<128x512xf32>, vector<8x512xf32> -> vector<8x512xf32>
    %128 = arith.addf %126, %127 : vector<8x512xf32>
    %129 = vector.extract_strided_slice %128 {offsets = [0, 0], sizes = [8, 128], strides = [1, 1]} : vector<8x512xf32> to vector<8x128xf32>
    %130 = arith.negf %129 : vector<8x128xf32>
    %131 = math.exp %130 : vector<8x128xf32>
    %cst_36 = arith.constant 1.000000e+00 : f32
    %132 = vector.broadcast %cst_36 : f32 to vector<8x128xf32>
    %133 = arith.addf %132, %131 : vector<8x128xf32>
    %134 = arith.divf %132, %133 : vector<8x128xf32>
    %135 = vector.extract_strided_slice %128 {offsets = [0, 128], sizes = [8, 128], strides = [1, 1]} : vector<8x512xf32> to vector<8x128xf32>
    %136 = arith.negf %135 : vector<8x128xf32>
    %137 = math.exp %136 : vector<8x128xf32>
    %cst_37 = arith.constant 1.000000e+00 : f32
    %138 = vector.broadcast %cst_37 : f32 to vector<8x128xf32>
    %139 = arith.addf %138, %137 : vector<8x128xf32>
    %140 = arith.divf %138, %139 : vector<8x128xf32>
    %141 = vector.extract_strided_slice %128 {offsets = [0, 256], sizes = [8, 128], strides = [1, 1]} : vector<8x512xf32> to vector<8x128xf32>
    %142 = math.tanh %141 : vector<8x128xf32>
    %143 = vector.extract_strided_slice %128 {offsets = [0, 384], sizes = [8, 128], strides = [1, 1]} : vector<8x512xf32> to vector<8x128xf32>
    %144 = arith.negf %143 : vector<8x128xf32>
    %145 = math.exp %144 : vector<8x128xf32>
    %cst_38 = arith.constant 1.000000e+00 : f32
    %146 = vector.broadcast %cst_38 : f32 to vector<8x128xf32>
    %147 = arith.addf %146, %145 : vector<8x128xf32>
    %148 = arith.divf %146, %147 : vector<8x128xf32>
    %149 = arith.mulf %140, %123 : vector<8x128xf32>
    %150 = arith.mulf %134, %142 : vector<8x128xf32>
    %151 = arith.addf %149, %150 : vector<8x128xf32>
    %152 = math.tanh %151 : vector<8x128xf32>
    %153 = arith.mulf %148, %152 : vector<8x128xf32>
    %154 = vector.extract_strided_slice %11 {offsets = [40, 0], sizes = [8, 512], strides = [1, 1]} : vector<64x512xf32> to vector<8x512xf32>
    %cst_39 = arith.constant dense<0.000000e+00> : vector<8x512xf32>
    %155 = tpu.matmul %153, %1, %cst_39 {dimension_numbers = #tpu.dot_dimension_numbers<[1], [0], [0], [1], [0, 0, 1, 1], [], []>} : vector<8x128xf32>, vector<128x512xf32>, vector<8x512xf32> -> vector<8x512xf32>
    %156 = arith.addf %154, %155 : vector<8x512xf32>
    %157 = vector.extract_strided_slice %156 {offsets = [0, 0], sizes = [8, 128], strides = [1, 1]} : vector<8x512xf32> to vector<8x128xf32>
    %158 = arith.negf %157 : vector<8x128xf32>
    %159 = math.exp %158 : vector<8x128xf32>
    %cst_40 = arith.constant 1.000000e+00 : f32
    %160 = vector.broadcast %cst_40 : f32 to vector<8x128xf32>
    %161 = arith.addf %160, %159 : vector<8x128xf32>
    %162 = arith.divf %160, %161 : vector<8x128xf32>
    %163 = vector.extract_strided_slice %156 {offsets = [0, 128], sizes = [8, 128], strides = [1, 1]} : vector<8x512xf32> to vector<8x128xf32>
    %164 = arith.negf %163 : vector<8x128xf32>
    %165 = math.exp %164 : vector<8x128xf32>
    %cst_41 = arith.constant 1.000000e+00 : f32
    %166 = vector.broadcast %cst_41 : f32 to vector<8x128xf32>
    %167 = arith.addf %166, %165 : vector<8x128xf32>
    %168 = arith.divf %166, %167 : vector<8x128xf32>
    %169 = vector.extract_strided_slice %156 {offsets = [0, 256], sizes = [8, 128], strides = [1, 1]} : vector<8x512xf32> to vector<8x128xf32>
    %170 = math.tanh %169 : vector<8x128xf32>
    %171 = vector.extract_strided_slice %156 {offsets = [0, 384], sizes = [8, 128], strides = [1, 1]} : vector<8x512xf32> to vector<8x128xf32>
    %172 = arith.negf %171 : vector<8x128xf32>
    %173 = math.exp %172 : vector<8x128xf32>
    %cst_42 = arith.constant 1.000000e+00 : f32
    %174 = vector.broadcast %cst_42 : f32 to vector<8x128xf32>
    %175 = arith.addf %174, %173 : vector<8x128xf32>
    %176 = arith.divf %174, %175 : vector<8x128xf32>
    %177 = arith.mulf %168, %151 : vector<8x128xf32>
    %178 = arith.mulf %162, %170 : vector<8x128xf32>
    %179 = arith.addf %177, %178 : vector<8x128xf32>
    %180 = math.tanh %179 : vector<8x128xf32>
    %181 = arith.mulf %176, %180 : vector<8x128xf32>
    %182 = vector.extract_strided_slice %11 {offsets = [48, 0], sizes = [8, 512], strides = [1, 1]} : vector<64x512xf32> to vector<8x512xf32>
    %cst_43 = arith.constant dense<0.000000e+00> : vector<8x512xf32>
    %183 = tpu.matmul %181, %1, %cst_43 {dimension_numbers = #tpu.dot_dimension_numbers<[1], [0], [0], [1], [0, 0, 1, 1], [], []>} : vector<8x128xf32>, vector<128x512xf32>, vector<8x512xf32> -> vector<8x512xf32>
    %184 = arith.addf %182, %183 : vector<8x512xf32>
    %185 = vector.extract_strided_slice %184 {offsets = [0, 0], sizes = [8, 128], strides = [1, 1]} : vector<8x512xf32> to vector<8x128xf32>
    %186 = arith.negf %185 : vector<8x128xf32>
    %187 = math.exp %186 : vector<8x128xf32>
    %cst_44 = arith.constant 1.000000e+00 : f32
    %188 = vector.broadcast %cst_44 : f32 to vector<8x128xf32>
    %189 = arith.addf %188, %187 : vector<8x128xf32>
    %190 = arith.divf %188, %189 : vector<8x128xf32>
    %191 = vector.extract_strided_slice %184 {offsets = [0, 128], sizes = [8, 128], strides = [1, 1]} : vector<8x512xf32> to vector<8x128xf32>
    %192 = arith.negf %191 : vector<8x128xf32>
    %193 = math.exp %192 : vector<8x128xf32>
    %cst_45 = arith.constant 1.000000e+00 : f32
    %194 = vector.broadcast %cst_45 : f32 to vector<8x128xf32>
    %195 = arith.addf %194, %193 : vector<8x128xf32>
    %196 = arith.divf %194, %195 : vector<8x128xf32>
    %197 = vector.extract_strided_slice %184 {offsets = [0, 256], sizes = [8, 128], strides = [1, 1]} : vector<8x512xf32> to vector<8x128xf32>
    %198 = math.tanh %197 : vector<8x128xf32>
    %199 = vector.extract_strided_slice %184 {offsets = [0, 384], sizes = [8, 128], strides = [1, 1]} : vector<8x512xf32> to vector<8x128xf32>
    %200 = arith.negf %199 : vector<8x128xf32>
    %201 = math.exp %200 : vector<8x128xf32>
    %cst_46 = arith.constant 1.000000e+00 : f32
    %202 = vector.broadcast %cst_46 : f32 to vector<8x128xf32>
    %203 = arith.addf %202, %201 : vector<8x128xf32>
    %204 = arith.divf %202, %203 : vector<8x128xf32>
    %205 = arith.mulf %196, %179 : vector<8x128xf32>
    %206 = arith.mulf %190, %198 : vector<8x128xf32>
    %207 = arith.addf %205, %206 : vector<8x128xf32>
    %208 = math.tanh %207 : vector<8x128xf32>
    %209 = arith.mulf %204, %208 : vector<8x128xf32>
    %210 = vector.extract_strided_slice %11 {offsets = [56, 0], sizes = [8, 512], strides = [1, 1]} : vector<64x512xf32> to vector<8x512xf32>
    %cst_47 = arith.constant dense<0.000000e+00> : vector<8x512xf32>
    %211 = tpu.matmul %209, %1, %cst_47 {dimension_numbers = #tpu.dot_dimension_numbers<[1], [0], [0], [1], [0, 0, 1, 1], [], []>} : vector<8x128xf32>, vector<128x512xf32>, vector<8x512xf32> -> vector<8x512xf32>
    %212 = arith.addf %210, %211 : vector<8x512xf32>
    %213 = vector.extract_strided_slice %212 {offsets = [0, 0], sizes = [8, 128], strides = [1, 1]} : vector<8x512xf32> to vector<8x128xf32>
    %214 = arith.negf %213 : vector<8x128xf32>
    %215 = math.exp %214 : vector<8x128xf32>
    %cst_48 = arith.constant 1.000000e+00 : f32
    %216 = vector.broadcast %cst_48 : f32 to vector<8x128xf32>
    %217 = arith.addf %216, %215 : vector<8x128xf32>
    %218 = arith.divf %216, %217 : vector<8x128xf32>
    %219 = vector.extract_strided_slice %212 {offsets = [0, 128], sizes = [8, 128], strides = [1, 1]} : vector<8x512xf32> to vector<8x128xf32>
    %220 = arith.negf %219 : vector<8x128xf32>
    %221 = math.exp %220 : vector<8x128xf32>
    %cst_49 = arith.constant 1.000000e+00 : f32
    %222 = vector.broadcast %cst_49 : f32 to vector<8x128xf32>
    %223 = arith.addf %222, %221 : vector<8x128xf32>
    %224 = arith.divf %222, %223 : vector<8x128xf32>
    %225 = vector.extract_strided_slice %212 {offsets = [0, 256], sizes = [8, 128], strides = [1, 1]} : vector<8x512xf32> to vector<8x128xf32>
    %226 = math.tanh %225 : vector<8x128xf32>
    %227 = vector.extract_strided_slice %212 {offsets = [0, 384], sizes = [8, 128], strides = [1, 1]} : vector<8x512xf32> to vector<8x128xf32>
    %228 = arith.negf %227 : vector<8x128xf32>
    %229 = math.exp %228 : vector<8x128xf32>
    %cst_50 = arith.constant 1.000000e+00 : f32
    %230 = vector.broadcast %cst_50 : f32 to vector<8x128xf32>
    %231 = arith.addf %230, %229 : vector<8x128xf32>
    %232 = arith.divf %230, %231 : vector<8x128xf32>
    %233 = arith.mulf %224, %207 : vector<8x128xf32>
    %234 = arith.mulf %218, %226 : vector<8x128xf32>
    %235 = arith.addf %233, %234 : vector<8x128xf32>
    %236 = math.tanh %235 : vector<8x128xf32>
    %237 = arith.mulf %232, %236 : vector<8x128xf32>
    %cst_51 = arith.constant dense<0.000000e+00> : vector<8x512xf32>
    %238 = tpu.matmul %237, %3, %cst_51 {dimension_numbers = #tpu.dot_dimension_numbers<[1], [0], [0], [1], [0, 0, 1, 1], [], []>} : vector<8x128xf32>, vector<128x512xf32>, vector<8x512xf32> -> vector<8x512xf32>
    %239 = vector.broadcast %5 : vector<1x512xf32> to vector<8x512xf32>
    %240 = arith.addf %238, %239 : vector<8x512xf32>
    %cst_52 = arith.constant 0.000000e+00 : f32
    %241 = vector.broadcast %cst_52 : f32 to vector<8x128xf32>
    %cst_53 = arith.constant 0.000000e+00 : f32
    %242 = vector.broadcast %cst_53 : f32 to vector<8x128xf32>
    %cst_54 = arith.constant dense<0.000000e+00> : vector<8x512xf32>
    %243 = tpu.matmul %241, %4, %cst_54 {dimension_numbers = #tpu.dot_dimension_numbers<[1], [0], [0], [1], [0, 0, 1, 1], [], []>} : vector<8x128xf32>, vector<128x512xf32>, vector<8x512xf32> -> vector<8x512xf32>
    %244 = arith.addf %240, %243 : vector<8x512xf32>
    %245 = vector.extract_strided_slice %244 {offsets = [0, 0], sizes = [8, 128], strides = [1, 1]} : vector<8x512xf32> to vector<8x128xf32>
    %246 = arith.negf %245 : vector<8x128xf32>
    %247 = math.exp %246 : vector<8x128xf32>
    %cst_55 = arith.constant 1.000000e+00 : f32
    %248 = vector.broadcast %cst_55 : f32 to vector<8x128xf32>
    %249 = arith.addf %248, %247 : vector<8x128xf32>
    %250 = arith.divf %248, %249 : vector<8x128xf32>
    %251 = vector.extract_strided_slice %244 {offsets = [0, 128], sizes = [8, 128], strides = [1, 1]} : vector<8x512xf32> to vector<8x128xf32>
    %252 = arith.negf %251 : vector<8x128xf32>
    %253 = math.exp %252 : vector<8x128xf32>
    %cst_56 = arith.constant 1.000000e+00 : f32
    %254 = vector.broadcast %cst_56 : f32 to vector<8x128xf32>
    %255 = arith.addf %254, %253 : vector<8x128xf32>
    %256 = arith.divf %254, %255 : vector<8x128xf32>
    %257 = vector.extract_strided_slice %244 {offsets = [0, 256], sizes = [8, 128], strides = [1, 1]} : vector<8x512xf32> to vector<8x128xf32>
    %258 = math.tanh %257 : vector<8x128xf32>
    %259 = vector.extract_strided_slice %244 {offsets = [0, 384], sizes = [8, 128], strides = [1, 1]} : vector<8x512xf32> to vector<8x128xf32>
    %260 = arith.negf %259 : vector<8x128xf32>
    %261 = math.exp %260 : vector<8x128xf32>
    %cst_57 = arith.constant 1.000000e+00 : f32
    %262 = vector.broadcast %cst_57 : f32 to vector<8x128xf32>
    %263 = arith.addf %262, %261 : vector<8x128xf32>
    %264 = arith.divf %262, %263 : vector<8x128xf32>
    %265 = arith.mulf %256, %242 : vector<8x128xf32>
    %266 = arith.mulf %250, %258 : vector<8x128xf32>
    %267 = arith.addf %265, %266 : vector<8x128xf32>
    %268 = math.tanh %267 : vector<8x128xf32>
    %269 = arith.mulf %264, %268 : vector<8x128xf32>
    %cst_58 = arith.constant dense<0.000000e+00> : vector<8x512xf32>
    %270 = tpu.matmul %269, %4, %cst_58 {dimension_numbers = #tpu.dot_dimension_numbers<[1], [0], [0], [1], [0, 0, 1, 1], [], []>} : vector<8x128xf32>, vector<128x512xf32>, vector<8x512xf32> -> vector<8x512xf32>
    %271 = arith.addf %240, %270 : vector<8x512xf32>
    %272 = vector.extract_strided_slice %271 {offsets = [0, 0], sizes = [8, 128], strides = [1, 1]} : vector<8x512xf32> to vector<8x128xf32>
    %273 = arith.negf %272 : vector<8x128xf32>
    %274 = math.exp %273 : vector<8x128xf32>
    %cst_59 = arith.constant 1.000000e+00 : f32
    %275 = vector.broadcast %cst_59 : f32 to vector<8x128xf32>
    %276 = arith.addf %275, %274 : vector<8x128xf32>
    %277 = arith.divf %275, %276 : vector<8x128xf32>
    %278 = vector.extract_strided_slice %271 {offsets = [0, 128], sizes = [8, 128], strides = [1, 1]} : vector<8x512xf32> to vector<8x128xf32>
    %279 = arith.negf %278 : vector<8x128xf32>
    %280 = math.exp %279 : vector<8x128xf32>
    %cst_60 = arith.constant 1.000000e+00 : f32
    %281 = vector.broadcast %cst_60 : f32 to vector<8x128xf32>
    %282 = arith.addf %281, %280 : vector<8x128xf32>
    %283 = arith.divf %281, %282 : vector<8x128xf32>
    %284 = vector.extract_strided_slice %271 {offsets = [0, 256], sizes = [8, 128], strides = [1, 1]} : vector<8x512xf32> to vector<8x128xf32>
    %285 = math.tanh %284 : vector<8x128xf32>
    %286 = vector.extract_strided_slice %271 {offsets = [0, 384], sizes = [8, 128], strides = [1, 1]} : vector<8x512xf32> to vector<8x128xf32>
    %287 = arith.negf %286 : vector<8x128xf32>
    %288 = math.exp %287 : vector<8x128xf32>
    %cst_61 = arith.constant 1.000000e+00 : f32
    %289 = vector.broadcast %cst_61 : f32 to vector<8x128xf32>
    %290 = arith.addf %289, %288 : vector<8x128xf32>
    %291 = arith.divf %289, %290 : vector<8x128xf32>
    %292 = arith.mulf %283, %267 : vector<8x128xf32>
    %293 = arith.mulf %277, %285 : vector<8x128xf32>
    %294 = arith.addf %292, %293 : vector<8x128xf32>
    %295 = math.tanh %294 : vector<8x128xf32>
    %296 = arith.mulf %291, %295 : vector<8x128xf32>
    %cst_62 = arith.constant dense<0.000000e+00> : vector<8x512xf32>
    %297 = tpu.matmul %296, %4, %cst_62 {dimension_numbers = #tpu.dot_dimension_numbers<[1], [0], [0], [1], [0, 0, 1, 1], [], []>} : vector<8x128xf32>, vector<128x512xf32>, vector<8x512xf32> -> vector<8x512xf32>
    %298 = arith.addf %240, %297 : vector<8x512xf32>
    %299 = vector.extract_strided_slice %298 {offsets = [0, 0], sizes = [8, 128], strides = [1, 1]} : vector<8x512xf32> to vector<8x128xf32>
    %300 = arith.negf %299 : vector<8x128xf32>
    %301 = math.exp %300 : vector<8x128xf32>
    %cst_63 = arith.constant 1.000000e+00 : f32
    %302 = vector.broadcast %cst_63 : f32 to vector<8x128xf32>
    %303 = arith.addf %302, %301 : vector<8x128xf32>
    %304 = arith.divf %302, %303 : vector<8x128xf32>
    %305 = vector.extract_strided_slice %298 {offsets = [0, 128], sizes = [8, 128], strides = [1, 1]} : vector<8x512xf32> to vector<8x128xf32>
    %306 = arith.negf %305 : vector<8x128xf32>
    %307 = math.exp %306 : vector<8x128xf32>
    %cst_64 = arith.constant 1.000000e+00 : f32
    %308 = vector.broadcast %cst_64 : f32 to vector<8x128xf32>
    %309 = arith.addf %308, %307 : vector<8x128xf32>
    %310 = arith.divf %308, %309 : vector<8x128xf32>
    %311 = vector.extract_strided_slice %298 {offsets = [0, 256], sizes = [8, 128], strides = [1, 1]} : vector<8x512xf32> to vector<8x128xf32>
    %312 = math.tanh %311 : vector<8x128xf32>
    %313 = vector.extract_strided_slice %298 {offsets = [0, 384], sizes = [8, 128], strides = [1, 1]} : vector<8x512xf32> to vector<8x128xf32>
    %314 = arith.negf %313 : vector<8x128xf32>
    %315 = math.exp %314 : vector<8x128xf32>
    %cst_65 = arith.constant 1.000000e+00 : f32
    %316 = vector.broadcast %cst_65 : f32 to vector<8x128xf32>
    %317 = arith.addf %316, %315 : vector<8x128xf32>
    %318 = arith.divf %316, %317 : vector<8x128xf32>
    %319 = arith.mulf %310, %294 : vector<8x128xf32>
    %320 = arith.mulf %304, %312 : vector<8x128xf32>
    %321 = arith.addf %319, %320 : vector<8x128xf32>
    %322 = math.tanh %321 : vector<8x128xf32>
    %323 = arith.mulf %318, %322 : vector<8x128xf32>
    %cst_66 = arith.constant dense<0.000000e+00> : vector<8x512xf32>
    %324 = tpu.matmul %323, %4, %cst_66 {dimension_numbers = #tpu.dot_dimension_numbers<[1], [0], [0], [1], [0, 0, 1, 1], [], []>} : vector<8x128xf32>, vector<128x512xf32>, vector<8x512xf32> -> vector<8x512xf32>
    %325 = arith.addf %240, %324 : vector<8x512xf32>
    %326 = vector.extract_strided_slice %325 {offsets = [0, 0], sizes = [8, 128], strides = [1, 1]} : vector<8x512xf32> to vector<8x128xf32>
    %327 = arith.negf %326 : vector<8x128xf32>
    %328 = math.exp %327 : vector<8x128xf32>
    %cst_67 = arith.constant 1.000000e+00 : f32
    %329 = vector.broadcast %cst_67 : f32 to vector<8x128xf32>
    %330 = arith.addf %329, %328 : vector<8x128xf32>
    %331 = arith.divf %329, %330 : vector<8x128xf32>
    %332 = vector.extract_strided_slice %325 {offsets = [0, 128], sizes = [8, 128], strides = [1, 1]} : vector<8x512xf32> to vector<8x128xf32>
    %333 = arith.negf %332 : vector<8x128xf32>
    %334 = math.exp %333 : vector<8x128xf32>
    %cst_68 = arith.constant 1.000000e+00 : f32
    %335 = vector.broadcast %cst_68 : f32 to vector<8x128xf32>
    %336 = arith.addf %335, %334 : vector<8x128xf32>
    %337 = arith.divf %335, %336 : vector<8x128xf32>
    %338 = vector.extract_strided_slice %325 {offsets = [0, 256], sizes = [8, 128], strides = [1, 1]} : vector<8x512xf32> to vector<8x128xf32>
    %339 = math.tanh %338 : vector<8x128xf32>
    %340 = vector.extract_strided_slice %325 {offsets = [0, 384], sizes = [8, 128], strides = [1, 1]} : vector<8x512xf32> to vector<8x128xf32>
    %341 = arith.negf %340 : vector<8x128xf32>
    %342 = math.exp %341 : vector<8x128xf32>
    %cst_69 = arith.constant 1.000000e+00 : f32
    %343 = vector.broadcast %cst_69 : f32 to vector<8x128xf32>
    %344 = arith.addf %343, %342 : vector<8x128xf32>
    %345 = arith.divf %343, %344 : vector<8x128xf32>
    %346 = arith.mulf %337, %321 : vector<8x128xf32>
    %347 = arith.mulf %331, %339 : vector<8x128xf32>
    %348 = arith.addf %346, %347 : vector<8x128xf32>
    %349 = math.tanh %348 : vector<8x128xf32>
    %350 = arith.mulf %345, %349 : vector<8x128xf32>
    %cst_70 = arith.constant dense<0.000000e+00> : vector<8x512xf32>
    %351 = tpu.matmul %350, %4, %cst_70 {dimension_numbers = #tpu.dot_dimension_numbers<[1], [0], [0], [1], [0, 0, 1, 1], [], []>} : vector<8x128xf32>, vector<128x512xf32>, vector<8x512xf32> -> vector<8x512xf32>
    %352 = arith.addf %240, %351 : vector<8x512xf32>
    %353 = vector.extract_strided_slice %352 {offsets = [0, 0], sizes = [8, 128], strides = [1, 1]} : vector<8x512xf32> to vector<8x128xf32>
    %354 = arith.negf %353 : vector<8x128xf32>
    %355 = math.exp %354 : vector<8x128xf32>
    %cst_71 = arith.constant 1.000000e+00 : f32
    %356 = vector.broadcast %cst_71 : f32 to vector<8x128xf32>
    %357 = arith.addf %356, %355 : vector<8x128xf32>
    %358 = arith.divf %356, %357 : vector<8x128xf32>
    %359 = vector.extract_strided_slice %352 {offsets = [0, 128], sizes = [8, 128], strides = [1, 1]} : vector<8x512xf32> to vector<8x128xf32>
    %360 = arith.negf %359 : vector<8x128xf32>
    %361 = math.exp %360 : vector<8x128xf32>
    %cst_72 = arith.constant 1.000000e+00 : f32
    %362 = vector.broadcast %cst_72 : f32 to vector<8x128xf32>
    %363 = arith.addf %362, %361 : vector<8x128xf32>
    %364 = arith.divf %362, %363 : vector<8x128xf32>
    %365 = vector.extract_strided_slice %352 {offsets = [0, 256], sizes = [8, 128], strides = [1, 1]} : vector<8x512xf32> to vector<8x128xf32>
    %366 = math.tanh %365 : vector<8x128xf32>
    %367 = vector.extract_strided_slice %352 {offsets = [0, 384], sizes = [8, 128], strides = [1, 1]} : vector<8x512xf32> to vector<8x128xf32>
    %368 = arith.negf %367 : vector<8x128xf32>
    %369 = math.exp %368 : vector<8x128xf32>
    %cst_73 = arith.constant 1.000000e+00 : f32
    %370 = vector.broadcast %cst_73 : f32 to vector<8x128xf32>
    %371 = arith.addf %370, %369 : vector<8x128xf32>
    %372 = arith.divf %370, %371 : vector<8x128xf32>
    %373 = arith.mulf %364, %348 : vector<8x128xf32>
    %374 = arith.mulf %358, %366 : vector<8x128xf32>
    %375 = arith.addf %373, %374 : vector<8x128xf32>
    %376 = math.tanh %375 : vector<8x128xf32>
    %377 = arith.mulf %372, %376 : vector<8x128xf32>
    %378 = tpu.concatenate %269, %296, %323, %350, %377 in 0 : vector<8x128xf32>, vector<8x128xf32>, vector<8x128xf32>, vector<8x128xf32>, vector<8x128xf32> -> vector<40x128xf32>
    %cst_74 = arith.constant dense<0.000000e+00> : vector<40x10xf32>
    %379 = tpu.matmul %378, %6, %cst_74 {dimension_numbers = #tpu.dot_dimension_numbers<[1], [0], [0], [1], [0, 0, 1, 1], [], []>} : vector<40x128xf32>, vector<128x10xf32>, vector<40x10xf32> -> vector<40x10xf32>
    %380 = vector.broadcast %7 : vector<1x10xf32> to vector<40x10xf32>
    %381 = arith.addf %379, %380 : vector<40x10xf32>
    %cst_75 = arith.constant dense<0xFF800000> : vector<40xf32>
    %382 = vector.multi_reduction <maximumf>, %381, %cst_75 [1] : vector<40x10xf32> to vector<40xf32>
    %383 = vector.shape_cast %382 : vector<40xf32> to vector<40x1xf32>
    %384 = vector.broadcast %383 : vector<40x1xf32> to vector<40x10xf32>
    %385 = arith.subf %381, %384 : vector<40x10xf32>
    %386 = math.exp %385 : vector<40x10xf32>
    %cst_76 = arith.constant dense<0.000000e+00> : vector<40xf32>
    %387 = vector.multi_reduction <add>, %386, %cst_76 [1] : vector<40x10xf32> to vector<40xf32>
    %388 = vector.shape_cast %387 : vector<40xf32> to vector<40x1xf32>
    %389 = math.log %388 : vector<40x1xf32>
    %390 = vector.broadcast %389 : vector<40x1xf32> to vector<40x10xf32>
    %391 = arith.subf %385, %390 : vector<40x10xf32>
    %c0_77 = arith.constant 0 : index
    %c0_78 = arith.constant 0 : index
    %392 = vector.load %arg9[%c0_77, %c0_78] : memref<40x10xf32, #tpu.memory_space<vmem>>, vector<40x10xf32>
    tpu.vector_store %arg9[%c0_77, %c0_78], %391 {strides = array<i32>} : memref<40x10xf32, #tpu.memory_space<vmem>>, vector<40x10xf32>,
    return
  }
}

</mosaic_0001>

<llo_original>
// kernel: tpu_custom_call.1
$region0: #{tpu_custom_call.1}
  #allocation0 [shape = 'u32[]', space=smem, size = 0x4, offset = 0x4, fixed_abs, tag = 'smem constant byte address 0x4 - core index']
  #allocation1 [shape = 'u32[144,128]{1,0:T(1,128)}', space=vmem, size = 0x12000, scoped, tag = 'internal scratch']
  %s0 = inlined_call_operand.vmem [shape: f32[64,11], index: 0, kind: input, shape index: {}]
  %s1 = inlined_call_operand.vmem [shape: f32[11,512], index: 1, kind: input, shape index: {}]
  %s2 = inlined_call_operand.hbm [shape: f32[128,512], index: 2, kind: input, shape index: {}]
  %s3 = inlined_call_operand.vmem [shape: f32[1,512], index: 3, kind: input, shape index: {}]
  %s4 = inlined_call_operand.hbm [shape: f32[128,512], index: 4, kind: input, shape index: {}]
  %s5 = inlined_call_operand.hbm [shape: f32[128,512], index: 5, kind: input, shape index: {}]
  %s6 = inlined_call_operand.vmem [shape: f32[1,512], index: 6, kind: input, shape index: {}]
  %s7 = inlined_call_operand.vmem [shape: f32[128,10], index: 7, kind: input, shape index: {}]
  %s8 = inlined_call_operand.vmem [shape: f32[1,10], index: 8, kind: input, shape index: {}]
  %s9 = inlined_call_operand.vmem [shape: f32[40,10], index: 9, kind: output, shape index: {}]
  %s10 = sld [smem:[#allocation0]]
  $region58: #{tpu_custom_call.1} parent=0
    _
  %s12 = ssub.s32 1, %s10
  %s13 = scalar_select 0, %s12, %s10
  $region1: #{tpu_custom_call.1} parent=0
    #allocation2 [shape = 'u8[262144]{0}', space=vmem, size = 0x40000, scoped, tag = 'input window, operand 2, single buffered']
    #allocation3 [shape = 's32[1]{0}', space=sflag, size = 0x4, scoped, tag = 'scoped memory for tpu_custom_call.1']
    #allocation4 [shape = 'u8[262144]{0}', space=vmem, size = 0x40000, scoped, tag = 'input window, operand 4, single buffered']
    #allocation5 [shape = 's32[1]{0}', space=sflag, size = 0x4, scoped, tag = 'scoped memory for tpu_custom_call.1']
    #allocation6 [shape = 'u8[262144]{0}', space=vmem, size = 0x40000, scoped, tag = 'input window, operand 5, single buffered']
    %14 = vsyncpa [#allocation3], 0
    %15 = vsyncpa [#allocation5], 0
    // Predicated region
    $region2: #{tpu_custom_call.1} parent=1 // pred_check
      _
    $region3: #{tpu_custom_call.1} parent=1 // pred_check_branch
      %17 = sbr.rel (0) target = $region5
    $region4: #{tpu_custom_call.1} parent=1 // pred_region
      _
    $region5: #{tpu_custom_call.1} parent=1 // pred_fallthru
      _
    // Predicated region
    $region6: #{tpu_custom_call.1} parent=1 // pred_check
      _
    $region7: #{tpu_custom_call.1} parent=1 // pred_check_branch
      %19 = sbr.rel (0) target = $region9
    $region8: #{tpu_custom_call.1} parent=1 // pred_region
      _
    $region9: #{tpu_custom_call.1} parent=1 // pred_fallthru
      _
    // Predicated region
    $region10: #{tpu_custom_call.1} parent=1 // pred_check
      _
    $region11: #{tpu_custom_call.1} parent=1 // pred_check_branch
      %21 = sbr.rel (0) target = $region13
    $region12: #{tpu_custom_call.1} parent=1 // pred_region
      %s23 = ssub.s32 8192, 8192
      %24 = vsyncadd [#allocation3], %s23
      %s25 = sshll.u32 [#allocation2], 4
      %s26 = int_to_ptr.vmem [resolvable:$true] %s25
      %31 = dma.hbm_to_vmem [thread:$0]  %s2, 8192, %s26, [#allocation3], 512, 512, 32
    $region13: #{tpu_custom_call.1} parent=1 // pred_fallthru
      _
    // Predicated region
    $region14: #{tpu_custom_call.1} parent=1 // pred_check
      _
    $region15: #{tpu_custom_call.1} parent=1 // pred_check_branch
      %33 = sbr.rel (0) target = $region17
    $region16: #{tpu_custom_call.1} parent=1 // pred_region
      _
    $region17: #{tpu_custom_call.1} parent=1 // pred_fallthru
      _
    // Predicated region
    $region18: #{tpu_custom_call.1} parent=1 // pred_check
      _
    $region19: #{tpu_custom_call.1} parent=1 // pred_check_branch
      %35 = sbr.rel (0) target = $region21
    $region20: #{tpu_custom_call.1} parent=1 // pred_region
      %s37 = ssub.s32 8192, 8192
      %38 = vsyncadd [#allocation5], %s37
      %s39 = sshll.u32 [#allocation4], 4
      %s40 = int_to_ptr.vmem [resolvable:$true] %s39
      %45 = dma.hbm_to_vmem [thread:$0]  %s4, 8192, %s40, [#allocation5], 512, 512, 32
    $region21: #{tpu_custom_call.1} parent=1 // pred_fallthru
      _
    // Predicated region
    $region22: #{tpu_custom_call.1} parent=1 // pred_check
      _
    $region23: #{tpu_custom_call.1} parent=1 // pred_check_branch
      %47 = sbr.rel (0) target = $region25
    $region24: #{tpu_custom_call.1} parent=1 // pred_region
      %s49 = ssub.s32 8192, 8192
      %50 = vsyncadd [#allocation5], %s49
      %s51 = sshll.u32 [#allocation6], 4
      %s52 = int_to_ptr.vmem [resolvable:$true] %s51
      %57 = dma.hbm_to_vmem [thread:$0]  %s5, 8192, %s52, [#allocation5], 512, 512, 32
    $region25: #{tpu_custom_call.1} parent=1 // pred_fallthru
      _
    // Predicated region
    $region26: #{tpu_custom_call.1} parent=1 // pred_check
      _
    $region27: #{tpu_custom_call.1} parent=1 // pred_check_branch
      %59 = sbr.rel (0) target = $region29
    $region28: #{tpu_custom_call.1} parent=1 // pred_region
      _
    $region29: #{tpu_custom_call.1} parent=1 // pred_fallthru
      _
    // Predicated region
    $region30: #{tpu_custom_call.1} parent=1 // pred_check
      _
    $region31: #{tpu_custom_call.1} parent=1 // pred_check_branch
      %61 = sbr.rel (0) target = $region33
    $region32: #{tpu_custom_call.1} parent=1 // pred_region
      _
    $region33: #{tpu_custom_call.1} parent=1 // pred_fallthru
      _
    // Predicated region
    $region34: #{tpu_custom_call.1} parent=1 // pred_check
      _
    $region35: #{tpu_custom_call.1} parent=1 // pred_check_branch
      %63 = sbr.rel (0) target = $region37
    $region36: #{tpu_custom_call.1} parent=1 // pred_region
      _
    $region37: #{tpu_custom_call.1} parent=1 // pred_fallthru
      _
    // Predicated region
    $region38: #{tpu_custom_call.1} parent=1 // pred_check
      _
    $region39: #{tpu_custom_call.1} parent=1 // pred_check_branch
      %65 = sbr.rel (0) target = $region41
    $region40: #{tpu_custom_call.1} parent=1 // pred_region
      %66 = dma.done [#allocation3], 8192
    $region41: #{tpu_custom_call.1} parent=1 // pred_fallthru
      _
    // Predicated region
    $region42: #{tpu_custom_call.1} parent=1 // pred_check
      _
    $region43: #{tpu_custom_call.1} parent=1 // pred_check_branch
      %68 = sbr.rel (0) target = $region45
    $region44: #{tpu_custom_call.1} parent=1 // pred_region
      %69 = dma.done [#allocation5], 8192
    $region45: #{tpu_custom_call.1} parent=1 // pred_fallthru
      _
    // Predicated region
    $region46: #{tpu_custom_call.1} parent=1 // pred_check
      _
    $region47: #{tpu_custom_call.1} parent=1 // pred_check_branch
      %71 = sbr.rel (0) target = $region49
    $region48: #{tpu_custom_call.1} parent=1 // pred_region
      %72 = dma.done [#allocation5], 8192
    $region49: #{tpu_custom_call.1} parent=1 // pred_fallthru
      _
    %v73 = vld [vmem:[%s1] sm:$0xff]
    %v74 = vld [vmem:[%s1 + $0x8] sm:$0xff]
    %v75 = vld [vmem:[%s1 + $0x10] sm:$0xff]
    %v76 = vld [vmem:[%s1 + $0x18] sm:$0xff]
    %v77 = vld [vmem:[%s1 + $0x20] sm:$0x7]
    %v78 = vld [vmem:[%s1 + $0x28] sm:$0x7]
    %v79 = vld [vmem:[%s1 + $0x30] sm:$0x7]
    %v80 = vld [vmem:[%s1 + $0x38] sm:$0x7]
    %v81 = vld [vmem:[#allocation2] sm:$0xff]
    %v82 = vld [vmem:[#allocation2 + $0x8] sm:$0xff]
    %v83 = vld [vmem:[#allocation2 + $0x10] sm:$0xff]
    %v84 = vld [vmem:[#allocation2 + $0x18] sm:$0xff]
    %v85 = vld [vmem:[#allocation2 + $0x20] sm:$0xff]
    %v86 = vld [vmem:[#allocation2 + $0x28] sm:$0xff]
    %v87 = vld [vmem:[#allocation2 + $0x30] sm:$0xff]
    %v88 = vld [vmem:[#allocation2 + $0x38] sm:$0xff]
    %v89 = vld [vmem:[#allocation2 + $0x40] sm:$0xff]
    %v90 = vld [vmem:[#allocation2 + $0x48] sm:$0xff]
    %v91 = vld [vmem:[#allocation2 + $0x50] sm:$0xff]
    %v92 = vld [vmem:[#allocation2 + $0x58] sm:$0xff]
    %v93 = vld [vmem:[#allocation2 + $0x60] sm:$0xff]
    %v94 = vld [vmem:[#allocation2 + $0x68] sm:$0xff]
    %v95 = vld [vmem:[#allocation2 + $0x70] sm:$0xff]
    %v96 = vld [vmem:[#allocation2 + $0x78] sm:$0xff]
    %v97 = vld [vmem:[#allocation2 + $0x80] sm:$0xff]
    %v98 = vld [vmem:[#allocation2 + $0x88] sm:$0xff]
    %v99 = vld [vmem:[#allocation2 + $0x90] sm:$0xff]
    %v100 = vld [vmem:[#allocation2 + $0x98] sm:$0xff]
    %v101 = vld [vmem:[#allocation2 + $0xa0] sm:$0xff]
    %v102 = vld [vmem:[#allocation2 + $0xa8] sm:$0xff]
    %v103 = vld [vmem:[#allocation2 + $0xb0] sm:$0xff]
    %v104 = vld [vmem:[#allocation2 + $0xb8] sm:$0xff]
    %v105 = vld [vmem:[#allocation2 + $0xc0] sm:$0xff]
    %v106 = vld [vmem:[#allocation2 + $0xc8] sm:$0xff]
    %v107 = vld [vmem:[#allocation2 + $0xd0] sm:$0xff]
    %v108 = vld [vmem:[#allocation2 + $0xd8] sm:$0xff]
    %v109 = vld [vmem:[#allocation2 + $0xe0] sm:$0xff]
    %v110 = vld [vmem:[#allocation2 + $0xe8] sm:$0xff]
    %v111 = vld [vmem:[#allocation2 + $0xf0] sm:$0xff]
    %v112 = vld [vmem:[#allocation2 + $0xf8] sm:$0xff]
    %v113 = vld [vmem:[#allocation2 + $0x100] sm:$0xff]
    %v114 = vld [vmem:[#allocation2 + $0x108] sm:$0xff]
    %v115 = vld [vmem:[#allocation2 + $0x110] sm:$0xff]
    %v116 = vld [vmem:[#allocation2 + $0x118] sm:$0xff]
    %v117 = vld [vmem:[#allocation2 + $0x120] sm:$0xff]
    %v118 = vld [vmem:[#allocation2 + $0x128] sm:$0xff]
    %v119 = vld [vmem:[#allocation2 + $0x130] sm:$0xff]
    %v120 = vld [vmem:[#allocation2 + $0x138] sm:$0xff]
    %v121 = vld [vmem:[#allocation2 + $0x140] sm:$0xff]
    %v122 = vld [vmem:[#allocation2 + $0x148] sm:$0xff]
    %v123 = vld [vmem:[#allocation2 + $0x150] sm:$0xff]
    %v124 = vld [vmem:[#allocation2 + $0x158] sm:$0xff]
    %v125 = vld [vmem:[#allocation2 + $0x160] sm:$0xff]
    %v126 = vld [vmem:[#allocation2 + $0x168] sm:$0xff]
    %v127 = vld [vmem:[#allocation2 + $0x170] sm:$0xff]
    %v128 = vld [vmem:[#allocation2 + $0x178] sm:$0xff]
    %v129 = vld [vmem:[#allocation2 + $0x180] sm:$0xff]
    %v130 = vld [vmem:[#allocation2 + $0x188] sm:$0xff]
    %v131 = vld [vmem:[#allocation2 + $0x190] sm:$0xff]
    %v132 = vld [vmem:[#allocation2 + $0x198] sm:$0xff]
    %v133 = vld [vmem:[#allocation2 + $0x1a0] sm:$0xff]
    %v134 = vld [vmem:[#allocation2 + $0x1a8] sm:$0xff]
    %v135 = vld [vmem:[#allocation2 + $0x1b0] sm:$0xff]
    %v136 = vld [vmem:[#allocation2 + $0x1b8] sm:$0xff]
    %v137 = vld [vmem:[#allocation2 + $0x1c0] sm:$0xff]
    %v138 = vld [vmem:[#allocation2 + $0x1c8] sm:$0xff]
    %v139 = vld [vmem:[#allocation2 + $0x1d0] sm:$0xff]
    %v140 = vld [vmem:[#allocation2 + $0x1d8] sm:$0xff]
    %v141 = vld [vmem:[#allocation2 + $0x1e0] sm:$0xff]
    %v142 = vld [vmem:[#allocation2 + $0x1e8] sm:$0xff]
    %v143 = vld [vmem:[#allocation2 + $0x1f0] sm:$0xff]
    %v144 = vld [vmem:[#allocation2 + $0x1f8] sm:$0xff]
    %v145 = vld [vmem:[%s3] sm:$0xf]
    %v146 = vld [vmem:[#allocation4] sm:$0xff]
    %v147 = vld [vmem:[#allocation4 + $0x8] sm:$0xff]
    %v148 = vld [vmem:[#allocation4 + $0x10] sm:$0xff]
    %v149 = vld [vmem:[#allocation4 + $0x18] sm:$0xff]
    %v150 = vld [vmem:[#allocation4 + $0x20] sm:$0xff]
    %v151 = vld [vmem:[#allocation4 + $0x28] sm:$0xff]
    %v152 = vld [vmem:[#allocation4 + $0x30] sm:$0xff]
    %v153 = vld [vmem:[#allocation4 + $0x38] sm:$0xff]
    %v154 = vld [vmem:[#allocation4 + $0x40] sm:$0xff]
    %v155 = vld [vmem:[#allocation4 + $0x48] sm:$0xff]
    %v156 = vld [vmem:[#allocation4 + $0x50] sm:$0xff]
    %v157 = vld [vmem:[#allocation4 + $0x58] sm:$0xff]
    %v158 = vld [vmem:[#allocation4 + $0x60] sm:$0xff]
    %v159 = vld [vmem:[#allocation4 + $0x68] sm:$0xff]
    %v160 = vld [vmem:[#allocation4 + $0x70] sm:$0xff]
    %v161 = vld [vmem:[#allocation4 + $0x78] sm:$0xff]
    %v162 = vld [vmem:[#allocation4 + $0x80] sm:$0xff]
    %v163 = vld [vmem:[#allocation4 + $0x88] sm:$0xff]
    %v164 = vld [vmem:[#allocation4 + $0x90] sm:$0xff]
    %v165 = vld [vmem:[#allocation4 + $0x98] sm:$0xff]
    %v166 = vld [vmem:[#allocation4 + $0xa0] sm:$0xff]
    %v167 = vld [vmem:[#allocation4 + $0xa8] sm:$0xff]
    %v168 = vld [vmem:[#allocation4 + $0xb0] sm:$0xff]
    %v169 = vld [vmem:[#allocation4 + $0xb8] sm:$0xff]
    %v170 = vld [vmem:[#allocation4 + $0xc0] sm:$0xff]
    %v171 = vld [vmem:[#allocation4 + $0xc8] sm:$0xff]
    %v172 = vld [vmem:[#allocation4 + $0xd0] sm:$0xff]
    %v173 = vld [vmem:[#allocation4 + $0xd8] sm:$0xff]
    %v174 = vld [vmem:[#allocation4 + $0xe0] sm:$0xff]
    %v175 = vld [vmem:[#allocation4 + $0xe8] sm:$0xff]
    %v176 = vld [vmem:[#allocation4 + $0xf0] sm:$0xff]
    %v177 = vld [vmem:[#allocation4 + $0xf8] sm:$0xff]
    %v178 = vld [vmem:[#allocation4 + $0x100] sm:$0xff]
    %v179 = vld [vmem:[#allocation4 + $0x108] sm:$0xff]
    %v180 = vld [vmem:[#allocation4 + $0x110] sm:$0xff]
    %v181 = vld [vmem:[#allocation4 + $0x118] sm:$0xff]
    %v182 = vld [vmem:[#allocation4 + $0x120] sm:$0xff]
    %v183 = vld [vmem:[#allocation4 + $0x128] sm:$0xff]
    %v184 = vld [vmem:[#allocation4 + $0x130] sm:$0xff]
    %v185 = vld [vmem:[#allocation4 + $0x138] sm:$0xff]
    %v186 = vld [vmem:[#allocation4 + $0x140] sm:$0xff]
    %v187 = vld [vmem:[#allocation4 + $0x148] sm:$0xff]
    %v188 = vld [vmem:[#allocation4 + $0x150] sm:$0xff]
    %v189 = vld [vmem:[#allocation4 + $0x158] sm:$0xff]
    %v190 = vld [vmem:[#allocation4 + $0x160] sm:$0xff]
    %v191 = vld [vmem:[#allocation4 + $0x168] sm:$0xff]
    %v192 = vld [vmem:[#allocation4 + $0x170] sm:$0xff]
    %v193 = vld [vmem:[#allocation4 + $0x178] sm:$0xff]
    %v194 = vld [vmem:[#allocation4 + $0x180] sm:$0xff]
    %v195 = vld [vmem:[#allocation4 + $0x188] sm:$0xff]
    %v196 = vld [vmem:[#allocation4 + $0x190] sm:$0xff]
    %v197 = vld [vmem:[#allocation4 + $0x198] sm:$0xff]
    %v198 = vld [vmem:[#allocation4 + $0x1a0] sm:$0xff]
    %v199 = vld [vmem:[#allocation4 + $0x1a8] sm:$0xff]
    %v200 = vld [vmem:[#allocation4 + $0x1b0] sm:$0xff]
    %v201 = vld [vmem:[#allocation4 + $0x1b8] sm:$0xff]
    %v202 = vld [vmem:[#allocation4 + $0x1c0] sm:$0xff]
    %v203 = vld [vmem:[#allocation4 + $0x1c8] sm:$0xff]
    %v204 = vld [vmem:[#allocation4 + $0x1d0] sm:$0xff]
    %v205 = vld [vmem:[#allocation4 + $0x1d8] sm:$0xff]
    %v206 = vld [vmem:[#allocation4 + $0x1e0] sm:$0xff]
    %v207 = vld [vmem:[#allocation4 + $0x1e8] sm:$0xff]
    %v208 = vld [vmem:[#allocation4 + $0x1f0] sm:$0xff]
    %v209 = vld [vmem:[#allocation4 + $0x1f8] sm:$0xff]
    %v210 = vld [vmem:[#allocation6] sm:$0xff]
    %v211 = vld [vmem:[#allocation6 + $0x8] sm:$0xff]
    %v212 = vld [vmem:[#allocation6 + $0x10] sm:$0xff]
    %v213 = vld [vmem:[#allocation6 + $0x18] sm:$0xff]
    %v214 = vld [vmem:[#allocation6 + $0x20] sm:$0xff]
    %v215 = vld [vmem:[#allocation6 + $0x28] sm:$0xff]
    %v216 = vld [vmem:[#allocation6 + $0x30] sm:$0xff]
    %v217 = vld [vmem:[#allocation6 + $0x38] sm:$0xff]
    %v218 = vld [vmem:[#allocation6 + $0x40] sm:$0xff]
    %v219 = vld [vmem:[#allocation6 + $0x48] sm:$0xff]
    %v220 = vld [vmem:[#allocation6 + $0x50] sm:$0xff]
    %v221 = vld [vmem:[#allocation6 + $0x58] sm:$0xff]
    %v222 = vld [vmem:[#allocation6 + $0x60] sm:$0xff]
    %v223 = vld [vmem:[#allocation6 + $0x68] sm:$0xff]
    %v224 = vld [vmem:[#allocation6 + $0x70] sm:$0xff]
    %v225 = vld [vmem:[#allocation6 + $0x78] sm:$0xff]
    %v226 = vld [vmem:[#allocation6 + $0x80] sm:$0xff]
    %v227 = vld [vmem:[#allocation6 + $0x88] sm:$0xff]
    %v228 = vld [vmem:[#allocation6 + $0x90] sm:$0xff]
    %v229 = vld [vmem:[#allocation6 + $0x98] sm:$0xff]
    %v230 = vld [vmem:[#allocation6 + $0xa0] sm:$0xff]
    %v231 = vld [vmem:[#allocation6 + $0xa8] sm:$0xff]
    %v232 = vld [vmem:[#allocation6 + $0xb0] sm:$0xff]
    %v233 = vld [vmem:[#allocation6 + $0xb8] sm:$0xff]
    %v234 = vld [vmem:[#allocation6 + $0xc0] sm:$0xff]
    %v235 = vld [vmem:[#allocation6 + $0xc8] sm:$0xff]
    %v236 = vld [vmem:[#allocation6 + $0xd0] sm:$0xff]
    %v237 = vld [vmem:[#allocation6 + $0xd8] sm:$0xff]
    %v238 = vld [vmem:[#allocation6 + $0xe0] sm:$0xff]
    %v239 = vld [vmem:[#allocation6 + $0xe8] sm:$0xff]
    %v240 = vld [vmem:[#allocation6 + $0xf0] sm:$0xff]
    %v241 = vld [vmem:[#allocation6 + $0xf8] sm:$0xff]
    %v242 = vld [vmem:[#allocation6 + $0x100] sm:$0xff]
    %v243 = vld [vmem:[#allocation6 + $0x108] sm:$0xff]
    %v244 = vld [vmem:[#allocation6 + $0x110] sm:$0xff]
    %v245 = vld [vmem:[#allocation6 + $0x118] sm:$0xff]
    %v246 = vld [vmem:[#allocation6 + $0x120] sm:$0xff]
    %v247 = vld [vmem:[#allocation6 + $0x128] sm:$0xff]
    %v248 = vld [vmem:[#allocation6 + $0x130] sm:$0xff]
    %v249 = vld [vmem:[#allocation6 + $0x138] sm:$0xff]
    %v250 = vld [vmem:[#allocation6 + $0x140] sm:$0xff]
    %v251 = vld [vmem:[#allocation6 + $0x148] sm:$0xff]
    %v252 = vld [vmem:[#allocation6 + $0x150] sm:$0xff]
    %v253 = vld [vmem:[#allocation6 + $0x158] sm:$0xff]
    %v254 = vld [vmem:[#allocation6 + $0x160] sm:$0xff]
    %v255 = vld [vmem:[#allocation6 + $0x168] sm:$0xff]
    %v256 = vld [vmem:[#allocation6 + $0x170] sm:$0xff]
    %v257 = vld [vmem:[#allocation6 + $0x178] sm:$0xff]
    %v258 = vld [vmem:[#allocation6 + $0x180] sm:$0xff]
    %v259 = vld [vmem:[#allocation6 + $0x188] sm:$0xff]
    %v260 = vld [vmem:[#allocation6 + $0x190] sm:$0xff]
    %v261 = vld [vmem:[#allocation6 + $0x198] sm:$0xff]
    %v262 = vld [vmem:[#allocation6 + $0x1a0] sm:$0xff]
    %v263 = vld [vmem:[#allocation6 + $0x1a8] sm:$0xff]
    %v264 = vld [vmem:[#allocation6 + $0x1b0] sm:$0xff]
    %v265 = vld [vmem:[#allocation6 + $0x1b8] sm:$0xff]
    %v266 = vld [vmem:[#allocation6 + $0x1c0] sm:$0xff]
    %v267 = vld [vmem:[#allocation6 + $0x1c8] sm:$0xff]
    %v268 = vld [vmem:[#allocation6 + $0x1d0] sm:$0xff]
    %v269 = vld [vmem:[#allocation6 + $0x1d8] sm:$0xff]
    %v270 = vld [vmem:[#allocation6 + $0x1e0] sm:$0xff]
    %v271 = vld [vmem:[#allocation6 + $0x1e8] sm:$0xff]
    %v272 = vld [vmem:[#allocation6 + $0x1f0] sm:$0xff]
    %v273 = vld [vmem:[#allocation6 + $0x1f8] sm:$0xff]
    %v274 = vld [vmem:[%s6] sm:$0xf]
    %v275 = vld [vmem:[%s7] sm:$0xff]
    %v276 = vld [vmem:[%s7 + $0x8] sm:$0xff]
    %v277 = vld [vmem:[%s7 + $0x10] sm:$0xff]
    %v278 = vld [vmem:[%s7 + $0x18] sm:$0xff]
    %v279 = vld [vmem:[%s7 + $0x20] sm:$0xff]
    %v280 = vld [vmem:[%s7 + $0x28] sm:$0xff]
    %v281 = vld [vmem:[%s7 + $0x30] sm:$0xff]
    %v282 = vld [vmem:[%s7 + $0x38] sm:$0xff]
    %v283 = vld [vmem:[%s7 + $0x40] sm:$0xff]
    %v284 = vld [vmem:[%s7 + $0x48] sm:$0xff]
    %v285 = vld [vmem:[%s7 + $0x50] sm:$0xff]
    %v286 = vld [vmem:[%s7 + $0x58] sm:$0xff]
    %v287 = vld [vmem:[%s7 + $0x60] sm:$0xff]
    %v288 = vld [vmem:[%s7 + $0x68] sm:$0xff]
    %v289 = vld [vmem:[%s7 + $0x70] sm:$0xff]
    %v290 = vld [vmem:[%s7 + $0x78] sm:$0xff]
    %v291 = vld [vmem:[%s8] sm:$0x1]
    %v292 = vld [vmem:[%s0] sm:$0xff]
    %v293 = vld [vmem:[%s0 + $0x8] sm:$0xff]
    %v294 = vld [vmem:[%s0 + $0x10] sm:$0xff]
    %v295 = vld [vmem:[%s0 + $0x18] sm:$0xff]
    %v296 = vld [vmem:[%s0 + $0x20] sm:$0xff]
    %v297 = vld [vmem:[%s0 + $0x28] sm:$0xff]
    %v298 = vld [vmem:[%s0 + $0x30] sm:$0xff]
    %v299 = vld [vmem:[%s0 + $0x38] sm:$0xff]
    %v301 = vlaneseq
    %v302 = vshrl.u32 %v301, 7
    %v303 = vsub.s32 0, %v302
    %v304 = vrot.slane %v145, %v303
    %v305 = vlaneseq
    %v306 = vshrl.u32 %v305, 7
    %v307 = vsub.s32 1, %v306
    %v308 = vrot.slane %v145, %v307
    %v309 = vlaneseq
    %v310 = vshrl.u32 %v309, 7
    %v311 = vsub.s32 2, %v310
    %v312 = vrot.slane %v145, %v311
    %v313 = vlaneseq
    %v314 = vshrl.u32 %v313, 7
    %v315 = vsub.s32 3, %v314
    %v316 = vrot.slane %v145, %v315
    %vm321 = vcmask 89088
    %v323 = vsel %vm321, %v292, 0
    %v326 = vsel %vm321, %v293, 0
    %v329 = vsel %vm321, %v294, 0
    %v332 = vsel %vm321, %v295, 0
    %v335 = vsel %vm321, %v296, 0
    %v338 = vsel %vm321, %v297, 0
    %v341 = vsel %vm321, %v298, 0
    %v344 = vsel %vm321, %v299, 0
    %vm346 = vcmask 1042432
    %v348 = vsel %vm346, %v77, 0
    %v351 = vsel %vm346, %v78, 0
    %v354 = vsel %vm346, %v79, 0
    %v357 = vsel %vm346, %v80, 0
    %359 = vmatprep.subr.mxu0 %v74
    %360 = vmatpush1.msra.mxu0 %v73
    %361 = vmatprep.subr.mxu0 %v351
    %362 = vmatpush1.msra.mxu0 %v348
    %363 = vmatprep.subr.mxu0 0.0
    %364 = vmatpush1.msra.mxu0 0.0
    %365 = vmatprep.subr.mxu0 0.0
    %366 = vmatpush1.msra.mxu0 0.0
    %367 = vmatprep.subr.mxu0 0.0
    %368 = vmatpush1.msra.mxu0 0.0
    %369 = vmatprep.subr.mxu0 0.0
    %370 = vmatpush1.msra.mxu0 0.0
    %371 = vmatprep.subr.mxu0 0.0
    %372 = vmatpush1.msra.mxu0 0.0
    %373 = vmatprep.subr.mxu0 0.0
    %374 = vmatpush1.msra.mxu0 0.0
    %375 = vmatprep.subr.mxu0 0.0
    %376 = vmatpush1.msra.mxu0 0.0
    %377 = vmatprep.subr.mxu0 0.0
    %378 = vmatpush1.msra.mxu0 0.0
    %379 = vmatprep.subr.mxu0 0.0
    %380 = vmatpush1.msra.mxu0 0.0
    %381 = vmatprep.subr.mxu0 0.0
    %382 = vmatpush1.msra.mxu0 0.0
    %383 = vmatprep.subr.mxu0 0.0
    %384 = vmatpush1.msra.mxu0 0.0
    %385 = vmatprep.subr.mxu0 0.0
    %386 = vmatpush1.msra.mxu0 0.0
    %387 = vmatprep.subr.mxu0 0.0
    %388 = vmatpush1.msra.mxu0 0.0
    %389 = vmatprep.subr.mxu0 0.0
    %390 = vmatpush1.msra.mxu0 0.0
    %391 = vmatprep.subr.mxu0 0.0
    %392 = vmatpush1.msra.mxu0 0.0
    %393 = vmatprep.subr.mxu0 0.0
    %394 = vmatpush1.msra.mxu0 0.0
    %395 = vmatprep.subr.mxu0 0.0
    %396 = vmatpush1.msra.mxu0 0.0
    %397 = vmatprep.subr.mxu0 0.0
    %398 = vmatpush1.msra.mxu0 0.0
    %399 = vmatprep.subr.mxu0 0.0
    %400 = vmatpush1.msra.mxu0 0.0
    %401 = vmatprep.subr.mxu0 0.0
    %402 = vmatpush1.msra.mxu0 0.0
    %403 = vmatprep.subr.mxu0 0.0
    %404 = vmatpush1.msra.mxu0 0.0
    %405 = vmatprep.subr.mxu0 0.0
    %406 = vmatpush1.msra.mxu0 0.0
    %407 = vmatprep.subr.mxu0 0.0
    %408 = vmatpush1.msra.mxu0 0.0
    %409 = vmatprep.subr.mxu0 0.0
    %410 = vmatpush1.msra.mxu0 0.0
    %411 = vmatprep.subr.mxu0 0.0
    %412 = vmatpush1.msra.mxu0 0.0
    %413 = vmatprep.subr.mxu0 0.0
    %414 = vmatpush1.msra.mxu0 0.0
    %415 = vmatprep.subr.mxu0 0.0
    %416 = vmatpush1.msra.mxu0 0.0
    %417 = vmatprep.subr.mxu0 0.0
    %418 = vmatpush1.msra.mxu0 0.0
    %419 = vmatprep.subr.mxu0 0.0
    %420 = vmatpush1.msra.mxu0 0.0
    %421 = vmatprep.subr.mxu0 0.0
    %422 = vmatpush1.msra.mxu0 0.0
    %423 = vmatprep.mubr.f32.mxu0 0.0
    %424 = vmatmul.mubr.f32.gmra.mrb[0].mxu0 %v323
    %v425 = vpop.f32.mrb[0].mxu0
    %v426 = vadd.f32 %v304, %v425
    %v427 = vpop.f32.mrb[0].mxu0
    %v428 = vadd.f32 %v308, %v427
    %429 = vmatprep.mubr.f32.mxu0 0.0
    %430 = vmatmul.mubr.f32.gmra.mrb[0].mxu0 %v326
    %v431 = vpop.f32.mrb[0].mxu0
    %v432 = vadd.f32 %v304, %v431
    %v433 = vpop.f32.mrb[0].mxu0
    %v434 = vadd.f32 %v308, %v433
    %435 = vmatprep.mubr.f32.mxu0 0.0
    %436 = vmatmul.mubr.f32.gmra.mrb[0].mxu0 %v329
    %v437 = vpop.f32.mrb[0].mxu0
    %v438 = vadd.f32 %v304, %v437
    %v439 = vpop.f32.mrb[0].mxu0
    %v440 = vadd.f32 %v308, %v439
    %441 = vmatprep.mubr.f32.mxu0 0.0
    %442 = vmatmul.mubr.f32.gmra.mrb[0].mxu0 %v332
    %v443 = vpop.f32.mrb[0].mxu0
    %v444 = vadd.f32 %v304, %v443
    %v445 = vpop.f32.mrb[0].mxu0
    %v446 = vadd.f32 %v308, %v445
    %447 = vmatprep.mubr.f32.mxu0 0.0
    %448 = vmatmul.mubr.f32.gmra.mrb[0].mxu0 %v335
    %v449 = vpop.f32.mrb[0].mxu0
    %v450 = vadd.f32 %v304, %v449
    %v451 = vpop.f32.mrb[0].mxu0
    %v452 = vadd.f32 %v308, %v451
    %453 = vmatprep.mubr.f32.mxu0 0.0
    %454 = vmatmul.mubr.f32.gmra.mrb[0].mxu0 %v338
    %v455 = vpop.f32.mrb[0].mxu0
    %v456 = vadd.f32 %v304, %v455
    %v457 = vpop.f32.mrb[0].mxu0
    %v458 = vadd.f32 %v308, %v457
    %459 = vmatprep.mubr.f32.mxu0 0.0
    %460 = vmatmul.mubr.f32.gmra.mrb[0].mxu0 %v341
    %v461 = vpop.f32.mrb[0].mxu0
    %v462 = vadd.f32 %v304, %v461
    %v463 = vpop.f32.mrb[0].mxu0
    %v464 = vadd.f32 %v308, %v463
    %465 = vmatprep.mubr.f32.mxu0 0.0
    %466 = vmatmul.mubr.f32.gmra.mrb[0].mxu0 %v344
    %v467 = vpop.f32.mrb[0].mxu0
    %v468 = vadd.f32 %v304, %v467
    %v469 = vpop.f32.mrb[0].mxu0
    %v470 = vadd.f32 %v308, %v469
    %471 = vdwg.mxu0
    %472 = vmatprep.subr.mxu0 %v76
    %473 = vmatpush1.msra.mxu0 %v75
    %474 = vmatprep.subr.mxu0 %v357
    %475 = vmatpush1.msra.mxu0 %v354
    %476 = vmatprep.subr.mxu0 0.0
    %477 = vmatpush1.msra.mxu0 0.0
    %478 = vmatprep.subr.mxu0 0.0
    %479 = vmatpush1.msra.mxu0 0.0
    %480 = vmatprep.subr.mxu0 0.0
    %481 = vmatpush1.msra.mxu0 0.0
    %482 = vmatprep.subr.mxu0 0.0
    %483 = vmatpush1.msra.mxu0 0.0
    %484 = vmatprep.subr.mxu0 0.0
    %485 = vmatpush1.msra.mxu0 0.0
    %486 = vmatprep.subr.mxu0 0.0
    %487 = vmatpush1.msra.mxu0 0.0
    %488 = vmatprep.subr.mxu0 0.0
    %489 = vmatpush1.msra.mxu0 0.0
    %490 = vmatprep.subr.mxu0 0.0
    %491 = vmatpush1.msra.mxu0 0.0
    %492 = vmatprep.subr.mxu0 0.0
    %493 = vmatpush1.msra.mxu0 0.0
    %494 = vmatprep.subr.mxu0 0.0
    %495 = vmatpush1.msra.mxu0 0.0
    %496 = vmatprep.subr.mxu0 0.0
    %497 = vmatpush1.msra.mxu0 0.0
    %498 = vmatprep.subr.mxu0 0.0
    %499 = vmatpush1.msra.mxu0 0.0
    %500 = vmatprep.subr.mxu0 0.0
    %501 = vmatpush1.msra.mxu0 0.0
    %502 = vmatprep.subr.mxu0 0.0
    %503 = vmatpush1.msra.mxu0 0.0
    %504 = vmatprep.subr.mxu0 0.0
    %505 = vmatpush1.msra.mxu0 0.0
    %506 = vmatprep.subr.mxu0 0.0
    %507 = vmatpush1.msra.mxu0 0.0
    %508 = vmatprep.subr.mxu0 0.0
    %509 = vmatpush1.msra.mxu0 0.0
    %510 = vmatprep.subr.mxu0 0.0
    %511 = vmatpush1.msra.mxu0 0.0
    %512 = vmatprep.subr.mxu0 0.0
    %513 = vmatpush1.msra.mxu0 0.0
    %514 = vmatprep.subr.mxu0 0.0
    %515 = vmatpush1.msra.mxu0 0.0
    %516 = vmatprep.subr.mxu0 0.0
    %517 = vmatpush1.msra.mxu0 0.0
    %518 = vmatprep.subr.mxu0 0.0
    %519 = vmatpush1.msra.mxu0 0.0
    %520 = vmatprep.subr.mxu0 0.0
    %521 = vmatpush1.msra.mxu0 0.0
    %522 = vmatprep.subr.mxu0 0.0
    %523 = vmatpush1.msra.mxu0 0.0
    %524 = vmatprep.subr.mxu0 0.0
    %525 = vmatpush1.msra.mxu0 0.0
    %526 = vmatprep.subr.mxu0 0.0
    %527 = vmatpush1.msra.mxu0 0.0
    %528 = vmatprep.subr.mxu0 0.0
    %529 = vmatpush1.msra.mxu0 0.0
    %530 = vmatprep.subr.mxu0 0.0
    %531 = vmatpush1.msra.mxu0 0.0
    %532 = vmatprep.subr.mxu0 0.0
    %533 = vmatpush1.msra.mxu0 0.0
    %534 = vmatprep.subr.mxu0 0.0
    %535 = vmatpush1.msra.mxu0 0.0
    %536 = vmatprep.mubr.f32.mxu0 0.0
    %537 = vmatmul.mubr.f32.gmra.mrb[0].mxu0 %v323
    %v538 = vpop.f32.mrb[0].mxu0
    %v539 = vadd.f32 %v312, %v538
    %v540 = vpop.f32.mrb[0].mxu0
    %v541 = vadd.f32 %v316, %v540
    %542 = vmatprep.mubr.f32.mxu0 0.0
    %543 = vmatmul.mubr.f32.gmra.mrb[0].mxu0 %v326
    %v544 = vpop.f32.mrb[0].mxu0
    %v545 = vadd.f32 %v312, %v544
    %v546 = vpop.f32.mrb[0].mxu0
    %v547 = vadd.f32 %v316, %v546
    %548 = vmatprep.mubr.f32.mxu0 0.0
    %549 = vmatmul.mubr.f32.gmra.mrb[0].mxu0 %v329
    %v550 = vpop.f32.mrb[0].mxu0
    %v551 = vadd.f32 %v312, %v550
    %v552 = vpop.f32.mrb[0].mxu0
    %v553 = vadd.f32 %v316, %v552
    %554 = vmatprep.mubr.f32.mxu0 0.0
    %555 = vmatmul.mubr.f32.gmra.mrb[0].mxu0 %v332
    %v556 = vpop.f32.mrb[0].mxu0
    %v557 = vadd.f32 %v312, %v556
    %v558 = vpop.f32.mrb[0].mxu0
    %v559 = vadd.f32 %v316, %v558
    %560 = vmatprep.mubr.f32.mxu0 0.0
    %561 = vmatmul.mubr.f32.gmra.mrb[0].mxu0 %v335
    %v562 = vpop.f32.mrb[0].mxu0
    %v563 = vadd.f32 %v312, %v562
    %v564 = vpop.f32.mrb[0].mxu0
    %v565 = vadd.f32 %v316, %v564
    %566 = vmatprep.mubr.f32.mxu0 0.0
    %567 = vmatmul.mubr.f32.gmra.mrb[0].mxu0 %v338
    %v568 = vpop.f32.mrb[0].mxu0
    %v569 = vadd.f32 %v312, %v568
    %v570 = vpop.f32.mrb[0].mxu0
    %v571 = vadd.f32 %v316, %v570
    %572 = vmatprep.mubr.f32.mxu0 0.0
    %573 = vmatmul.mubr.f32.gmra.mrb[0].mxu0 %v341
    %v574 = vpop.f32.mrb[0].mxu0
    %v575 = vadd.f32 %v312, %v574
    %v576 = vpop.f32.mrb[0].mxu0
    %v577 = vadd.f32 %v316, %v576
    %578 = vmatprep.mubr.f32.mxu0 0.0
    %579 = vmatmul.mubr.f32.gmra.mrb[0].mxu0 %v344
    %v580 = vpop.f32.mrb[0].mxu0
    %v581 = vadd.f32 %v312, %v580
    %v582 = vpop.f32.mrb[0].mxu0
    %v583 = vadd.f32 %v316, %v582
    %584 = vdwg.mxu0
    %585 = vmatprep.subr.mxu0 %v82
    %586 = vmatpush1.msra.mxu0 %v81
    %587 = vmatprep.subr.mxu0 %v86
    %588 = vmatpush1.msra.mxu0 %v85
    %589 = vmatprep.subr.mxu0 %v90
    %590 = vmatpush1.msra.mxu0 %v89
    %591 = vmatprep.subr.mxu0 %v94
    %592 = vmatpush1.msra.mxu0 %v93
    %593 = vmatprep.subr.mxu0 %v98
    %594 = vmatpush1.msra.mxu0 %v97
    %595 = vmatprep.subr.mxu0 %v102
    %596 = vmatpush1.msra.mxu0 %v101
    %597 = vmatprep.subr.mxu0 %v106
    %598 = vmatpush1.msra.mxu0 %v105
    %599 = vmatprep.subr.mxu0 %v110
    %600 = vmatpush1.msra.mxu0 %v109
    %601 = vmatprep.subr.mxu0 %v114
    %602 = vmatpush1.msra.mxu0 %v113
    %603 = vmatprep.subr.mxu0 %v118
    %604 = vmatpush1.msra.mxu0 %v117
    %605 = vmatprep.subr.mxu0 %v122
    %606 = vmatpush1.msra.mxu0 %v121
    %607 = vmatprep.subr.mxu0 %v126
    %608 = vmatpush1.msra.mxu0 %v125
    %609 = vmatprep.subr.mxu0 %v130
    %610 = vmatpush1.msra.mxu0 %v129
    %611 = vmatprep.subr.mxu0 %v134
    %612 = vmatpush1.msra.mxu0 %v133
    %613 = vmatprep.subr.mxu0 %v138
    %614 = vmatpush1.msra.mxu0 %v137
    %615 = vmatprep.subr.mxu0 %v142
    %616 = vmatpush1.msra.mxu0 %v141
    %617 = vmatprep.subr.mxu0 0.0
    %618 = vmatpush1.msra.mxu0 0.0
    %619 = vmatprep.subr.mxu0 0.0
    %620 = vmatpush1.msra.mxu0 0.0
    %621 = vmatprep.subr.mxu0 0.0
    %622 = vmatpush1.msra.mxu0 0.0
    %623 = vmatprep.subr.mxu0 0.0
    %624 = vmatpush1.msra.mxu0 0.0
    %625 = vmatprep.subr.mxu0 0.0
    %626 = vmatpush1.msra.mxu0 0.0
    %627 = vmatprep.subr.mxu0 0.0
    %628 = vmatpush1.msra.mxu0 0.0
    %629 = vmatprep.subr.mxu0 0.0
    %630 = vmatpush1.msra.mxu0 0.0
    %631 = vmatprep.subr.mxu0 0.0
    %632 = vmatpush1.msra.mxu0 0.0
    %633 = vmatprep.subr.mxu0 0.0
    %634 = vmatpush1.msra.mxu0 0.0
    %635 = vmatprep.subr.mxu0 0.0
    %636 = vmatpush1.msra.mxu0 0.0
    %637 = vmatprep.subr.mxu0 0.0
    %638 = vmatpush1.msra.mxu0 0.0
    %639 = vmatprep.subr.mxu0 0.0
    %640 = vmatpush1.msra.mxu0 0.0
    %641 = vmatprep.subr.mxu0 0.0
    %642 = vmatpush1.msra.mxu0 0.0
    %643 = vmatprep.subr.mxu0 0.0
    %644 = vmatpush1.msra.mxu0 0.0
    %645 = vmatprep.subr.mxu0 0.0
    %646 = vmatpush1.msra.mxu0 0.0
    %647 = vmatprep.subr.mxu0 0.0
    %648 = vmatpush1.msra.mxu0 0.0
    %649 = vmatprep.mubr.f32.mxu0 0.0
    %650 = vmatmul.mubr.f32.gmra.mrb[0].mxu0 0.0
    %v651 = vpop.f32.mrb[0].mxu0
    %v652 = vadd.f32 0.0, %v651
    %v653 = vpop.f32.mrb[0].mxu0
    %v654 = vadd.f32 0.0, %v653
    %655 = vdwg.mxu0
    %656 = vmatprep.subr.mxu0 %v84
    %657 = vmatpush1.msra.mxu0 %v83
    %658 = vmatprep.subr.mxu0 %v88
    %659 = vmatpush1.msra.mxu0 %v87
    %660 = vmatprep.subr.mxu0 %v92
    %661 = vmatpush1.msra.mxu0 %v91
    %662 = vmatprep.subr.mxu0 %v96
    %663 = vmatpush1.msra.mxu0 %v95
    %664 = vmatprep.subr.mxu0 %v100
    %665 = vmatpush1.msra.mxu0 %v99
    %666 = vmatprep.subr.mxu0 %v104
    %667 = vmatpush1.msra.mxu0 %v103
    %668 = vmatprep.subr.mxu0 %v108
    %669 = vmatpush1.msra.mxu0 %v107
    %670 = vmatprep.subr.mxu0 %v112
    %671 = vmatpush1.msra.mxu0 %v111
    %672 = vmatprep.subr.mxu0 %v116
    %673 = vmatpush1.msra.mxu0 %v115
    %674 = vmatprep.subr.mxu0 %v120
    %675 = vmatpush1.msra.mxu0 %v119
    %676 = vmatprep.subr.mxu0 %v124
    %677 = vmatpush1.msra.mxu0 %v123
    %678 = vmatprep.subr.mxu0 %v128
    %679 = vmatpush1.msra.mxu0 %v127
    %680 = vmatprep.subr.mxu0 %v132
    %681 = vmatpush1.msra.mxu0 %v131
    %682 = vmatprep.subr.mxu0 %v136
    %683 = vmatpush1.msra.mxu0 %v135
    %684 = vmatprep.subr.mxu0 %v140
    %685 = vmatpush1.msra.mxu0 %v139
    %686 = vmatprep.subr.mxu0 %v144
    %687 = vmatpush1.msra.mxu0 %v143
    %688 = vmatprep.subr.mxu0 0.0
    %689 = vmatpush1.msra.mxu0 0.0
    %690 = vmatprep.subr.mxu0 0.0
    %691 = vmatpush1.msra.mxu0 0.0
    %692 = vmatprep.subr.mxu0 0.0
    %693 = vmatpush1.msra.mxu0 0.0
    %694 = vmatprep.subr.mxu0 0.0
    %695 = vmatpush1.msra.mxu0 0.0
    %696 = vmatprep.subr.mxu0 0.0
    %697 = vmatpush1.msra.mxu0 0.0
    %698 = vmatprep.subr.mxu0 0.0
    %699 = vmatpush1.msra.mxu0 0.0
    %700 = vmatprep.subr.mxu0 0.0
    %701 = vmatpush1.msra.mxu0 0.0
    %702 = vmatprep.subr.mxu0 0.0
    %703 = vmatpush1.msra.mxu0 0.0
    %704 = vmatprep.subr.mxu0 0.0
    %705 = vmatpush1.msra.mxu0 0.0
    %706 = vmatprep.subr.mxu0 0.0
    %707 = vmatpush1.msra.mxu0 0.0
    %708 = vmatprep.subr.mxu0 0.0
    %709 = vmatpush1.msra.mxu0 0.0
    %710 = vmatprep.subr.mxu0 0.0
    %711 = vmatpush1.msra.mxu0 0.0
    %712 = vmatprep.subr.mxu0 0.0
    %713 = vmatpush1.msra.mxu0 0.0
    %714 = vmatprep.subr.mxu0 0.0
    %715 = vmatpush1.msra.mxu0 0.0
    %716 = vmatprep.subr.mxu0 0.0
    %717 = vmatpush1.msra.mxu0 0.0
    %718 = vmatprep.subr.mxu0 0.0
    %719 = vmatpush1.msra.mxu0 0.0
    %720 = vmatprep.mubr.f32.mxu0 0.0
    %721 = vmatmul.mubr.f32.gmra.mrb[0].mxu0 0.0
    %v722 = vpop.f32.mrb[0].mxu0
    %v723 = vadd.f32 0.0, %v722
    %v724 = vpop.f32.mrb[0].mxu0
    %v725 = vadd.f32 0.0, %v724
    %726 = vdwg.mxu0
    %v727 = vadd.f32 %v426, %v652
    %v728 = vadd.f32 %v428, %v654
    %v729 = vadd.f32 %v539, %v723
    %v730 = vadd.f32 %v541, %v725
    %v731 = vxor.u32 %v727, 2147483648
    %v732 = vmul.f32 %v731, 1.442695
    %v733 = vpow.pop %v732
    %v734 = vadd.f32 %v733, 1.0
    %v735 = vrcp.pop %v734
    %v736 = vmul.f32 1.0, %v735
    %v737 = vxor.u32 %v728, 2147483648
    %v738 = vmul.f32 %v737, 1.442695
    %v739 = vpow.pop %v738
    %v740 = vadd.f32 %v739, 1.0
    %v741 = vrcp.pop %v740
    %v742 = vmul.f32 1.0, %v741
    %v743 = vtanh.pop %v729
    %v744 = vxor.u32 %v730, 2147483648
    %v745 = vmul.f32 %v744, 1.442695
    %v746 = vpow.pop %v745
    %v747 = vadd.f32 %v746, 1.0
    %v748 = vrcp.pop %v747
    %v749 = vmul.f32 1.0, %v748
    %v750 = vmul.f32 %v742, 0.0
    %v751 = vmul.f32 %v736, %v743
    %v752 = vadd.f32 %v750, %v751
    %v753 = vtanh.pop %v752
    %v754 = vmul.f32 %v749, %v753
    %755 = vmatprep.subr.mxu0 %v82
    %756 = vmatpush1.msra.mxu0 %v81
    %757 = vmatprep.subr.mxu0 %v86
    %758 = vmatpush1.msra.mxu0 %v85
    %759 = vmatprep.subr.mxu0 %v90
    %760 = vmatpush1.msra.mxu0 %v89
    %761 = vmatprep.subr.mxu0 %v94
    %762 = vmatpush1.msra.mxu0 %v93
    %763 = vmatprep.subr.mxu0 %v98
    %764 = vmatpush1.msra.mxu0 %v97
    %765 = vmatprep.subr.mxu0 %v102
    %766 = vmatpush1.msra.mxu0 %v101
    %767 = vmatprep.subr.mxu0 %v106
    %768 = vmatpush1.msra.mxu0 %v105
    %769 = vmatprep.subr.mxu0 %v110
    %770 = vmatpush1.msra.mxu0 %v109
    %771 = vmatprep.subr.mxu0 %v114
    %772 = vmatpush1.msra.mxu0 %v113
    %773 = vmatprep.subr.mxu0 %v118
    %774 = vmatpush1.msra.mxu0 %v117
    %775 = vmatprep.subr.mxu0 %v122
    %776 = vmatpush1.msra.mxu0 %v121
    %777 = vmatprep.subr.mxu0 %v126
    %778 = vmatpush1.msra.mxu0 %v125
    %779 = vmatprep.subr.mxu0 %v130
    %780 = vmatpush1.msra.mxu0 %v129
    %781 = vmatprep.subr.mxu0 %v134
    %782 = vmatpush1.msra.mxu0 %v133
    %783 = vmatprep.subr.mxu0 %v138
    %784 = vmatpush1.msra.mxu0 %v137
    %785 = vmatprep.subr.mxu0 %v142
    %786 = vmatpush1.msra.mxu0 %v141
    %787 = vmatprep.subr.mxu0 0.0
    %788 = vmatpush1.msra.mxu0 0.0
    %789 = vmatprep.subr.mxu0 0.0
    %790 = vmatpush1.msra.mxu0 0.0
    %791 = vmatprep.subr.mxu0 0.0
    %792 = vmatpush1.msra.mxu0 0.0
    %793 = vmatprep.subr.mxu0 0.0
    %794 = vmatpush1.msra.mxu0 0.0
    %795 = vmatprep.subr.mxu0 0.0
    %796 = vmatpush1.msra.mxu0 0.0
    %797 = vmatprep.subr.mxu0 0.0
    %798 = vmatpush1.msra.mxu0 0.0
    %799 = vmatprep.subr.mxu0 0.0
    %800 = vmatpush1.msra.mxu0 0.0
    %801 = vmatprep.subr.mxu0 0.0
    %802 = vmatpush1.msra.mxu0 0.0
    %803 = vmatprep.subr.mxu0 0.0
    %804 = vmatpush1.msra.mxu0 0.0
    %805 = vmatprep.subr.mxu0 0.0
    %806 = vmatpush1.msra.mxu0 0.0
    %807 = vmatprep.subr.mxu0 0.0
    %808 = vmatpush1.msra.mxu0 0.0
    %809 = vmatprep.subr.mxu0 0.0
    %810 = vmatpush1.msra.mxu0 0.0
    %811 = vmatprep.subr.mxu0 0.0
    %812 = vmatpush1.msra.mxu0 0.0
    %813 = vmatprep.subr.mxu0 0.0
    %814 = vmatpush1.msra.mxu0 0.0
    %815 = vmatprep.subr.mxu0 0.0
    %816 = vmatpush1.msra.mxu0 0.0
    %817 = vmatprep.subr.mxu0 0.0
    %818 = vmatpush1.msra.mxu0 0.0
    %819 = vmatprep.mubr.f32.mxu0 0.0
    %820 = vmatmul.mubr.f32.gmra.mrb[0].mxu0 %v754
    %v821 = vpop.f32.mrb[0].mxu0
    %v822 = vadd.f32 0.0, %v821
    %v823 = vpop.f32.mrb[0].mxu0
    %v824 = vadd.f32 0.0, %v823
    %825 = vdwg.mxu0
    %826 = vmatprep.subr.mxu0 %v84
    %827 = vmatpush1.msra.mxu0 %v83
    %828 = vmatprep.subr.mxu0 %v88
    %829 = vmatpush1.msra.mxu0 %v87
    %830 = vmatprep.subr.mxu0 %v92
    %831 = vmatpush1.msra.mxu0 %v91
    %832 = vmatprep.subr.mxu0 %v96
    %833 = vmatpush1.msra.mxu0 %v95
    %834 = vmatprep.subr.mxu0 %v100
    %835 = vmatpush1.msra.mxu0 %v99
    %836 = vmatprep.subr.mxu0 %v104
    %837 = vmatpush1.msra.mxu0 %v103
    %838 = vmatprep.subr.mxu0 %v108
    %839 = vmatpush1.msra.mxu0 %v107
    %840 = vmatprep.subr.mxu0 %v112
    %841 = vmatpush1.msra.mxu0 %v111
    %842 = vmatprep.subr.mxu0 %v116
    %843 = vmatpush1.msra.mxu0 %v115
    %844 = vmatprep.subr.mxu0 %v120
    %845 = vmatpush1.msra.mxu0 %v119
    %846 = vmatprep.subr.mxu0 %v124
    %847 = vmatpush1.msra.mxu0 %v123
    %848 = vmatprep.subr.mxu0 %v128
    %849 = vmatpush1.msra.mxu0 %v127
    %850 = vmatprep.subr.mxu0 %v132
    %851 = vmatpush1.msra.mxu0 %v131
    %852 = vmatprep.subr.mxu0 %v136
    %853 = vmatpush1.msra.mxu0 %v135
    %854 = vmatprep.subr.mxu0 %v140
    %855 = vmatpush1.msra.mxu0 %v139
    %856 = vmatprep.subr.mxu0 %v144
    %857 = vmatpush1.msra.mxu0 %v143
    %858 = vmatprep.subr.mxu0 0.0
    %859 = vmatpush1.msra.mxu0 0.0
    %860 = vmatprep.subr.mxu0 0.0
    %861 = vmatpush1.msra.mxu0 0.0
    %862 = vmatprep.subr.mxu0 0.0
    %863 = vmatpush1.msra.mxu0 0.0
    %864 = vmatprep.subr.mxu0 0.0
    %865 = vmatpush1.msra.mxu0 0.0
    %866 = vmatprep.subr.mxu0 0.0
    %867 = vmatpush1.msra.mxu0 0.0
    %868 = vmatprep.subr.mxu0 0.0
    %869 = vmatpush1.msra.mxu0 0.0
    %870 = vmatprep.subr.mxu0 0.0
    %871 = vmatpush1.msra.mxu0 0.0
    %872 = vmatprep.subr.mxu0 0.0
    %873 = vmatpush1.msra.mxu0 0.0
    %874 = vmatprep.subr.mxu0 0.0
    %875 = vmatpush1.msra.mxu0 0.0
    %876 = vmatprep.subr.mxu0 0.0
    %877 = vmatpush1.msra.mxu0 0.0
    %878 = vmatprep.subr.mxu0 0.0
    %879 = vmatpush1.msra.mxu0 0.0
    %880 = vmatprep.subr.mxu0 0.0
    %881 = vmatpush1.msra.mxu0 0.0
    %882 = vmatprep.subr.mxu0 0.0
    %883 = vmatpush1.msra.mxu0 0.0
    %884 = vmatprep.subr.mxu0 0.0
    %885 = vmatpush1.msra.mxu0 0.0
    %886 = vmatprep.subr.mxu0 0.0
    %887 = vmatpush1.msra.mxu0 0.0
    %888 = vmatprep.subr.mxu0 0.0
    %889 = vmatpush1.msra.mxu0 0.0
    %890 = vmatprep.mubr.f32.mxu0 0.0
    %891 = vmatmul.mubr.f32.gmra.mrb[0].mxu0 %v754
    %v892 = vpop.f32.mrb[0].mxu0
    %v893 = vadd.f32 0.0, %v892
    %v894 = vpop.f32.mrb[0].mxu0
    %v895 = vadd.f32 0.0, %v894
    %896 = vdwg.mxu0
    %v897 = vadd.f32 %v432, %v822
    %v898 = vadd.f32 %v434, %v824
    %v899 = vadd.f32 %v545, %v893
    %v900 = vadd.f32 %v547, %v895
    %v901 = vxor.u32 %v897, 2147483648
    %v902 = vmul.f32 %v901, 1.442695
    %v903 = vpow.pop %v902
    %v904 = vadd.f32 %v903, 1.0
    %v905 = vrcp.pop %v904
    %v906 = vmul.f32 1.0, %v905
    %v907 = vxor.u32 %v898, 2147483648
    %v908 = vmul.f32 %v907, 1.442695
    %v909 = vpow.pop %v908
    %v910 = vadd.f32 %v909, 1.0
    %v911 = vrcp.pop %v910
    %v912 = vmul.f32 1.0, %v911
    %v913 = vtanh.pop %v899
    %v914 = vxor.u32 %v900, 2147483648
    %v915 = vmul.f32 %v914, 1.442695
    %v916 = vpow.pop %v915
    %v917 = vadd.f32 %v916, 1.0
    %v918 = vrcp.pop %v917
    %v919 = vmul.f32 1.0, %v918
    %v920 = vmul.f32 %v912, %v752
    %v921 = vmul.f32 %v906, %v913
    %v922 = vadd.f32 %v920, %v921
    %v923 = vtanh.pop %v922
    %v924 = vmul.f32 %v919, %v923
    %925 = vmatprep.subr.mxu0 %v82
    %926 = vmatpush1.msra.mxu0 %v81
    %927 = vmatprep.subr.mxu0 %v86
    %928 = vmatpush1.msra.mxu0 %v85
    %929 = vmatprep.subr.mxu0 %v90
    %930 = vmatpush1.msra.mxu0 %v89
    %931 = vmatprep.subr.mxu0 %v94
    %932 = vmatpush1.msra.mxu0 %v93
    %933 = vmatprep.subr.mxu0 %v98
    %934 = vmatpush1.msra.mxu0 %v97
    %935 = vmatprep.subr.mxu0 %v102
    %936 = vmatpush1.msra.mxu0 %v101
    %937 = vmatprep.subr.mxu0 %v106
    %938 = vmatpush1.msra.mxu0 %v105
    %939 = vmatprep.subr.mxu0 %v110
    %940 = vmatpush1.msra.mxu0 %v109
    %941 = vmatprep.subr.mxu0 %v114
    %942 = vmatpush1.msra.mxu0 %v113
    %943 = vmatprep.subr.mxu0 %v118
    %944 = vmatpush1.msra.mxu0 %v117
    %945 = vmatprep.subr.mxu0 %v122
    %946 = vmatpush1.msra.mxu0 %v121
    %947 = vmatprep.subr.mxu0 %v126
    %948 = vmatpush1.msra.mxu0 %v125
    %949 = vmatprep.subr.mxu0 %v130
    %950 = vmatpush1.msra.mxu0 %v129
    %951 = vmatprep.subr.mxu0 %v134
    %952 = vmatpush1.msra.mxu0 %v133
    %953 = vmatprep.subr.mxu0 %v138
    %954 = vmatpush1.msra.mxu0 %v137
    %955 = vmatprep.subr.mxu0 %v142
    %956 = vmatpush1.msra.mxu0 %v141
    %957 = vmatprep.subr.mxu0 0.0
    %958 = vmatpush1.msra.mxu0 0.0
    %959 = vmatprep.subr.mxu0 0.0
    %960 = vmatpush1.msra.mxu0 0.0
    %961 = vmatprep.subr.mxu0 0.0
    %962 = vmatpush1.msra.mxu0 0.0
    %963 = vmatprep.subr.mxu0 0.0
    %964 = vmatpush1.msra.mxu0 0.0
    %965 = vmatprep.subr.mxu0 0.0
    %966 = vmatpush1.msra.mxu0 0.0
    %967 = vmatprep.subr.mxu0 0.0
    %968 = vmatpush1.msra.mxu0 0.0
    %969 = vmatprep.subr.mxu0 0.0
    %970 = vmatpush1.msra.mxu0 0.0
    %971 = vmatprep.subr.mxu0 0.0
    %972 = vmatpush1.msra.mxu0 0.0
    %973 = vmatprep.subr.mxu0 0.0
    %974 = vmatpush1.msra.mxu0 0.0
    %975 = vmatprep.subr.mxu0 0.0
    %976 = vmatpush1.msra.mxu0 0.0
    %977 = vmatprep.subr.mxu0 0.0
    %978 = vmatpush1.msra.mxu0 0.0
    %979 = vmatprep.subr.mxu0 0.0
    %980 = vmatpush1.msra.mxu0 0.0
    %981 = vmatprep.subr.mxu0 0.0
    %982 = vmatpush1.msra.mxu0 0.0
    %983 = vmatprep.subr.mxu0 0.0
    %984 = vmatpush1.msra.mxu0 0.0
    %985 = vmatprep.subr.mxu0 0.0
    %986 = vmatpush1.msra.mxu0 0.0
    %987 = vmatprep.subr.mxu0 0.0
    %988 = vmatpush1.msra.mxu0 0.0
    %989 = vmatprep.mubr.f32.mxu0 0.0
    %990 = vmatmul.mubr.f32.gmra.mrb[0].mxu0 %v924
    %v991 = vpop.f32.mrb[0].mxu0
    %v992 = vadd.f32 0.0, %v991
    %v993 = vpop.f32.mrb[0].mxu0
    %v994 = vadd.f32 0.0, %v993
    %995 = vdwg.mxu0
    %996 = vmatprep.subr.mxu0 %v84
    %997 = vmatpush1.msra.mxu0 %v83
    %998 = vmatprep.subr.mxu0 %v88
    %999 = vmatpush1.msra.mxu0 %v87
    %1000 = vmatprep.subr.mxu0 %v92
    %1001 = vmatpush1.msra.mxu0 %v91
    %1002 = vmatprep.subr.mxu0 %v96
    %1003 = vmatpush1.msra.mxu0 %v95
    %1004 = vmatprep.subr.mxu0 %v100
    %1005 = vmatpush1.msra.mxu0 %v99
    %1006 = vmatprep.subr.mxu0 %v104
    %1007 = vmatpush1.msra.mxu0 %v103
    %1008 = vmatprep.subr.mxu0 %v108
    %1009 = vmatpush1.msra.mxu0 %v107
    %1010 = vmatprep.subr.mxu0 %v112
    %1011 = vmatpush1.msra.mxu0 %v111
    %1012 = vmatprep.subr.mxu0 %v116
    %1013 = vmatpush1.msra.mxu0 %v115
    %1014 = vmatprep.subr.mxu0 %v120
    %1015 = vmatpush1.msra.mxu0 %v119
    %1016 = vmatprep.subr.mxu0 %v124
    %1017 = vmatpush1.msra.mxu0 %v123
    %1018 = vmatprep.subr.mxu0 %v128
    %1019 = vmatpush1.msra.mxu0 %v127
    %1020 = vmatprep.subr.mxu0 %v132
    %1021 = vmatpush1.msra.mxu0 %v131
    %1022 = vmatprep.subr.mxu0 %v136
    %1023 = vmatpush1.msra.mxu0 %v135
    %1024 = vmatprep.subr.mxu0 %v140
    %1025 = vmatpush1.msra.mxu0 %v139
    %1026 = vmatprep.subr.mxu0 %v144
    %1027 = vmatpush1.msra.mxu0 %v143
    %1028 = vmatprep.subr.mxu0 0.0
    %1029 = vmatpush1.msra.mxu0 0.0
    %1030 = vmatprep.subr.mxu0 0.0
    %1031 = vmatpush1.msra.mxu0 0.0
    %1032 = vmatprep.subr.mxu0 0.0
    %1033 = vmatpush1.msra.mxu0 0.0
    %1034 = vmatprep.subr.mxu0 0.0
    %1035 = vmatpush1.msra.mxu0 0.0
    %1036 = vmatprep.subr.mxu0 0.0
    %1037 = vmatpush1.msra.mxu0 0.0
    %1038 = vmatprep.subr.mxu0 0.0
    %1039 = vmatpush1.msra.mxu0 0.0
    %1040 = vmatprep.subr.mxu0 0.0
    %1041 = vmatpush1.msra.mxu0 0.0
    %1042 = vmatprep.subr.mxu0 0.0
    %1043 = vmatpush1.msra.mxu0 0.0
    %1044 = vmatprep.subr.mxu0 0.0
    %1045 = vmatpush1.msra.mxu0 0.0
    %1046 = vmatprep.subr.mxu0 0.0
    %1047 = vmatpush1.msra.mxu0 0.0
    %1048 = vmatprep.subr.mxu0 0.0
    %1049 = vmatpush1.msra.mxu0 0.0
    %1050 = vmatprep.subr.mxu0 0.0
    %1051 = vmatpush1.msra.mxu0 0.0
    %1052 = vmatprep.subr.mxu0 0.0
    %1053 = vmatpush1.msra.mxu0 0.0
    %1054 = vmatprep.subr.mxu0 0.0
    %1055 = vmatpush1.msra.mxu0 0.0
    %1056 = vmatprep.subr.mxu0 0.0
    %1057 = vmatpush1.msra.mxu0 0.0
    %1058 = vmatprep.subr.mxu0 0.0
    %1059 = vmatpush1.msra.mxu0 0.0
    %1060 = vmatprep.mubr.f32.mxu0 0.0
    %1061 = vmatmul.mubr.f32.gmra.mrb[0].mxu0 %v924
    %v1062 = vpop.f32.mrb[0].mxu0
    %v1063 = vadd.f32 0.0, %v1062
    %v1064 = vpop.f32.mrb[0].mxu0
    %v1065 = vadd.f32 0.0, %v1064
    %1066 = vdwg.mxu0
    %v1067 = vadd.f32 %v438, %v992
    %v1068 = vadd.f32 %v440, %v994
    %v1069 = vadd.f32 %v551, %v1063
    %v1070 = vadd.f32 %v553, %v1065
    %v1071 = vxor.u32 %v1067, 2147483648
    %v1072 = vmul.f32 %v1071, 1.442695
    %v1073 = vpow.pop %v1072
    %v1074 = vadd.f32 %v1073, 1.0
    %v1075 = vrcp.pop %v1074
    %v1076 = vmul.f32 1.0, %v1075
    %v1077 = vxor.u32 %v1068, 2147483648
    %v1078 = vmul.f32 %v1077, 1.442695
    %v1079 = vpow.pop %v1078
    %v1080 = vadd.f32 %v1079, 1.0
    %v1081 = vrcp.pop %v1080
    %v1082 = vmul.f32 1.0, %v1081
    %v1083 = vtanh.pop %v1069
    %v1084 = vxor.u32 %v1070, 2147483648
    %v1085 = vmul.f32 %v1084, 1.442695
    %v1086 = vpow.pop %v1085
    %v1087 = vadd.f32 %v1086, 1.0
    %v1088 = vrcp.pop %v1087
    %v1089 = vmul.f32 1.0, %v1088
    %v1090 = vmul.f32 %v1082, %v922
    %v1091 = vmul.f32 %v1076, %v1083
    %v1092 = vadd.f32 %v1090, %v1091
    %v1093 = vtanh.pop %v1092
    %v1094 = vmul.f32 %v1089, %v1093
    %1095 = vmatprep.subr.mxu0 %v82
    %1096 = vmatpush1.msra.mxu0 %v81
    %1097 = vmatprep.subr.mxu0 %v86
    %1098 = vmatpush1.msra.mxu0 %v85
    %1099 = vmatprep.subr.mxu0 %v90
    %1100 = vmatpush1.msra.mxu0 %v89
    %1101 = vmatprep.subr.mxu0 %v94
    %1102 = vmatpush1.msra.mxu0 %v93
    %1103 = vmatprep.subr.mxu0 %v98
    %1104 = vmatpush1.msra.mxu0 %v97
    %1105 = vmatprep.subr.mxu0 %v102
    %1106 = vmatpush1.msra.mxu0 %v101
    %1107 = vmatprep.subr.mxu0 %v106
    %1108 = vmatpush1.msra.mxu0 %v105
    %1109 = vmatprep.subr.mxu0 %v110
    %1110 = vmatpush1.msra.mxu0 %v109
    %1111 = vmatprep.subr.mxu0 %v114
    %1112 = vmatpush1.msra.mxu0 %v113
    %1113 = vmatprep.subr.mxu0 %v118
    %1114 = vmatpush1.msra.mxu0 %v117
    %1115 = vmatprep.subr.mxu0 %v122
    %1116 = vmatpush1.msra.mxu0 %v121
    %1117 = vmatprep.subr.mxu0 %v126
    %1118 = vmatpush1.msra.mxu0 %v125
    %1119 = vmatprep.subr.mxu0 %v130
    %1120 = vmatpush1.msra.mxu0 %v129
    %1121 = vmatprep.subr.mxu0 %v134
    %1122 = vmatpush1.msra.mxu0 %v133
    %1123 = vmatprep.subr.mxu0 %v138
    %1124 = vmatpush1.msra.mxu0 %v137
    %1125 = vmatprep.subr.mxu0 %v142
    %1126 = vmatpush1.msra.mxu0 %v141
    %1127 = vmatprep.subr.mxu0 0.0
    %1128 = vmatpush1.msra.mxu0 0.0
    %1129 = vmatprep.subr.mxu0 0.0
    %1130 = vmatpush1.msra.mxu0 0.0
    %1131 = vmatprep.subr.mxu0 0.0
    %1132 = vmatpush1.msra.mxu0 0.0
    %1133 = vmatprep.subr.mxu0 0.0
    %1134 = vmatpush1.msra.mxu0 0.0
    %1135 = vmatprep.subr.mxu0 0.0
    %1136 = vmatpush1.msra.mxu0 0.0
    %1137 = vmatprep.subr.mxu0 0.0
    %1138 = vmatpush1.msra.mxu0 0.0
    %1139 = vmatprep.subr.mxu0 0.0
    %1140 = vmatpush1.msra.mxu0 0.0
    %1141 = vmatprep.subr.mxu0 0.0
    %1142 = vmatpush1.msra.mxu0 0.0
    %1143 = vmatprep.subr.mxu0 0.0
    %1144 = vmatpush1.msra.mxu0 0.0
    %1145 = vmatprep.subr.mxu0 0.0
    %1146 = vmatpush1.msra.mxu0 0.0
    %1147 = vmatprep.subr.mxu0 0.0
    %1148 = vmatpush1.msra.mxu0 0.0
    %1149 = vmatprep.subr.mxu0 0.0
    %1150 = vmatpush1.msra.mxu0 0.0
    %1151 = vmatprep.subr.mxu0 0.0
    %1152 = vmatpush1.msra.mxu0 0.0
    %1153 = vmatprep.subr.mxu0 0.0
    %1154 = vmatpush1.msra.mxu0 0.0
    %1155 = vmatprep.subr.mxu0 0.0
    %1156 = vmatpush1.msra.mxu0 0.0
    %1157 = vmatprep.subr.mxu0 0.0
    %1158 = vmatpush1.msra.mxu0 0.0
    %1159 = vmatprep.mubr.f32.mxu0 0.0
    %1160 = vmatmul.mubr.f32.gmra.mrb[0].mxu0 %v1094
    %v1161 = vpop.f32.mrb[0].mxu0
    %v1162 = vadd.f32 0.0, %v1161
    %v1163 = vpop.f32.mrb[0].mxu0
    %v1164 = vadd.f32 0.0, %v1163
    %1165 = vdwg.mxu0
    %1166 = vmatprep.subr.mxu0 %v84
    %1167 = vmatpush1.msra.mxu0 %v83
    %1168 = vmatprep.subr.mxu0 %v88
    %1169 = vmatpush1.msra.mxu0 %v87
    %1170 = vmatprep.subr.mxu0 %v92
    %1171 = vmatpush1.msra.mxu0 %v91
    %1172 = vmatprep.subr.mxu0 %v96
    %1173 = vmatpush1.msra.mxu0 %v95
    %1174 = vmatprep.subr.mxu0 %v100
    %1175 = vmatpush1.msra.mxu0 %v99
    %1176 = vmatprep.subr.mxu0 %v104
    %1177 = vmatpush1.msra.mxu0 %v103
    %1178 = vmatprep.subr.mxu0 %v108
    %1179 = vmatpush1.msra.mxu0 %v107
    %1180 = vmatprep.subr.mxu0 %v112
    %1181 = vmatpush1.msra.mxu0 %v111
    %1182 = vmatprep.subr.mxu0 %v116
    %1183 = vmatpush1.msra.mxu0 %v115
    %1184 = vmatprep.subr.mxu0 %v120
    %1185 = vmatpush1.msra.mxu0 %v119
    %1186 = vmatprep.subr.mxu0 %v124
    %1187 = vmatpush1.msra.mxu0 %v123
    %1188 = vmatprep.subr.mxu0 %v128
    %1189 = vmatpush1.msra.mxu0 %v127
    %1190 = vmatprep.subr.mxu0 %v132
    %1191 = vmatpush1.msra.mxu0 %v131
    %1192 = vmatprep.subr.mxu0 %v136
    %1193 = vmatpush1.msra.mxu0 %v135
    %1194 = vmatprep.subr.mxu0 %v140
    %1195 = vmatpush1.msra.mxu0 %v139
    %1196 = vmatprep.subr.mxu0 %v144
    %1197 = vmatpush1.msra.mxu0 %v143
    %1198 = vmatprep.subr.mxu0 0.0
    %1199 = vmatpush1.msra.mxu0 0.0
    %1200 = vmatprep.subr.mxu0 0.0
    %1201 = vmatpush1.msra.mxu0 0.0
    %1202 = vmatprep.subr.mxu0 0.0
    %1203 = vmatpush1.msra.mxu0 0.0
    %1204 = vmatprep.subr.mxu0 0.0
    %1205 = vmatpush1.msra.mxu0 0.0
    %1206 = vmatprep.subr.mxu0 0.0
    %1207 = vmatpush1.msra.mxu0 0.0
    %1208 = vmatprep.subr.mxu0 0.0
    %1209 = vmatpush1.msra.mxu0 0.0
    %1210 = vmatprep.subr.mxu0 0.0
    %1211 = vmatpush1.msra.mxu0 0.0
    %1212 = vmatprep.subr.mxu0 0.0
    %1213 = vmatpush1.msra.mxu0 0.0
    %1214 = vmatprep.subr.mxu0 0.0
    %1215 = vmatpush1.msra.mxu0 0.0
    %1216 = vmatprep.subr.mxu0 0.0
    %1217 = vmatpush1.msra.mxu0 0.0
    %1218 = vmatprep.subr.mxu0 0.0
    %1219 = vmatpush1.msra.mxu0 0.0
    %1220 = vmatprep.subr.mxu0 0.0
    %1221 = vmatpush1.msra.mxu0 0.0
    %1222 = vmatprep.subr.mxu0 0.0
    %1223 = vmatpush1.msra.mxu0 0.0
    %1224 = vmatprep.subr.mxu0 0.0
    %1225 = vmatpush1.msra.mxu0 0.0
    %1226 = vmatprep.subr.mxu0 0.0
    %1227 = vmatpush1.msra.mxu0 0.0
    %1228 = vmatprep.subr.mxu0 0.0
    %1229 = vmatpush1.msra.mxu0 0.0
    %1230 = vmatprep.mubr.f32.mxu0 0.0
    %1231 = vmatmul.mubr.f32.gmra.mrb[0].mxu0 %v1094
    %v1232 = vpop.f32.mrb[0].mxu0
    %v1233 = vadd.f32 0.0, %v1232
    %v1234 = vpop.f32.mrb[0].mxu0
    %v1235 = vadd.f32 0.0, %v1234
    %1236 = vdwg.mxu0
    %v1237 = vadd.f32 %v444, %v1162
    %v1238 = vadd.f32 %v446, %v1164
    %v1239 = vadd.f32 %v557, %v1233
    %v1240 = vadd.f32 %v559, %v1235
    %v1241 = vxor.u32 %v1237, 2147483648
    %v1242 = vmul.f32 %v1241, 1.442695
    %v1243 = vpow.pop %v1242
    %v1244 = vadd.f32 %v1243, 1.0
    %v1245 = vrcp.pop %v1244
    %v1246 = vmul.f32 1.0, %v1245
    %v1247 = vxor.u32 %v1238, 2147483648
    %v1248 = vmul.f32 %v1247, 1.442695
    %v1249 = vpow.pop %v1248
    %v1250 = vadd.f32 %v1249, 1.0
    %v1251 = vrcp.pop %v1250
    %v1252 = vmul.f32 1.0, %v1251
    %v1253 = vtanh.pop %v1239
    %v1254 = vxor.u32 %v1240, 2147483648
    %v1255 = vmul.f32 %v1254, 1.442695
    %v1256 = vpow.pop %v1255
    %v1257 = vadd.f32 %v1256, 1.0
    %v1258 = vrcp.pop %v1257
    %v1259 = vmul.f32 1.0, %v1258
    %v1260 = vmul.f32 %v1252, %v1092
    %v1261 = vmul.f32 %v1246, %v1253
    %v1262 = vadd.f32 %v1260, %v1261
    %v1263 = vtanh.pop %v1262
    %v1264 = vmul.f32 %v1259, %v1263
    %1265 = vmatprep.subr.mxu0 %v82
    %1266 = vmatpush1.msra.mxu0 %v81
    %1267 = vmatprep.subr.mxu0 %v86
    %1268 = vmatpush1.msra.mxu0 %v85
    %1269 = vmatprep.subr.mxu0 %v90
    %1270 = vmatpush1.msra.mxu0 %v89
    %1271 = vmatprep.subr.mxu0 %v94
    %1272 = vmatpush1.msra.mxu0 %v93
    %1273 = vmatprep.subr.mxu0 %v98
    %1274 = vmatpush1.msra.mxu0 %v97
    %1275 = vmatprep.subr.mxu0 %v102
    %1276 = vmatpush1.msra.mxu0 %v101
    %1277 = vmatprep.subr.mxu0 %v106
    %1278 = vmatpush1.msra.mxu0 %v105
    %1279 = vmatprep.subr.mxu0 %v110
    %1280 = vmatpush1.msra.mxu0 %v109
    %1281 = vmatprep.subr.mxu0 %v114
    %1282 = vmatpush1.msra.mxu0 %v113
    %1283 = vmatprep.subr.mxu0 %v118
    %1284 = vmatpush1.msra.mxu0 %v117
    %1285 = vmatprep.subr.mxu0 %v122
    %1286 = vmatpush1.msra.mxu0 %v121
    %1287 = vmatprep.subr.mxu0 %v126
    %1288 = vmatpush1.msra.mxu0 %v125
    %1289 = vmatprep.subr.mxu0 %v130
    %1290 = vmatpush1.msra.mxu0 %v129
    %1291 = vmatprep.subr.mxu0 %v134
    %1292 = vmatpush1.msra.mxu0 %v133
    %1293 = vmatprep.subr.mxu0 %v138
    %1294 = vmatpush1.msra.mxu0 %v137
    %1295 = vmatprep.subr.mxu0 %v142
    %1296 = vmatpush1.msra.mxu0 %v141
    %1297 = vmatprep.subr.mxu0 0.0
    %1298 = vmatpush1.msra.mxu0 0.0
    %1299 = vmatprep.subr.mxu0 0.0
    %1300 = vmatpush1.msra.mxu0 0.0
    %1301 = vmatprep.subr.mxu0 0.0
    %1302 = vmatpush1.msra.mxu0 0.0
    %1303 = vmatprep.subr.mxu0 0.0
    %1304 = vmatpush1.msra.mxu0 0.0
    %1305 = vmatprep.subr.mxu0 0.0
    %1306 = vmatpush1.msra.mxu0 0.0
    %1307 = vmatprep.subr.mxu0 0.0
    %1308 = vmatpush1.msra.mxu0 0.0
    %1309 = vmatprep.subr.mxu0 0.0
    %1310 = vmatpush1.msra.mxu0 0.0
    %1311 = vmatprep.subr.mxu0 0.0
    %1312 = vmatpush1.msra.mxu0 0.0
    %1313 = vmatprep.subr.mxu0 0.0
    %1314 = vmatpush1.msra.mxu0 0.0
    %1315 = vmatprep.subr.mxu0 0.0
    %1316 = vmatpush1.msra.mxu0 0.0
    %1317 = vmatprep.subr.mxu0 0.0
    %1318 = vmatpush1.msra.mxu0 0.0
    %1319 = vmatprep.subr.mxu0 0.0
    %1320 = vmatpush1.msra.mxu0 0.0
    %1321 = vmatprep.subr.mxu0 0.0
    %1322 = vmatpush1.msra.mxu0 0.0
    %1323 = vmatprep.subr.mxu0 0.0
    %1324 = vmatpush1.msra.mxu0 0.0
    %1325 = vmatprep.subr.mxu0 0.0
    %1326 = vmatpush1.msra.mxu0 0.0
    %1327 = vmatprep.subr.mxu0 0.0
    %1328 = vmatpush1.msra.mxu0 0.0
    %1329 = vmatprep.mubr.f32.mxu0 0.0
    %1330 = vmatmul.mubr.f32.gmra.mrb[0].mxu0 %v1264
    %v1331 = vpop.f32.mrb[0].mxu0
    %v1332 = vadd.f32 0.0, %v1331
    %v1333 = vpop.f32.mrb[0].mxu0
    %v1334 = vadd.f32 0.0, %v1333
    %1335 = vdwg.mxu0
    %1336 = vmatprep.subr.mxu0 %v84
    %1337 = vmatpush1.msra.mxu0 %v83
    %1338 = vmatprep.subr.mxu0 %v88
    %1339 = vmatpush1.msra.mxu0 %v87
    %1340 = vmatprep.subr.mxu0 %v92
    %1341 = vmatpush1.msra.mxu0 %v91
    %1342 = vmatprep.subr.mxu0 %v96
    %1343 = vmatpush1.msra.mxu0 %v95
    %1344 = vmatprep.subr.mxu0 %v100
    %1345 = vmatpush1.msra.mxu0 %v99
    %1346 = vmatprep.subr.mxu0 %v104
    %1347 = vmatpush1.msra.mxu0 %v103
    %1348 = vmatprep.subr.mxu0 %v108
    %1349 = vmatpush1.msra.mxu0 %v107
    %1350 = vmatprep.subr.mxu0 %v112
    %1351 = vmatpush1.msra.mxu0 %v111
    %1352 = vmatprep.subr.mxu0 %v116
    %1353 = vmatpush1.msra.mxu0 %v115
    %1354 = vmatprep.subr.mxu0 %v120
    %1355 = vmatpush1.msra.mxu0 %v119
    %1356 = vmatprep.subr.mxu0 %v124
    %1357 = vmatpush1.msra.mxu0 %v123
    %1358 = vmatprep.subr.mxu0 %v128
    %1359 = vmatpush1.msra.mxu0 %v127
    %1360 = vmatprep.subr.mxu0 %v132
    %1361 = vmatpush1.msra.mxu0 %v131
    %1362 = vmatprep.subr.mxu0 %v136
    %1363 = vmatpush1.msra.mxu0 %v135
    %1364 = vmatprep.subr.mxu0 %v140
    %1365 = vmatpush1.msra.mxu0 %v139
    %1366 = vmatprep.subr.mxu0 %v144
    %1367 = vmatpush1.msra.mxu0 %v143
    %1368 = vmatprep.subr.mxu0 0.0
    %1369 = vmatpush1.msra.mxu0 0.0
    %1370 = vmatprep.subr.mxu0 0.0
    %1371 = vmatpush1.msra.mxu0 0.0
    %1372 = vmatprep.subr.mxu0 0.0
    %1373 = vmatpush1.msra.mxu0 0.0
    %1374 = vmatprep.subr.mxu0 0.0
    %1375 = vmatpush1.msra.mxu0 0.0
    %1376 = vmatprep.subr.mxu0 0.0
    %1377 = vmatpush1.msra.mxu0 0.0
    %1378 = vmatprep.subr.mxu0 0.0
    %1379 = vmatpush1.msra.mxu0 0.0
    %1380 = vmatprep.subr.mxu0 0.0
    %1381 = vmatpush1.msra.mxu0 0.0
    %1382 = vmatprep.subr.mxu0 0.0
    %1383 = vmatpush1.msra.mxu0 0.0
    %1384 = vmatprep.subr.mxu0 0.0
    %1385 = vmatpush1.msra.mxu0 0.0
    %1386 = vmatprep.subr.mxu0 0.0
    %1387 = vmatpush1.msra.mxu0 0.0
    %1388 = vmatprep.subr.mxu0 0.0
    %1389 = vmatpush1.msra.mxu0 0.0
    %1390 = vmatprep.subr.mxu0 0.0
    %1391 = vmatpush1.msra.mxu0 0.0
    %1392 = vmatprep.subr.mxu0 0.0
    %1393 = vmatpush1.msra.mxu0 0.0
    %1394 = vmatprep.subr.mxu0 0.0
    %1395 = vmatpush1.msra.mxu0 0.0
    %1396 = vmatprep.subr.mxu0 0.0
    %1397 = vmatpush1.msra.mxu0 0.0
    %1398 = vmatprep.subr.mxu0 0.0
    %1399 = vmatpush1.msra.mxu0 0.0
    %1400 = vmatprep.mubr.f32.mxu0 0.0
    %1401 = vmatmul.mubr.f32.gmra.mrb[0].mxu0 %v1264
    %v1402 = vpop.f32.mrb[0].mxu0
    %v1403 = vadd.f32 0.0, %v1402
    %v1404 = vpop.f32.mrb[0].mxu0
    %v1405 = vadd.f32 0.0, %v1404
    %1406 = vdwg.mxu0
    %v1407 = vadd.f32 %v450, %v1332
    %v1408 = vadd.f32 %v452, %v1334
    %v1409 = vadd.f32 %v563, %v1403
    %v1410 = vadd.f32 %v565, %v1405
    %v1411 = vxor.u32 %v1407, 2147483648
    %v1412 = vmul.f32 %v1411, 1.442695
    %v1413 = vpow.pop %v1412
    %v1414 = vadd.f32 %v1413, 1.0
    %v1415 = vrcp.pop %v1414
    %v1416 = vmul.f32 1.0, %v1415
    %v1417 = vxor.u32 %v1408, 2147483648
    %v1418 = vmul.f32 %v1417, 1.442695
    %v1419 = vpow.pop %v1418
    %v1420 = vadd.f32 %v1419, 1.0
    %v1421 = vrcp.pop %v1420
    %v1422 = vmul.f32 1.0, %v1421
    %v1423 = vtanh.pop %v1409
    %v1424 = vxor.u32 %v1410, 2147483648
    %v1425 = vmul.f32 %v1424, 1.442695
    %v1426 = vpow.pop %v1425
    %v1427 = vadd.f32 %v1426, 1.0
    %v1428 = vrcp.pop %v1427
    %v1429 = vmul.f32 1.0, %v1428
    %v1430 = vmul.f32 %v1422, %v1262
    %v1431 = vmul.f32 %v1416, %v1423
    %v1432 = vadd.f32 %v1430, %v1431
    %v1433 = vtanh.pop %v1432
    %v1434 = vmul.f32 %v1429, %v1433
    %1435 = vmatprep.subr.mxu0 %v82
    %1436 = vmatpush1.msra.mxu0 %v81
    %1437 = vmatprep.subr.mxu0 %v86
    %1438 = vmatpush1.msra.mxu0 %v85
    %1439 = vmatprep.subr.mxu0 %v90
    %1440 = vmatpush1.msra.mxu0 %v89
    %1441 = vmatprep.subr.mxu0 %v94
    %1442 = vmatpush1.msra.mxu0 %v93
    %1443 = vmatprep.subr.mxu0 %v98
    %1444 = vmatpush1.msra.mxu0 %v97
    %1445 = vmatprep.subr.mxu0 %v102
    %1446 = vmatpush1.msra.mxu0 %v101
    %1447 = vmatprep.subr.mxu0 %v106
    %1448 = vmatpush1.msra.mxu0 %v105
    %1449 = vmatprep.subr.mxu0 %v110
    %1450 = vmatpush1.msra.mxu0 %v109
    %1451 = vmatprep.subr.mxu0 %v114
    %1452 = vmatpush1.msra.mxu0 %v113
    %1453 = vmatprep.subr.mxu0 %v118
    %1454 = vmatpush1.msra.mxu0 %v117
    %1455 = vmatprep.subr.mxu0 %v122
    %1456 = vmatpush1.msra.mxu0 %v121
    %1457 = vmatprep.subr.mxu0 %v126
    %1458 = vmatpush1.msra.mxu0 %v125
    %1459 = vmatprep.subr.mxu0 %v130
    %1460 = vmatpush1.msra.mxu0 %v129
    %1461 = vmatprep.subr.mxu0 %v134
    %1462 = vmatpush1.msra.mxu0 %v133
    %1463 = vmatprep.subr.mxu0 %v138
    %1464 = vmatpush1.msra.mxu0 %v137
    %1465 = vmatprep.subr.mxu0 %v142
    %1466 = vmatpush1.msra.mxu0 %v141
    %1467 = vmatprep.subr.mxu0 0.0
    %1468 = vmatpush1.msra.mxu0 0.0
    %1469 = vmatprep.subr.mxu0 0.0
    %1470 = vmatpush1.msra.mxu0 0.0
    %1471 = vmatprep.subr.mxu0 0.0
    %1472 = vmatpush1.msra.mxu0 0.0
    %1473 = vmatprep.subr.mxu0 0.0
    %1474 = vmatpush1.msra.mxu0 0.0
    %1475 = vmatprep.subr.mxu0 0.0
    %1476 = vmatpush1.msra.mxu0 0.0
    %1477 = vmatprep.subr.mxu0 0.0
    %1478 = vmatpush1.msra.mxu0 0.0
    %1479 = vmatprep.subr.mxu0 0.0
    %1480 = vmatpush1.msra.mxu0 0.0
    %1481 = vmatprep.subr.mxu0 0.0
    %1482 = vmatpush1.msra.mxu0 0.0
    %1483 = vmatprep.subr.mxu0 0.0
    %1484 = vmatpush1.msra.mxu0 0.0
    %1485 = vmatprep.subr.mxu0 0.0
    %1486 = vmatpush1.msra.mxu0 0.0
    %1487 = vmatprep.subr.mxu0 0.0
    %1488 = vmatpush1.msra.mxu0 0.0
    %1489 = vmatprep.subr.mxu0 0.0
    %1490 = vmatpush1.msra.mxu0 0.0
    %1491 = vmatprep.subr.mxu0 0.0
    %1492 = vmatpush1.msra.mxu0 0.0
    %1493 = vmatprep.subr.mxu0 0.0
    %1494 = vmatpush1.msra.mxu0 0.0
    %1495 = vmatprep.subr.mxu0 0.0
    %1496 = vmatpush1.msra.mxu0 0.0
    %1497 = vmatprep.subr.mxu0 0.0
    %1498 = vmatpush1.msra.mxu0 0.0
    %1499 = vmatprep.mubr.f32.mxu0 0.0
    %1500 = vmatmul.mubr.f32.gmra.mrb[0].mxu0 %v1434
    %v1501 = vpop.f32.mrb[0].mxu0
    %v1502 = vadd.f32 0.0, %v1501
    %v1503 = vpop.f32.mrb[0].mxu0
    %v1504 = vadd.f32 0.0, %v1503
    %1505 = vdwg.mxu0
    %1506 = vmatprep.subr.mxu0 %v84
    %1507 = vmatpush1.msra.mxu0 %v83
    %1508 = vmatprep.subr.mxu0 %v88
    %1509 = vmatpush1.msra.mxu0 %v87
    %1510 = vmatprep.subr.mxu0 %v92
    %1511 = vmatpush1.msra.mxu0 %v91
    %1512 = vmatprep.subr.mxu0 %v96
    %1513 = vmatpush1.msra.mxu0 %v95
    %1514 = vmatprep.subr.mxu0 %v100
    %1515 = vmatpush1.msra.mxu0 %v99
    %1516 = vmatprep.subr.mxu0 %v104
    %1517 = vmatpush1.msra.mxu0 %v103
    %1518 = vmatprep.subr.mxu0 %v108
    %1519 = vmatpush1.msra.mxu0 %v107
    %1520 = vmatprep.subr.mxu0 %v112
    %1521 = vmatpush1.msra.mxu0 %v111
    %1522 = vmatprep.subr.mxu0 %v116
    %1523 = vmatpush1.msra.mxu0 %v115
    %1524 = vmatprep.subr.mxu0 %v120
    %1525 = vmatpush1.msra.mxu0 %v119
    %1526 = vmatprep.subr.mxu0 %v124
    %1527 = vmatpush1.msra.mxu0 %v123
    %1528 = vmatprep.subr.mxu0 %v128
    %1529 = vmatpush1.msra.mxu0 %v127
    %1530 = vmatprep.subr.mxu0 %v132
    %1531 = vmatpush1.msra.mxu0 %v131
    %1532 = vmatprep.subr.mxu0 %v136
    %1533 = vmatpush1.msra.mxu0 %v135
    %1534 = vmatprep.subr.mxu0 %v140
    %1535 = vmatpush1.msra.mxu0 %v139
    %1536 = vmatprep.subr.mxu0 %v144
    %1537 = vmatpush1.msra.mxu0 %v143
    %1538 = vmatprep.subr.mxu0 0.0
    %1539 = vmatpush1.msra.mxu0 0.0
    %1540 = vmatprep.subr.mxu0 0.0
    %1541 = vmatpush1.msra.mxu0 0.0
    %1542 = vmatprep.subr.mxu0 0.0
    %1543 = vmatpush1.msra.mxu0 0.0
    %1544 = vmatprep.subr.mxu0 0.0
    %1545 = vmatpush1.msra.mxu0 0.0
    %1546 = vmatprep.subr.mxu0 0.0
    %1547 = vmatpush1.msra.mxu0 0.0
    %1548 = vmatprep.subr.mxu0 0.0
    %1549 = vmatpush1.msra.mxu0 0.0
    %1550 = vmatprep.subr.mxu0 0.0
    %1551 = vmatpush1.msra.mxu0 0.0
    %1552 = vmatprep.subr.mxu0 0.0
    %1553 = vmatpush1.msra.mxu0 0.0
    %1554 = vmatprep.subr.mxu0 0.0
    %1555 = vmatpush1.msra.mxu0 0.0
    %1556 = vmatprep.subr.mxu0 0.0
    %1557 = vmatpush1.msra.mxu0 0.0
    %1558 = vmatprep.subr.mxu0 0.0
    %1559 = vmatpush1.msra.mxu0 0.0
    %1560 = vmatprep.subr.mxu0 0.0
    %1561 = vmatpush1.msra.mxu0 0.0
    %1562 = vmatprep.subr.mxu0 0.0
    %1563 = vmatpush1.msra.mxu0 0.0
    %1564 = vmatprep.subr.mxu0 0.0
    %1565 = vmatpush1.msra.mxu0 0.0
    %1566 = vmatprep.subr.mxu0 0.0
    %1567 = vmatpush1.msra.mxu0 0.0
    %1568 = vmatprep.subr.mxu0 0.0
    %1569 = vmatpush1.msra.mxu0 0.0
    %1570 = vmatprep.mubr.f32.mxu0 0.0
    %1571 = vmatmul.mubr.f32.gmra.mrb[0].mxu0 %v1434
    %v1572 = vpop.f32.mrb[0].mxu0
    %v1573 = vadd.f32 0.0, %v1572
    %v1574 = vpop.f32.mrb[0].mxu0
    %v1575 = vadd.f32 0.0, %v1574
    %1576 = vdwg.mxu0
    %v1577 = vadd.f32 %v456, %v1502
    %v1578 = vadd.f32 %v458, %v1504
    %v1579 = vadd.f32 %v569, %v1573
    %v1580 = vadd.f32 %v571, %v1575
    %v1581 = vxor.u32 %v1577, 2147483648
    %v1582 = vmul.f32 %v1581, 1.442695
    %v1583 = vpow.pop %v1582
    %v1584 = vadd.f32 %v1583, 1.0
    %v1585 = vrcp.pop %v1584
    %v1586 = vmul.f32 1.0, %v1585
    %v1587 = vxor.u32 %v1578, 2147483648
    %v1588 = vmul.f32 %v1587, 1.442695
    %v1589 = vpow.pop %v1588
    %v1590 = vadd.f32 %v1589, 1.0
    %v1591 = vrcp.pop %v1590
    %v1592 = vmul.f32 1.0, %v1591
    %v1593 = vtanh.pop %v1579
    %v1594 = vxor.u32 %v1580, 2147483648
    %v1595 = vmul.f32 %v1594, 1.442695
    %v1596 = vpow.pop %v1595
    %v1597 = vadd.f32 %v1596, 1.0
    %v1598 = vrcp.pop %v1597
    %v1599 = vmul.f32 1.0, %v1598
    %v1600 = vmul.f32 %v1592, %v1432
    %v1601 = vmul.f32 %v1586, %v1593
    %v1602 = vadd.f32 %v1600, %v1601
    %v1603 = vtanh.pop %v1602
    %v1604 = vmul.f32 %v1599, %v1603
    %1605 = vmatprep.subr.mxu0 %v82
    %1606 = vmatpush1.msra.mxu0 %v81
    %1607 = vmatprep.subr.mxu0 %v86
    %1608 = vmatpush1.msra.mxu0 %v85
    %1609 = vmatprep.subr.mxu0 %v90
    %1610 = vmatpush1.msra.mxu0 %v89
    %1611 = vmatprep.subr.mxu0 %v94
    %1612 = vmatpush1.msra.mxu0 %v93
    %1613 = vmatprep.subr.mxu0 %v98
    %1614 = vmatpush1.msra.mxu0 %v97
    %1615 = vmatprep.subr.mxu0 %v102
    %1616 = vmatpush1.msra.mxu0 %v101
    %1617 = vmatprep.subr.mxu0 %v106
    %1618 = vmatpush1.msra.mxu0 %v105
    %1619 = vmatprep.subr.mxu0 %v110
    %1620 = vmatpush1.msra.mxu0 %v109
    %1621 = vmatprep.subr.mxu0 %v114
    %1622 = vmatpush1.msra.mxu0 %v113
    %1623 = vmatprep.subr.mxu0 %v118
    %1624 = vmatpush1.msra.mxu0 %v117
    %1625 = vmatprep.subr.mxu0 %v122
    %1626 = vmatpush1.msra.mxu0 %v121
    %1627 = vmatprep.subr.mxu0 %v126
    %1628 = vmatpush1.msra.mxu0 %v125
    %1629 = vmatprep.subr.mxu0 %v130
    %1630 = vmatpush1.msra.mxu0 %v129
    %1631 = vmatprep.subr.mxu0 %v134
    %1632 = vmatpush1.msra.mxu0 %v133
    %1633 = vmatprep.subr.mxu0 %v138
    %1634 = vmatpush1.msra.mxu0 %v137
    %1635 = vmatprep.subr.mxu0 %v142
    %1636 = vmatpush1.msra.mxu0 %v141
    %1637 = vmatprep.subr.mxu0 0.0
    %1638 = vmatpush1.msra.mxu0 0.0
    %1639 = vmatprep.subr.mxu0 0.0
    %1640 = vmatpush1.msra.mxu0 0.0
    %1641 = vmatprep.subr.mxu0 0.0
    %1642 = vmatpush1.msra.mxu0 0.0
    %1643 = vmatprep.subr.mxu0 0.0
    %1644 = vmatpush1.msra.mxu0 0.0
    %1645 = vmatprep.subr.mxu0 0.0
    %1646 = vmatpush1.msra.mxu0 0.0
    %1647 = vmatprep.subr.mxu0 0.0
    %1648 = vmatpush1.msra.mxu0 0.0
    %1649 = vmatprep.subr.mxu0 0.0
    %1650 = vmatpush1.msra.mxu0 0.0
    %1651 = vmatprep.subr.mxu0 0.0
    %1652 = vmatpush1.msra.mxu0 0.0
    %1653 = vmatprep.subr.mxu0 0.0
    %1654 = vmatpush1.msra.mxu0 0.0
    %1655 = vmatprep.subr.mxu0 0.0
    %1656 = vmatpush1.msra.mxu0 0.0
    %1657 = vmatprep.subr.mxu0 0.0
    %1658 = vmatpush1.msra.mxu0 0.0
    %1659 = vmatprep.subr.mxu0 0.0
    %1660 = vmatpush1.msra.mxu0 0.0
    %1661 = vmatprep.subr.mxu0 0.0
    %1662 = vmatpush1.msra.mxu0 0.0
    %1663 = vmatprep.subr.mxu0 0.0
    %1664 = vmatpush1.msra.mxu0 0.0
    %1665 = vmatprep.subr.mxu0 0.0
    %1666 = vmatpush1.msra.mxu0 0.0
    %1667 = vmatprep.subr.mxu0 0.0
    %1668 = vmatpush1.msra.mxu0 0.0
    %1669 = vmatprep.mubr.f32.mxu0 0.0
    %1670 = vmatmul.mubr.f32.gmra.mrb[0].mxu0 %v1604
    %v1671 = vpop.f32.mrb[0].mxu0
    %v1672 = vadd.f32 0.0, %v1671
    %v1673 = vpop.f32.mrb[0].mxu0
    %v1674 = vadd.f32 0.0, %v1673
    %1675 = vdwg.mxu0
    %1676 = vmatprep.subr.mxu0 %v84
    %1677 = vmatpush1.msra.mxu0 %v83
    %1678 = vmatprep.subr.mxu0 %v88
    %1679 = vmatpush1.msra.mxu0 %v87
    %1680 = vmatprep.subr.mxu0 %v92
    %1681 = vmatpush1.msra.mxu0 %v91
    %1682 = vmatprep.subr.mxu0 %v96
    %1683 = vmatpush1.msra.mxu0 %v95
    %1684 = vmatprep.subr.mxu0 %v100
    %1685 = vmatpush1.msra.mxu0 %v99
    %1686 = vmatprep.subr.mxu0 %v104
    %1687 = vmatpush1.msra.mxu0 %v103
    %1688 = vmatprep.subr.mxu0 %v108
    %1689 = vmatpush1.msra.mxu0 %v107
    %1690 = vmatprep.subr.mxu0 %v112
    %1691 = vmatpush1.msra.mxu0 %v111
    %1692 = vmatprep.subr.mxu0 %v116
    %1693 = vmatpush1.msra.mxu0 %v115
    %1694 = vmatprep.subr.mxu0 %v120
    %1695 = vmatpush1.msra.mxu0 %v119
    %1696 = vmatprep.subr.mxu0 %v124
    %1697 = vmatpush1.msra.mxu0 %v123
    %1698 = vmatprep.subr.mxu0 %v128
    %1699 = vmatpush1.msra.mxu0 %v127
    %1700 = vmatprep.subr.mxu0 %v132
    %1701 = vmatpush1.msra.mxu0 %v131
    %1702 = vmatprep.subr.mxu0 %v136
    %1703 = vmatpush1.msra.mxu0 %v135
    %1704 = vmatprep.subr.mxu0 %v140
    %1705 = vmatpush1.msra.mxu0 %v139
    %1706 = vmatprep.subr.mxu0 %v144
    %1707 = vmatpush1.msra.mxu0 %v143
    %1708 = vmatprep.subr.mxu0 0.0
    %1709 = vmatpush1.msra.mxu0 0.0
    %1710 = vmatprep.subr.mxu0 0.0
    %1711 = vmatpush1.msra.mxu0 0.0
    %1712 = vmatprep.subr.mxu0 0.0
    %1713 = vmatpush1.msra.mxu0 0.0
    %1714 = vmatprep.subr.mxu0 0.0
    %1715 = vmatpush1.msra.mxu0 0.0
    %1716 = vmatprep.subr.mxu0 0.0
    %1717 = vmatpush1.msra.mxu0 0.0
    %1718 = vmatprep.subr.mxu0 0.0
    %1719 = vmatpush1.msra.mxu0 0.0
    %1720 = vmatprep.subr.mxu0 0.0
    %1721 = vmatpush1.msra.mxu0 0.0
    %1722 = vmatprep.subr.mxu0 0.0
    %1723 = vmatpush1.msra.mxu0 0.0
    %1724 = vmatprep.subr.mxu0 0.0
    %1725 = vmatpush1.msra.mxu0 0.0
    %1726 = vmatprep.subr.mxu0 0.0
    %1727 = vmatpush1.msra.mxu0 0.0
    %1728 = vmatprep.subr.mxu0 0.0
    %1729 = vmatpush1.msra.mxu0 0.0
    %1730 = vmatprep.subr.mxu0 0.0
    %1731 = vmatpush1.msra.mxu0 0.0
    %1732 = vmatprep.subr.mxu0 0.0
    %1733 = vmatpush1.msra.mxu0 0.0
    %1734 = vmatprep.subr.mxu0 0.0
    %1735 = vmatpush1.msra.mxu0 0.0
    %1736 = vmatprep.subr.mxu0 0.0
    %1737 = vmatpush1.msra.mxu0 0.0
    %1738 = vmatprep.subr.mxu0 0.0
    %1739 = vmatpush1.msra.mxu0 0.0
    %1740 = vmatprep.mubr.f32.mxu0 0.0
    %1741 = vmatmul.mubr.f32.gmra.mrb[0].mxu0 %v1604
    %v1742 = vpop.f32.mrb[0].mxu0
    %v1743 = vadd.f32 0.0, %v1742
    %v1744 = vpop.f32.mrb[0].mxu0
    %v1745 = vadd.f32 0.0, %v1744
    %1746 = vdwg.mxu0
    %v1747 = vadd.f32 %v462, %v1672
    %v1748 = vadd.f32 %v464, %v1674
    %v1749 = vadd.f32 %v575, %v1743
    %v1750 = vadd.f32 %v577, %v1745
    %v1751 = vxor.u32 %v1747, 2147483648
    %v1752 = vmul.f32 %v1751, 1.442695
    %v1753 = vpow.pop %v1752
    %v1754 = vadd.f32 %v1753, 1.0
    %v1755 = vrcp.pop %v1754
    %v1756 = vmul.f32 1.0, %v1755
    %v1757 = vxor.u32 %v1748, 2147483648
    %v1758 = vmul.f32 %v1757, 1.442695
    %v1759 = vpow.pop %v1758
    %v1760 = vadd.f32 %v1759, 1.0
    %v1761 = vrcp.pop %v1760
    %v1762 = vmul.f32 1.0, %v1761
    %v1763 = vtanh.pop %v1749
    %v1764 = vxor.u32 %v1750, 2147483648
    %v1765 = vmul.f32 %v1764, 1.442695
    %v1766 = vpow.pop %v1765
    %v1767 = vadd.f32 %v1766, 1.0
    %v1768 = vrcp.pop %v1767
    %v1769 = vmul.f32 1.0, %v1768
    %v1770 = vmul.f32 %v1762, %v1602
    %v1771 = vmul.f32 %v1756, %v1763
    %v1772 = vadd.f32 %v1770, %v1771
    %v1773 = vtanh.pop %v1772
    %v1774 = vmul.f32 %v1769, %v1773
    %1775 = vmatprep.subr.mxu0 %v82
    %1776 = vmatpush1.msra.mxu0 %v81
    %1777 = vmatprep.subr.mxu0 %v86
    %1778 = vmatpush1.msra.mxu0 %v85
    %1779 = vmatprep.subr.mxu0 %v90
    %1780 = vmatpush1.msra.mxu0 %v89
    %1781 = vmatprep.subr.mxu0 %v94
    %1782 = vmatpush1.msra.mxu0 %v93
    %1783 = vmatprep.subr.mxu0 %v98
    %1784 = vmatpush1.msra.mxu0 %v97
    %1785 = vmatprep.subr.mxu0 %v102
    %1786 = vmatpush1.msra.mxu0 %v101
    %1787 = vmatprep.subr.mxu0 %v106
    %1788 = vmatpush1.msra.mxu0 %v105
    %1789 = vmatprep.subr.mxu0 %v110
    %1790 = vmatpush1.msra.mxu0 %v109
    %1791 = vmatprep.subr.mxu0 %v114
    %1792 = vmatpush1.msra.mxu0 %v113
    %1793 = vmatprep.subr.mxu0 %v118
    %1794 = vmatpush1.msra.mxu0 %v117
    %1795 = vmatprep.subr.mxu0 %v122
    %1796 = vmatpush1.msra.mxu0 %v121
    %1797 = vmatprep.subr.mxu0 %v126
    %1798 = vmatpush1.msra.mxu0 %v125
    %1799 = vmatprep.subr.mxu0 %v130
    %1800 = vmatpush1.msra.mxu0 %v129
    %1801 = vmatprep.subr.mxu0 %v134
    %1802 = vmatpush1.msra.mxu0 %v133
    %1803 = vmatprep.subr.mxu0 %v138
    %1804 = vmatpush1.msra.mxu0 %v137
    %1805 = vmatprep.subr.mxu0 %v142
    %1806 = vmatpush1.msra.mxu0 %v141
    %1807 = vmatprep.subr.mxu0 0.0
    %1808 = vmatpush1.msra.mxu0 0.0
    %1809 = vmatprep.subr.mxu0 0.0
    %1810 = vmatpush1.msra.mxu0 0.0
    %1811 = vmatprep.subr.mxu0 0.0
    %1812 = vmatpush1.msra.mxu0 0.0
    %1813 = vmatprep.subr.mxu0 0.0
    %1814 = vmatpush1.msra.mxu0 0.0
    %1815 = vmatprep.subr.mxu0 0.0
    %1816 = vmatpush1.msra.mxu0 0.0
    %1817 = vmatprep.subr.mxu0 0.0
    %1818 = vmatpush1.msra.mxu0 0.0
    %1819 = vmatprep.subr.mxu0 0.0
    %1820 = vmatpush1.msra.mxu0 0.0
    %1821 = vmatprep.subr.mxu0 0.0
    %1822 = vmatpush1.msra.mxu0 0.0
    %1823 = vmatprep.subr.mxu0 0.0
    %1824 = vmatpush1.msra.mxu0 0.0
    %1825 = vmatprep.subr.mxu0 0.0
    %1826 = vmatpush1.msra.mxu0 0.0
    %1827 = vmatprep.subr.mxu0 0.0
    %1828 = vmatpush1.msra.mxu0 0.0
    %1829 = vmatprep.subr.mxu0 0.0
    %1830 = vmatpush1.msra.mxu0 0.0
    %1831 = vmatprep.subr.mxu0 0.0
    %1832 = vmatpush1.msra.mxu0 0.0
    %1833 = vmatprep.subr.mxu0 0.0
    %1834 = vmatpush1.msra.mxu0 0.0
    %1835 = vmatprep.subr.mxu0 0.0
    %1836 = vmatpush1.msra.mxu0 0.0
    %1837 = vmatprep.subr.mxu0 0.0
    %1838 = vmatpush1.msra.mxu0 0.0
    %1839 = vmatprep.mubr.f32.mxu0 0.0
    %1840 = vmatmul.mubr.f32.gmra.mrb[0].mxu0 %v1774
    %v1841 = vpop.f32.mrb[0].mxu0
    %v1842 = vadd.f32 0.0, %v1841
    %v1843 = vpop.f32.mrb[0].mxu0
    %v1844 = vadd.f32 0.0, %v1843
    %1845 = vdwg.mxu0
    %1846 = vmatprep.subr.mxu0 %v84
    %1847 = vmatpush1.msra.mxu0 %v83
    %1848 = vmatprep.subr.mxu0 %v88
    %1849 = vmatpush1.msra.mxu0 %v87
    %1850 = vmatprep.subr.mxu0 %v92
    %1851 = vmatpush1.msra.mxu0 %v91
    %1852 = vmatprep.subr.mxu0 %v96
    %1853 = vmatpush1.msra.mxu0 %v95
    %1854 = vmatprep.subr.mxu0 %v100
    %1855 = vmatpush1.msra.mxu0 %v99
    %1856 = vmatprep.subr.mxu0 %v104
    %1857 = vmatpush1.msra.mxu0 %v103
    %1858 = vmatprep.subr.mxu0 %v108
    %1859 = vmatpush1.msra.mxu0 %v107
    %1860 = vmatprep.subr.mxu0 %v112
    %1861 = vmatpush1.msra.mxu0 %v111
    %1862 = vmatprep.subr.mxu0 %v116
    %1863 = vmatpush1.msra.mxu0 %v115
    %1864 = vmatprep.subr.mxu0 %v120
    %1865 = vmatpush1.msra.mxu0 %v119
    %1866 = vmatprep.subr.mxu0 %v124
    %1867 = vmatpush1.msra.mxu0 %v123
    %1868 = vmatprep.subr.mxu0 %v128
    %1869 = vmatpush1.msra.mxu0 %v127
    %1870 = vmatprep.subr.mxu0 %v132
    %1871 = vmatpush1.msra.mxu0 %v131
    %1872 = vmatprep.subr.mxu0 %v136
    %1873 = vmatpush1.msra.mxu0 %v135
    %1874 = vmatprep.subr.mxu0 %v140
    %1875 = vmatpush1.msra.mxu0 %v139
    %1876 = vmatprep.subr.mxu0 %v144
    %1877 = vmatpush1.msra.mxu0 %v143
    %1878 = vmatprep.subr.mxu0 0.0
    %1879 = vmatpush1.msra.mxu0 0.0
    %1880 = vmatprep.subr.mxu0 0.0
    %1881 = vmatpush1.msra.mxu0 0.0
    %1882 = vmatprep.subr.mxu0 0.0
    %1883 = vmatpush1.msra.mxu0 0.0
    %1884 = vmatprep.subr.mxu0 0.0
    %1885 = vmatpush1.msra.mxu0 0.0
    %1886 = vmatprep.subr.mxu0 0.0
    %1887 = vmatpush1.msra.mxu0 0.0
    %1888 = vmatprep.subr.mxu0 0.0
    %1889 = vmatpush1.msra.mxu0 0.0
    %1890 = vmatprep.subr.mxu0 0.0
    %1891 = vmatpush1.msra.mxu0 0.0
    %1892 = vmatprep.subr.mxu0 0.0
    %1893 = vmatpush1.msra.mxu0 0.0
    %1894 = vmatprep.subr.mxu0 0.0
    %1895 = vmatpush1.msra.mxu0 0.0
    %1896 = vmatprep.subr.mxu0 0.0
    %1897 = vmatpush1.msra.mxu0 0.0
    %1898 = vmatprep.subr.mxu0 0.0
    %1899 = vmatpush1.msra.mxu0 0.0
    %1900 = vmatprep.subr.mxu0 0.0
    %1901 = vmatpush1.msra.mxu0 0.0
    %1902 = vmatprep.subr.mxu0 0.0
    %1903 = vmatpush1.msra.mxu0 0.0
    %1904 = vmatprep.subr.mxu0 0.0
    %1905 = vmatpush1.msra.mxu0 0.0
    %1906 = vmatprep.subr.mxu0 0.0
    %1907 = vmatpush1.msra.mxu0 0.0
    %1908 = vmatprep.subr.mxu0 0.0
    %1909 = vmatpush1.msra.mxu0 0.0
    %1910 = vmatprep.mubr.f32.mxu0 0.0
    %1911 = vmatmul.mubr.f32.gmra.mrb[0].mxu0 %v1774
    %v1912 = vpop.f32.mrb[0].mxu0
    %v1913 = vadd.f32 0.0, %v1912
    %v1914 = vpop.f32.mrb[0].mxu0
    %v1915 = vadd.f32 0.0, %v1914
    %1916 = vdwg.mxu0
    %v1917 = vadd.f32 %v468, %v1842
    %v1918 = vadd.f32 %v470, %v1844
    %v1919 = vadd.f32 %v581, %v1913
    %v1920 = vadd.f32 %v583, %v1915
    %v1921 = vxor.u32 %v1917, 2147483648
    %v1922 = vmul.f32 %v1921, 1.442695
    %v1923 = vpow.pop %v1922
    %v1924 = vadd.f32 %v1923, 1.0
    %v1925 = vrcp.pop %v1924
    %v1926 = vmul.f32 1.0, %v1925
    %v1927 = vxor.u32 %v1918, 2147483648
    %v1928 = vmul.f32 %v1927, 1.442695
    %v1929 = vpow.pop %v1928
    %v1930 = vadd.f32 %v1929, 1.0
    %v1931 = vrcp.pop %v1930
    %v1932 = vmul.f32 1.0, %v1931
    %v1933 = vtanh.pop %v1919
    %v1934 = vxor.u32 %v1920, 2147483648
    %v1935 = vmul.f32 %v1934, 1.442695
    %v1936 = vpow.pop %v1935
    %v1937 = vadd.f32 %v1936, 1.0
    %v1938 = vrcp.pop %v1937
    %v1939 = vmul.f32 1.0, %v1938
    %v1940 = vmul.f32 %v1932, %v1772
    %v1941 = vmul.f32 %v1926, %v1933
    %v1942 = vadd.f32 %v1940, %v1941
    %v1943 = vtanh.pop %v1942
    %v1944 = vmul.f32 %v1939, %v1943
    %v1946 = vlaneseq
    %v1947 = vshrl.u32 %v1946, 7
    %v1948 = vsub.s32 0, %v1947
    %v1949 = vrot.slane %v274, %v1948
    %v1950 = vlaneseq
    %v1951 = vshrl.u32 %v1950, 7
    %v1952 = vsub.s32 1, %v1951
    %v1953 = vrot.slane %v274, %v1952
    %v1954 = vlaneseq
    %v1955 = vshrl.u32 %v1954, 7
    %v1956 = vsub.s32 2, %v1955
    %v1957 = vrot.slane %v274, %v1956
    %v1958 = vlaneseq
    %v1959 = vshrl.u32 %v1958, 7
    %v1960 = vsub.s32 3, %v1959
    %v1961 = vrot.slane %v274, %v1960
    %1966 = vmatprep.subr.mxu0 %v147
    %1967 = vmatpush1.msra.mxu0 %v146
    %1968 = vmatprep.subr.mxu0 %v151
    %1969 = vmatpush1.msra.mxu0 %v150
    %1970 = vmatprep.subr.mxu0 %v155
    %1971 = vmatpush1.msra.mxu0 %v154
    %1972 = vmatprep.subr.mxu0 %v159
    %1973 = vmatpush1.msra.mxu0 %v158
    %1974 = vmatprep.subr.mxu0 %v163
    %1975 = vmatpush1.msra.mxu0 %v162
    %1976 = vmatprep.subr.mxu0 %v167
    %1977 = vmatpush1.msra.mxu0 %v166
    %1978 = vmatprep.subr.mxu0 %v171
    %1979 = vmatpush1.msra.mxu0 %v170
    %1980 = vmatprep.subr.mxu0 %v175
    %1981 = vmatpush1.msra.mxu0 %v174
    %1982 = vmatprep.subr.mxu0 %v179
    %1983 = vmatpush1.msra.mxu0 %v178
    %1984 = vmatprep.subr.mxu0 %v183
    %1985 = vmatpush1.msra.mxu0 %v182
    %1986 = vmatprep.subr.mxu0 %v187
    %1987 = vmatpush1.msra.mxu0 %v186
    %1988 = vmatprep.subr.mxu0 %v191
    %1989 = vmatpush1.msra.mxu0 %v190
    %1990 = vmatprep.subr.mxu0 %v195
    %1991 = vmatpush1.msra.mxu0 %v194
    %1992 = vmatprep.subr.mxu0 %v199
    %1993 = vmatpush1.msra.mxu0 %v198
    %1994 = vmatprep.subr.mxu0 %v203
    %1995 = vmatpush1.msra.mxu0 %v202
    %1996 = vmatprep.subr.mxu0 %v207
    %1997 = vmatpush1.msra.mxu0 %v206
    %1998 = vmatprep.subr.mxu0 0.0
    %1999 = vmatpush1.msra.mxu0 0.0
    %2000 = vmatprep.subr.mxu0 0.0
    %2001 = vmatpush1.msra.mxu0 0.0
    %2002 = vmatprep.subr.mxu0 0.0
    %2003 = vmatpush1.msra.mxu0 0.0
    %2004 = vmatprep.subr.mxu0 0.0
    %2005 = vmatpush1.msra.mxu0 0.0
    %2006 = vmatprep.subr.mxu0 0.0
    %2007 = vmatpush1.msra.mxu0 0.0
    %2008 = vmatprep.subr.mxu0 0.0
    %2009 = vmatpush1.msra.mxu0 0.0
    %2010 = vmatprep.subr.mxu0 0.0
    %2011 = vmatpush1.msra.mxu0 0.0
    %2012 = vmatprep.subr.mxu0 0.0
    %2013 = vmatpush1.msra.mxu0 0.0
    %2014 = vmatprep.subr.mxu0 0.0
    %2015 = vmatpush1.msra.mxu0 0.0
    %2016 = vmatprep.subr.mxu0 0.0
    %2017 = vmatpush1.msra.mxu0 0.0
    %2018 = vmatprep.subr.mxu0 0.0
    %2019 = vmatpush1.msra.mxu0 0.0
    %2020 = vmatprep.subr.mxu0 0.0
    %2021 = vmatpush1.msra.mxu0 0.0
    %2022 = vmatprep.subr.mxu0 0.0
    %2023 = vmatpush1.msra.mxu0 0.0
    %2024 = vmatprep.subr.mxu0 0.0
    %2025 = vmatpush1.msra.mxu0 0.0
    %2026 = vmatprep.subr.mxu0 0.0
    %2027 = vmatpush1.msra.mxu0 0.0
    %2028 = vmatprep.subr.mxu0 0.0
    %2029 = vmatpush1.msra.mxu0 0.0
    %2030 = vmatprep.mubr.f32.mxu0 0.0
    %2031 = vmatmul.mubr.f32.gmra.mrb[0].mxu0 %v1944
    %v2032 = vpop.f32.mrb[0].mxu0
    %v2033 = vadd.f32 %v1949, %v2032
    %v2034 = vpop.f32.mrb[0].mxu0
    %v2035 = vadd.f32 %v1953, %v2034
    %2036 = vdwg.mxu0
    %2037 = vmatprep.subr.mxu0 %v149
    %2038 = vmatpush1.msra.mxu0 %v148
    %2039 = vmatprep.subr.mxu0 %v153
    %2040 = vmatpush1.msra.mxu0 %v152
    %2041 = vmatprep.subr.mxu0 %v157
    %2042 = vmatpush1.msra.mxu0 %v156
    %2043 = vmatprep.subr.mxu0 %v161
    %2044 = vmatpush1.msra.mxu0 %v160
    %2045 = vmatprep.subr.mxu0 %v165
    %2046 = vmatpush1.msra.mxu0 %v164
    %2047 = vmatprep.subr.mxu0 %v169
    %2048 = vmatpush1.msra.mxu0 %v168
    %2049 = vmatprep.subr.mxu0 %v173
    %2050 = vmatpush1.msra.mxu0 %v172
    %2051 = vmatprep.subr.mxu0 %v177
    %2052 = vmatpush1.msra.mxu0 %v176
    %2053 = vmatprep.subr.mxu0 %v181
    %2054 = vmatpush1.msra.mxu0 %v180
    %2055 = vmatprep.subr.mxu0 %v185
    %2056 = vmatpush1.msra.mxu0 %v184
    %2057 = vmatprep.subr.mxu0 %v189
    %2058 = vmatpush1.msra.mxu0 %v188
    %2059 = vmatprep.subr.mxu0 %v193
    %2060 = vmatpush1.msra.mxu0 %v192
    %2061 = vmatprep.subr.mxu0 %v197
    %2062 = vmatpush1.msra.mxu0 %v196
    %2063 = vmatprep.subr.mxu0 %v201
    %2064 = vmatpush1.msra.mxu0 %v200
    %2065 = vmatprep.subr.mxu0 %v205
    %2066 = vmatpush1.msra.mxu0 %v204
    %2067 = vmatprep.subr.mxu0 %v209
    %2068 = vmatpush1.msra.mxu0 %v208
    %2069 = vmatprep.subr.mxu0 0.0
    %2070 = vmatpush1.msra.mxu0 0.0
    %2071 = vmatprep.subr.mxu0 0.0
    %2072 = vmatpush1.msra.mxu0 0.0
    %2073 = vmatprep.subr.mxu0 0.0
    %2074 = vmatpush1.msra.mxu0 0.0
    %2075 = vmatprep.subr.mxu0 0.0
    %2076 = vmatpush1.msra.mxu0 0.0
    %2077 = vmatprep.subr.mxu0 0.0
    %2078 = vmatpush1.msra.mxu0 0.0
    %2079 = vmatprep.subr.mxu0 0.0
    %2080 = vmatpush1.msra.mxu0 0.0
    %2081 = vmatprep.subr.mxu0 0.0
    %2082 = vmatpush1.msra.mxu0 0.0
    %2083 = vmatprep.subr.mxu0 0.0
    %2084 = vmatpush1.msra.mxu0 0.0
    %2085 = vmatprep.subr.mxu0 0.0
    %2086 = vmatpush1.msra.mxu0 0.0
    %2087 = vmatprep.subr.mxu0 0.0
    %2088 = vmatpush1.msra.mxu0 0.0
    %2089 = vmatprep.subr.mxu0 0.0
    %2090 = vmatpush1.msra.mxu0 0.0
    %2091 = vmatprep.subr.mxu0 0.0
    %2092 = vmatpush1.msra.mxu0 0.0
    %2093 = vmatprep.subr.mxu0 0.0
    %2094 = vmatpush1.msra.mxu0 0.0
    %2095 = vmatprep.subr.mxu0 0.0
    %2096 = vmatpush1.msra.mxu0 0.0
    %2097 = vmatprep.subr.mxu0 0.0
    %2098 = vmatpush1.msra.mxu0 0.0
    %2099 = vmatprep.subr.mxu0 0.0
    %2100 = vmatpush1.msra.mxu0 0.0
    %2101 = vmatprep.mubr.f32.mxu0 0.0
    %2102 = vmatmul.mubr.f32.gmra.mrb[0].mxu0 %v1944
    %v2103 = vpop.f32.mrb[0].mxu0
    %v2104 = vadd.f32 %v1957, %v2103
    %v2105 = vpop.f32.mrb[0].mxu0
    %v2106 = vadd.f32 %v1961, %v2105
    %2107 = vdwg.mxu0
    %2108 = vmatprep.subr.mxu0 %v211
    %2109 = vmatpush1.msra.mxu0 %v210
    %2110 = vmatprep.subr.mxu0 %v215
    %2111 = vmatpush1.msra.mxu0 %v214
    %2112 = vmatprep.subr.mxu0 %v219
    %2113 = vmatpush1.msra.mxu0 %v218
    %2114 = vmatprep.subr.mxu0 %v223
    %2115 = vmatpush1.msra.mxu0 %v222
    %2116 = vmatprep.subr.mxu0 %v227
    %2117 = vmatpush1.msra.mxu0 %v226
    %2118 = vmatprep.subr.mxu0 %v231
    %2119 = vmatpush1.msra.mxu0 %v230
    %2120 = vmatprep.subr.mxu0 %v235
    %2121 = vmatpush1.msra.mxu0 %v234
    %2122 = vmatprep.subr.mxu0 %v239
    %2123 = vmatpush1.msra.mxu0 %v238
    %2124 = vmatprep.subr.mxu0 %v243
    %2125 = vmatpush1.msra.mxu0 %v242
    %2126 = vmatprep.subr.mxu0 %v247
    %2127 = vmatpush1.msra.mxu0 %v246
    %2128 = vmatprep.subr.mxu0 %v251
    %2129 = vmatpush1.msra.mxu0 %v250
    %2130 = vmatprep.subr.mxu0 %v255
    %2131 = vmatpush1.msra.mxu0 %v254
    %2132 = vmatprep.subr.mxu0 %v259
    %2133 = vmatpush1.msra.mxu0 %v258
    %2134 = vmatprep.subr.mxu0 %v263
    %2135 = vmatpush1.msra.mxu0 %v262
    %2136 = vmatprep.subr.mxu0 %v267
    %2137 = vmatpush1.msra.mxu0 %v266
    %2138 = vmatprep.subr.mxu0 %v271
    %2139 = vmatpush1.msra.mxu0 %v270
    %2140 = vmatprep.subr.mxu0 0.0
    %2141 = vmatpush1.msra.mxu0 0.0
    %2142 = vmatprep.subr.mxu0 0.0
    %2143 = vmatpush1.msra.mxu0 0.0
    %2144 = vmatprep.subr.mxu0 0.0
    %2145 = vmatpush1.msra.mxu0 0.0
    %2146 = vmatprep.subr.mxu0 0.0
    %2147 = vmatpush1.msra.mxu0 0.0
    %2148 = vmatprep.subr.mxu0 0.0
    %2149 = vmatpush1.msra.mxu0 0.0
    %2150 = vmatprep.subr.mxu0 0.0
    %2151 = vmatpush1.msra.mxu0 0.0
    %2152 = vmatprep.subr.mxu0 0.0
    %2153 = vmatpush1.msra.mxu0 0.0
    %2154 = vmatprep.subr.mxu0 0.0
    %2155 = vmatpush1.msra.mxu0 0.0
    %2156 = vmatprep.subr.mxu0 0.0
    %2157 = vmatpush1.msra.mxu0 0.0
    %2158 = vmatprep.subr.mxu0 0.0
    %2159 = vmatpush1.msra.mxu0 0.0
    %2160 = vmatprep.subr.mxu0 0.0
    %2161 = vmatpush1.msra.mxu0 0.0
    %2162 = vmatprep.subr.mxu0 0.0
    %2163 = vmatpush1.msra.mxu0 0.0
    %2164 = vmatprep.subr.mxu0 0.0
    %2165 = vmatpush1.msra.mxu0 0.0
    %2166 = vmatprep.subr.mxu0 0.0
    %2167 = vmatpush1.msra.mxu0 0.0
    %2168 = vmatprep.subr.mxu0 0.0
    %2169 = vmatpush1.msra.mxu0 0.0
    %2170 = vmatprep.subr.mxu0 0.0
    %2171 = vmatpush1.msra.mxu0 0.0
    %2172 = vmatprep.mubr.f32.mxu0 0.0
    %2173 = vmatmul.mubr.f32.gmra.mrb[0].mxu0 0.0
    %v2174 = vpop.f32.mrb[0].mxu0
    %v2175 = vadd.f32 0.0, %v2174
    %v2176 = vpop.f32.mrb[0].mxu0
    %v2177 = vadd.f32 0.0, %v2176
    %2178 = vdwg.mxu0
    %2179 = vmatprep.subr.mxu0 %v213
    %2180 = vmatpush1.msra.mxu0 %v212
    %2181 = vmatprep.subr.mxu0 %v217
    %2182 = vmatpush1.msra.mxu0 %v216
    %2183 = vmatprep.subr.mxu0 %v221
    %2184 = vmatpush1.msra.mxu0 %v220
    %2185 = vmatprep.subr.mxu0 %v225
    %2186 = vmatpush1.msra.mxu0 %v224
    %2187 = vmatprep.subr.mxu0 %v229
    %2188 = vmatpush1.msra.mxu0 %v228
    %2189 = vmatprep.subr.mxu0 %v233
    %2190 = vmatpush1.msra.mxu0 %v232
    %2191 = vmatprep.subr.mxu0 %v237
    %2192 = vmatpush1.msra.mxu0 %v236
    %2193 = vmatprep.subr.mxu0 %v241
    %2194 = vmatpush1.msra.mxu0 %v240
    %2195 = vmatprep.subr.mxu0 %v245
    %2196 = vmatpush1.msra.mxu0 %v244
    %2197 = vmatprep.subr.mxu0 %v249
    %2198 = vmatpush1.msra.mxu0 %v248
    %2199 = vmatprep.subr.mxu0 %v253
    %2200 = vmatpush1.msra.mxu0 %v252
    %2201 = vmatprep.subr.mxu0 %v257
    %2202 = vmatpush1.msra.mxu0 %v256
    %2203 = vmatprep.subr.mxu0 %v261
    %2204 = vmatpush1.msra.mxu0 %v260
    %2205 = vmatprep.subr.mxu0 %v265
    %2206 = vmatpush1.msra.mxu0 %v264
    %2207 = vmatprep.subr.mxu0 %v269
    %2208 = vmatpush1.msra.mxu0 %v268
    %2209 = vmatprep.subr.mxu0 %v273
    %2210 = vmatpush1.msra.mxu0 %v272
    %2211 = vmatprep.subr.mxu0 0.0
    %2212 = vmatpush1.msra.mxu0 0.0
    %2213 = vmatprep.subr.mxu0 0.0
    %2214 = vmatpush1.msra.mxu0 0.0
    %2215 = vmatprep.subr.mxu0 0.0
    %2216 = vmatpush1.msra.mxu0 0.0
    %2217 = vmatprep.subr.mxu0 0.0
    %2218 = vmatpush1.msra.mxu0 0.0
    %2219 = vmatprep.subr.mxu0 0.0
    %2220 = vmatpush1.msra.mxu0 0.0
    %2221 = vmatprep.subr.mxu0 0.0
    %2222 = vmatpush1.msra.mxu0 0.0
    %2223 = vmatprep.subr.mxu0 0.0
    %2224 = vmatpush1.msra.mxu0 0.0
    %2225 = vmatprep.subr.mxu0 0.0
    %2226 = vmatpush1.msra.mxu0 0.0
    %2227 = vmatprep.subr.mxu0 0.0
    %2228 = vmatpush1.msra.mxu0 0.0
    %2229 = vmatprep.subr.mxu0 0.0
    %2230 = vmatpush1.msra.mxu0 0.0
    %2231 = vmatprep.subr.mxu0 0.0
    %2232 = vmatpush1.msra.mxu0 0.0
    %2233 = vmatprep.subr.mxu0 0.0
    %2234 = vmatpush1.msra.mxu0 0.0
    %2235 = vmatprep.subr.mxu0 0.0
    %2236 = vmatpush1.msra.mxu0 0.0
    %2237 = vmatprep.subr.mxu0 0.0
    %2238 = vmatpush1.msra.mxu0 0.0
    %2239 = vmatprep.subr.mxu0 0.0
    %2240 = vmatpush1.msra.mxu0 0.0
    %2241 = vmatprep.subr.mxu0 0.0
    %2242 = vmatpush1.msra.mxu0 0.0
    %2243 = vmatprep.mubr.f32.mxu0 0.0
    %2244 = vmatmul.mubr.f32.gmra.mrb[0].mxu0 0.0
    %v2245 = vpop.f32.mrb[0].mxu0
    %v2246 = vadd.f32 0.0, %v2245
    %v2247 = vpop.f32.mrb[0].mxu0
    %v2248 = vadd.f32 0.0, %v2247
    %2249 = vdwg.mxu0
    %v2250 = vadd.f32 %v2033, %v2175
    %v2251 = vadd.f32 %v2035, %v2177
    %v2252 = vadd.f32 %v2104, %v2246
    %v2253 = vadd.f32 %v2106, %v2248
    %v2254 = vxor.u32 %v2250, 2147483648
    %v2255 = vmul.f32 %v2254, 1.442695
    %v2256 = vpow.pop %v2255
    %v2257 = vadd.f32 %v2256, 1.0
    %v2258 = vrcp.pop %v2257
    %v2259 = vmul.f32 1.0, %v2258
    %v2260 = vxor.u32 %v2251, 2147483648
    %v2261 = vmul.f32 %v2260, 1.442695
    %v2262 = vpow.pop %v2261
    %v2263 = vadd.f32 %v2262, 1.0
    %v2264 = vrcp.pop %v2263
    %v2265 = vmul.f32 1.0, %v2264
    %v2266 = vtanh.pop %v2252
    %v2267 = vxor.u32 %v2253, 2147483648
    %v2268 = vmul.f32 %v2267, 1.442695
    %v2269 = vpow.pop %v2268
    %v2270 = vadd.f32 %v2269, 1.0
    %v2271 = vrcp.pop %v2270
    %v2272 = vmul.f32 1.0, %v2271
    %v2273 = vmul.f32 %v2265, 0.0
    %v2274 = vmul.f32 %v2259, %v2266
    %v2275 = vadd.f32 %v2273, %v2274
    %v2276 = vtanh.pop %v2275
    %v2277 = vmul.f32 %v2272, %v2276
    %2278 = vmatprep.subr.mxu0 %v211
    %2279 = vmatpush1.msra.mxu0 %v210
    %2280 = vmatprep.subr.mxu0 %v215
    %2281 = vmatpush1.msra.mxu0 %v214
    %2282 = vmatprep.subr.mxu0 %v219
    %2283 = vmatpush1.msra.mxu0 %v218
    %2284 = vmatprep.subr.mxu0 %v223
    %2285 = vmatpush1.msra.mxu0 %v222
    %2286 = vmatprep.subr.mxu0 %v227
    %2287 = vmatpush1.msra.mxu0 %v226
    %2288 = vmatprep.subr.mxu0 %v231
    %2289 = vmatpush1.msra.mxu0 %v230
    %2290 = vmatprep.subr.mxu0 %v235
    %2291 = vmatpush1.msra.mxu0 %v234
    %2292 = vmatprep.subr.mxu0 %v239
    %2293 = vmatpush1.msra.mxu0 %v238
    %2294 = vmatprep.subr.mxu0 %v243
    %2295 = vmatpush1.msra.mxu0 %v242
    %2296 = vmatprep.subr.mxu0 %v247
    %2297 = vmatpush1.msra.mxu0 %v246
    %2298 = vmatprep.subr.mxu0 %v251
    %2299 = vmatpush1.msra.mxu0 %v250
    %2300 = vmatprep.subr.mxu0 %v255
    %2301 = vmatpush1.msra.mxu0 %v254
    %2302 = vmatprep.subr.mxu0 %v259
    %2303 = vmatpush1.msra.mxu0 %v258
    %2304 = vmatprep.subr.mxu0 %v263
    %2305 = vmatpush1.msra.mxu0 %v262
    %2306 = vmatprep.subr.mxu0 %v267
    %2307 = vmatpush1.msra.mxu0 %v266
    %2308 = vmatprep.subr.mxu0 %v271
    %2309 = vmatpush1.msra.mxu0 %v270
    %2310 = vmatprep.subr.mxu0 0.0
    %2311 = vmatpush1.msra.mxu0 0.0
    %2312 = vmatprep.subr.mxu0 0.0
    %2313 = vmatpush1.msra.mxu0 0.0
    %2314 = vmatprep.subr.mxu0 0.0
    %2315 = vmatpush1.msra.mxu0 0.0
    %2316 = vmatprep.subr.mxu0 0.0
    %2317 = vmatpush1.msra.mxu0 0.0
    %2318 = vmatprep.subr.mxu0 0.0
    %2319 = vmatpush1.msra.mxu0 0.0
    %2320 = vmatprep.subr.mxu0 0.0
    %2321 = vmatpush1.msra.mxu0 0.0
    %2322 = vmatprep.subr.mxu0 0.0
    %2323 = vmatpush1.msra.mxu0 0.0
    %2324 = vmatprep.subr.mxu0 0.0
    %2325 = vmatpush1.msra.mxu0 0.0
    %2326 = vmatprep.subr.mxu0 0.0
    %2327 = vmatpush1.msra.mxu0 0.0
    %2328 = vmatprep.subr.mxu0 0.0
    %2329 = vmatpush1.msra.mxu0 0.0
    %2330 = vmatprep.subr.mxu0 0.0
    %2331 = vmatpush1.msra.mxu0 0.0
    %2332 = vmatprep.subr.mxu0 0.0
    %2333 = vmatpush1.msra.mxu0 0.0
    %2334 = vmatprep.subr.mxu0 0.0
    %2335 = vmatpush1.msra.mxu0 0.0
    %2336 = vmatprep.subr.mxu0 0.0
    %2337 = vmatpush1.msra.mxu0 0.0
    %2338 = vmatprep.subr.mxu0 0.0
    %2339 = vmatpush1.msra.mxu0 0.0
    %2340 = vmatprep.subr.mxu0 0.0
    %2341 = vmatpush1.msra.mxu0 0.0
    %2342 = vmatprep.mubr.f32.mxu0 0.0
    %2343 = vmatmul.mubr.f32.gmra.mrb[0].mxu0 %v2277
    %v2344 = vpop.f32.mrb[0].mxu0
    %v2345 = vadd.f32 0.0, %v2344
    %v2346 = vpop.f32.mrb[0].mxu0
    %v2347 = vadd.f32 0.0, %v2346
    %2348 = vdwg.mxu0
    %2349 = vmatprep.subr.mxu0 %v213
    %2350 = vmatpush1.msra.mxu0 %v212
    %2351 = vmatprep.subr.mxu0 %v217
    %2352 = vmatpush1.msra.mxu0 %v216
    %2353 = vmatprep.subr.mxu0 %v221
    %2354 = vmatpush1.msra.mxu0 %v220
    %2355 = vmatprep.subr.mxu0 %v225
    %2356 = vmatpush1.msra.mxu0 %v224
    %2357 = vmatprep.subr.mxu0 %v229
    %2358 = vmatpush1.msra.mxu0 %v228
    %2359 = vmatprep.subr.mxu0 %v233
    %2360 = vmatpush1.msra.mxu0 %v232
    %2361 = vmatprep.subr.mxu0 %v237
    %2362 = vmatpush1.msra.mxu0 %v236
    %2363 = vmatprep.subr.mxu0 %v241
    %2364 = vmatpush1.msra.mxu0 %v240
    %2365 = vmatprep.subr.mxu0 %v245
    %2366 = vmatpush1.msra.mxu0 %v244
    %2367 = vmatprep.subr.mxu0 %v249
    %2368 = vmatpush1.msra.mxu0 %v248
    %2369 = vmatprep.subr.mxu0 %v253
    %2370 = vmatpush1.msra.mxu0 %v252
    %2371 = vmatprep.subr.mxu0 %v257
    %2372 = vmatpush1.msra.mxu0 %v256
    %2373 = vmatprep.subr.mxu0 %v261
    %2374 = vmatpush1.msra.mxu0 %v260
    %2375 = vmatprep.subr.mxu0 %v265
    %2376 = vmatpush1.msra.mxu0 %v264
    %2377 = vmatprep.subr.mxu0 %v269
    %2378 = vmatpush1.msra.mxu0 %v268
    %2379 = vmatprep.subr.mxu0 %v273
    %2380 = vmatpush1.msra.mxu0 %v272
    %2381 = vmatprep.subr.mxu0 0.0
    %2382 = vmatpush1.msra.mxu0 0.0
    %2383 = vmatprep.subr.mxu0 0.0
    %2384 = vmatpush1.msra.mxu0 0.0
    %2385 = vmatprep.subr.mxu0 0.0
    %2386 = vmatpush1.msra.mxu0 0.0
    %2387 = vmatprep.subr.mxu0 0.0
    %2388 = vmatpush1.msra.mxu0 0.0
    %2389 = vmatprep.subr.mxu0 0.0
    %2390 = vmatpush1.msra.mxu0 0.0
    %2391 = vmatprep.subr.mxu0 0.0
    %2392 = vmatpush1.msra.mxu0 0.0
    %2393 = vmatprep.subr.mxu0 0.0
    %2394 = vmatpush1.msra.mxu0 0.0
    %2395 = vmatprep.subr.mxu0 0.0
    %2396 = vmatpush1.msra.mxu0 0.0
    %2397 = vmatprep.subr.mxu0 0.0
    %2398 = vmatpush1.msra.mxu0 0.0
    %2399 = vmatprep.subr.mxu0 0.0
    %2400 = vmatpush1.msra.mxu0 0.0
    %2401 = vmatprep.subr.mxu0 0.0
    %2402 = vmatpush1.msra.mxu0 0.0
    %2403 = vmatprep.subr.mxu0 0.0
    %2404 = vmatpush1.msra.mxu0 0.0
    %2405 = vmatprep.subr.mxu0 0.0
    %2406 = vmatpush1.msra.mxu0 0.0
    %2407 = vmatprep.subr.mxu0 0.0
    %2408 = vmatpush1.msra.mxu0 0.0
    %2409 = vmatprep.subr.mxu0 0.0
    %2410 = vmatpush1.msra.mxu0 0.0
    %2411 = vmatprep.subr.mxu0 0.0
    %2412 = vmatpush1.msra.mxu0 0.0
    %2413 = vmatprep.mubr.f32.mxu0 0.0
    %2414 = vmatmul.mubr.f32.gmra.mrb[0].mxu0 %v2277
    %v2415 = vpop.f32.mrb[0].mxu0
    %v2416 = vadd.f32 0.0, %v2415
    %v2417 = vpop.f32.mrb[0].mxu0
    %v2418 = vadd.f32 0.0, %v2417
    %2419 = vdwg.mxu0
    %v2420 = vadd.f32 %v2033, %v2345
    %v2421 = vadd.f32 %v2035, %v2347
    %v2422 = vadd.f32 %v2104, %v2416
    %v2423 = vadd.f32 %v2106, %v2418
    %v2424 = vxor.u32 %v2420, 2147483648
    %v2425 = vmul.f32 %v2424, 1.442695
    %v2426 = vpow.pop %v2425
    %v2427 = vadd.f32 %v2426, 1.0
    %v2428 = vrcp.pop %v2427
    %v2429 = vmul.f32 1.0, %v2428
    %v2430 = vxor.u32 %v2421, 2147483648
    %v2431 = vmul.f32 %v2430, 1.442695
    %v2432 = vpow.pop %v2431
    %v2433 = vadd.f32 %v2432, 1.0
    %v2434 = vrcp.pop %v2433
    %v2435 = vmul.f32 1.0, %v2434
    %v2436 = vtanh.pop %v2422
    %v2437 = vxor.u32 %v2423, 2147483648
    %v2438 = vmul.f32 %v2437, 1.442695
    %v2439 = vpow.pop %v2438
    %v2440 = vadd.f32 %v2439, 1.0
    %v2441 = vrcp.pop %v2440
    %v2442 = vmul.f32 1.0, %v2441
    %v2443 = vmul.f32 %v2435, %v2275
    %v2444 = vmul.f32 %v2429, %v2436
    %v2445 = vadd.f32 %v2443, %v2444
    %v2446 = vtanh.pop %v2445
    %v2447 = vmul.f32 %v2442, %v2446
    %2448 = vmatprep.subr.mxu0 %v211
    %2449 = vmatpush1.msra.mxu0 %v210
    %2450 = vmatprep.subr.mxu0 %v215
    %2451 = vmatpush1.msra.mxu0 %v214
    %2452 = vmatprep.subr.mxu0 %v219
    %2453 = vmatpush1.msra.mxu0 %v218
    %2454 = vmatprep.subr.mxu0 %v223
    %2455 = vmatpush1.msra.mxu0 %v222
    %2456 = vmatprep.subr.mxu0 %v227
    %2457 = vmatpush1.msra.mxu0 %v226
    %2458 = vmatprep.subr.mxu0 %v231
    %2459 = vmatpush1.msra.mxu0 %v230
    %2460 = vmatprep.subr.mxu0 %v235
    %2461 = vmatpush1.msra.mxu0 %v234
    %2462 = vmatprep.subr.mxu0 %v239
    %2463 = vmatpush1.msra.mxu0 %v238
    %2464 = vmatprep.subr.mxu0 %v243
    %2465 = vmatpush1.msra.mxu0 %v242
    %2466 = vmatprep.subr.mxu0 %v247
    %2467 = vmatpush1.msra.mxu0 %v246
    %2468 = vmatprep.subr.mxu0 %v251
    %2469 = vmatpush1.msra.mxu0 %v250
    %2470 = vmatprep.subr.mxu0 %v255
    %2471 = vmatpush1.msra.mxu0 %v254
    %2472 = vmatprep.subr.mxu0 %v259
    %2473 = vmatpush1.msra.mxu0 %v258
    %2474 = vmatprep.subr.mxu0 %v263
    %2475 = vmatpush1.msra.mxu0 %v262
    %2476 = vmatprep.subr.mxu0 %v267
    %2477 = vmatpush1.msra.mxu0 %v266
    %2478 = vmatprep.subr.mxu0 %v271
    %2479 = vmatpush1.msra.mxu0 %v270
    %2480 = vmatprep.subr.mxu0 0.0
    %2481 = vmatpush1.msra.mxu0 0.0
    %2482 = vmatprep.subr.mxu0 0.0
    %2483 = vmatpush1.msra.mxu0 0.0
    %2484 = vmatprep.subr.mxu0 0.0
    %2485 = vmatpush1.msra.mxu0 0.0
    %2486 = vmatprep.subr.mxu0 0.0
    %2487 = vmatpush1.msra.mxu0 0.0
    %2488 = vmatprep.subr.mxu0 0.0
    %2489 = vmatpush1.msra.mxu0 0.0
    %2490 = vmatprep.subr.mxu0 0.0
    %2491 = vmatpush1.msra.mxu0 0.0
    %2492 = vmatprep.subr.mxu0 0.0
    %2493 = vmatpush1.msra.mxu0 0.0
    %2494 = vmatprep.subr.mxu0 0.0
    %2495 = vmatpush1.msra.mxu0 0.0
    %2496 = vmatprep.subr.mxu0 0.0
    %2497 = vmatpush1.msra.mxu0 0.0
    %2498 = vmatprep.subr.mxu0 0.0
    %2499 = vmatpush1.msra.mxu0 0.0
    %2500 = vmatprep.subr.mxu0 0.0
    %2501 = vmatpush1.msra.mxu0 0.0
    %2502 = vmatprep.subr.mxu0 0.0
    %2503 = vmatpush1.msra.mxu0 0.0
    %2504 = vmatprep.subr.mxu0 0.0
    %2505 = vmatpush1.msra.mxu0 0.0
    %2506 = vmatprep.subr.mxu0 0.0
    %2507 = vmatpush1.msra.mxu0 0.0
    %2508 = vmatprep.subr.mxu0 0.0
    %2509 = vmatpush1.msra.mxu0 0.0
    %2510 = vmatprep.subr.mxu0 0.0
    %2511 = vmatpush1.msra.mxu0 0.0
    %2512 = vmatprep.mubr.f32.mxu0 0.0
    %2513 = vmatmul.mubr.f32.gmra.mrb[0].mxu0 %v2447
    %v2514 = vpop.f32.mrb[0].mxu0
    %v2515 = vadd.f32 0.0, %v2514
    %v2516 = vpop.f32.mrb[0].mxu0
    %v2517 = vadd.f32 0.0, %v2516
    %2518 = vdwg.mxu0
    %2519 = vmatprep.subr.mxu0 %v213
    %2520 = vmatpush1.msra.mxu0 %v212
    %2521 = vmatprep.subr.mxu0 %v217
    %2522 = vmatpush1.msra.mxu0 %v216
    %2523 = vmatprep.subr.mxu0 %v221
    %2524 = vmatpush1.msra.mxu0 %v220
    %2525 = vmatprep.subr.mxu0 %v225
    %2526 = vmatpush1.msra.mxu0 %v224
    %2527 = vmatprep.subr.mxu0 %v229
    %2528 = vmatpush1.msra.mxu0 %v228
    %2529 = vmatprep.subr.mxu0 %v233
    %2530 = vmatpush1.msra.mxu0 %v232
    %2531 = vmatprep.subr.mxu0 %v237
    %2532 = vmatpush1.msra.mxu0 %v236
    %2533 = vmatprep.subr.mxu0 %v241
    %2534 = vmatpush1.msra.mxu0 %v240
    %2535 = vmatprep.subr.mxu0 %v245
    %2536 = vmatpush1.msra.mxu0 %v244
    %2537 = vmatprep.subr.mxu0 %v249
    %2538 = vmatpush1.msra.mxu0 %v248
    %2539 = vmatprep.subr.mxu0 %v253
    %2540 = vmatpush1.msra.mxu0 %v252
    %2541 = vmatprep.subr.mxu0 %v257
    %2542 = vmatpush1.msra.mxu0 %v256
    %2543 = vmatprep.subr.mxu0 %v261
    %2544 = vmatpush1.msra.mxu0 %v260
    %2545 = vmatprep.subr.mxu0 %v265
    %2546 = vmatpush1.msra.mxu0 %v264
    %2547 = vmatprep.subr.mxu0 %v269
    %2548 = vmatpush1.msra.mxu0 %v268
    %2549 = vmatprep.subr.mxu0 %v273
    %2550 = vmatpush1.msra.mxu0 %v272
    %2551 = vmatprep.subr.mxu0 0.0
    %2552 = vmatpush1.msra.mxu0 0.0
    %2553 = vmatprep.subr.mxu0 0.0
    %2554 = vmatpush1.msra.mxu0 0.0
    %2555 = vmatprep.subr.mxu0 0.0
    %2556 = vmatpush1.msra.mxu0 0.0
    %2557 = vmatprep.subr.mxu0 0.0
    %2558 = vmatpush1.msra.mxu0 0.0
    %2559 = vmatprep.subr.mxu0 0.0
    %2560 = vmatpush1.msra.mxu0 0.0
    %2561 = vmatprep.subr.mxu0 0.0
    %2562 = vmatpush1.msra.mxu0 0.0
    %2563 = vmatprep.subr.mxu0 0.0
    %2564 = vmatpush1.msra.mxu0 0.0
    %2565 = vmatprep.subr.mxu0 0.0
    %2566 = vmatpush1.msra.mxu0 0.0
    %2567 = vmatprep.subr.mxu0 0.0
    %2568 = vmatpush1.msra.mxu0 0.0
    %2569 = vmatprep.subr.mxu0 0.0
    %2570 = vmatpush1.msra.mxu0 0.0
    %2571 = vmatprep.subr.mxu0 0.0
    %2572 = vmatpush1.msra.mxu0 0.0
    %2573 = vmatprep.subr.mxu0 0.0
    %2574 = vmatpush1.msra.mxu0 0.0
    %2575 = vmatprep.subr.mxu0 0.0
    %2576 = vmatpush1.msra.mxu0 0.0
    %2577 = vmatprep.subr.mxu0 0.0
    %2578 = vmatpush1.msra.mxu0 0.0
    %2579 = vmatprep.subr.mxu0 0.0
    %2580 = vmatpush1.msra.mxu0 0.0
    %2581 = vmatprep.subr.mxu0 0.0
    %2582 = vmatpush1.msra.mxu0 0.0
    %2583 = vmatprep.mubr.f32.mxu0 0.0
    %2584 = vmatmul.mubr.f32.gmra.mrb[0].mxu0 %v2447
    %v2585 = vpop.f32.mrb[0].mxu0
    %v2586 = vadd.f32 0.0, %v2585
    %v2587 = vpop.f32.mrb[0].mxu0
    %v2588 = vadd.f32 0.0, %v2587
    %2589 = vdwg.mxu0
    %v2590 = vadd.f32 %v2033, %v2515
    %v2591 = vadd.f32 %v2035, %v2517
    %v2592 = vadd.f32 %v2104, %v2586
    %v2593 = vadd.f32 %v2106, %v2588
    %v2594 = vxor.u32 %v2590, 2147483648
    %v2595 = vmul.f32 %v2594, 1.442695
    %v2596 = vpow.pop %v2595
    %v2597 = vadd.f32 %v2596, 1.0
    %v2598 = vrcp.pop %v2597
    %v2599 = vmul.f32 1.0, %v2598
    %v2600 = vxor.u32 %v2591, 2147483648
    %v2601 = vmul.f32 %v2600, 1.442695
    %v2602 = vpow.pop %v2601
    %v2603 = vadd.f32 %v2602, 1.0
    %v2604 = vrcp.pop %v2603
    %v2605 = vmul.f32 1.0, %v2604
    %v2606 = vtanh.pop %v2592
    %v2607 = vxor.u32 %v2593, 2147483648
    %v2608 = vmul.f32 %v2607, 1.442695
    %v2609 = vpow.pop %v2608
    %v2610 = vadd.f32 %v2609, 1.0
    %v2611 = vrcp.pop %v2610
    %v2612 = vmul.f32 1.0, %v2611
    %v2613 = vmul.f32 %v2605, %v2445
    %v2614 = vmul.f32 %v2599, %v2606
    %v2615 = vadd.f32 %v2613, %v2614
    %v2616 = vtanh.pop %v2615
    %v2617 = vmul.f32 %v2612, %v2616
    %2618 = vmatprep.subr.mxu0 %v211
    %2619 = vmatpush1.msra.mxu0 %v210
    %2620 = vmatprep.subr.mxu0 %v215
    %2621 = vmatpush1.msra.mxu0 %v214
    %2622 = vmatprep.subr.mxu0 %v219
    %2623 = vmatpush1.msra.mxu0 %v218
    %2624 = vmatprep.subr.mxu0 %v223
    %2625 = vmatpush1.msra.mxu0 %v222
    %2626 = vmatprep.subr.mxu0 %v227
    %2627 = vmatpush1.msra.mxu0 %v226
    %2628 = vmatprep.subr.mxu0 %v231
    %2629 = vmatpush1.msra.mxu0 %v230
    %2630 = vmatprep.subr.mxu0 %v235
    %2631 = vmatpush1.msra.mxu0 %v234
    %2632 = vmatprep.subr.mxu0 %v239
    %2633 = vmatpush1.msra.mxu0 %v238
    %2634 = vmatprep.subr.mxu0 %v243
    %2635 = vmatpush1.msra.mxu0 %v242
    %2636 = vmatprep.subr.mxu0 %v247
    %2637 = vmatpush1.msra.mxu0 %v246
    %2638 = vmatprep.subr.mxu0 %v251
    %2639 = vmatpush1.msra.mxu0 %v250
    %2640 = vmatprep.subr.mxu0 %v255
    %2641 = vmatpush1.msra.mxu0 %v254
    %2642 = vmatprep.subr.mxu0 %v259
    %2643 = vmatpush1.msra.mxu0 %v258
    %2644 = vmatprep.subr.mxu0 %v263
    %2645 = vmatpush1.msra.mxu0 %v262
    %2646 = vmatprep.subr.mxu0 %v267
    %2647 = vmatpush1.msra.mxu0 %v266
    %2648 = vmatprep.subr.mxu0 %v271
    %2649 = vmatpush1.msra.mxu0 %v270
    %2650 = vmatprep.subr.mxu0 0.0
    %2651 = vmatpush1.msra.mxu0 0.0
    %2652 = vmatprep.subr.mxu0 0.0
    %2653 = vmatpush1.msra.mxu0 0.0
    %2654 = vmatprep.subr.mxu0 0.0
    %2655 = vmatpush1.msra.mxu0 0.0
    %2656 = vmatprep.subr.mxu0 0.0
    %2657 = vmatpush1.msra.mxu0 0.0
    %2658 = vmatprep.subr.mxu0 0.0
    %2659 = vmatpush1.msra.mxu0 0.0
    %2660 = vmatprep.subr.mxu0 0.0
    %2661 = vmatpush1.msra.mxu0 0.0
    %2662 = vmatprep.subr.mxu0 0.0
    %2663 = vmatpush1.msra.mxu0 0.0
    %2664 = vmatprep.subr.mxu0 0.0
    %2665 = vmatpush1.msra.mxu0 0.0
    %2666 = vmatprep.subr.mxu0 0.0
    %2667 = vmatpush1.msra.mxu0 0.0
    %2668 = vmatprep.subr.mxu0 0.0
    %2669 = vmatpush1.msra.mxu0 0.0
    %2670 = vmatprep.subr.mxu0 0.0
    %2671 = vmatpush1.msra.mxu0 0.0
    %2672 = vmatprep.subr.mxu0 0.0
    %2673 = vmatpush1.msra.mxu0 0.0
    %2674 = vmatprep.subr.mxu0 0.0
    %2675 = vmatpush1.msra.mxu0 0.0
    %2676 = vmatprep.subr.mxu0 0.0
    %2677 = vmatpush1.msra.mxu0 0.0
    %2678 = vmatprep.subr.mxu0 0.0
    %2679 = vmatpush1.msra.mxu0 0.0
    %2680 = vmatprep.subr.mxu0 0.0
    %2681 = vmatpush1.msra.mxu0 0.0
    %2682 = vmatprep.mubr.f32.mxu0 0.0
    %2683 = vmatmul.mubr.f32.gmra.mrb[0].mxu0 %v2617
    %v2684 = vpop.f32.mrb[0].mxu0
    %v2685 = vadd.f32 0.0, %v2684
    %v2686 = vpop.f32.mrb[0].mxu0
    %v2687 = vadd.f32 0.0, %v2686
    %2688 = vdwg.mxu0
    %2689 = vmatprep.subr.mxu0 %v213
    %2690 = vmatpush1.msra.mxu0 %v212
    %2691 = vmatprep.subr.mxu0 %v217
    %2692 = vmatpush1.msra.mxu0 %v216
    %2693 = vmatprep.subr.mxu0 %v221
    %2694 = vmatpush1.msra.mxu0 %v220
    %2695 = vmatprep.subr.mxu0 %v225
    %2696 = vmatpush1.msra.mxu0 %v224
    %2697 = vmatprep.subr.mxu0 %v229
    %2698 = vmatpush1.msra.mxu0 %v228
    %2699 = vmatprep.subr.mxu0 %v233
    %2700 = vmatpush1.msra.mxu0 %v232
    %2701 = vmatprep.subr.mxu0 %v237
    %2702 = vmatpush1.msra.mxu0 %v236
    %2703 = vmatprep.subr.mxu0 %v241
    %2704 = vmatpush1.msra.mxu0 %v240
    %2705 = vmatprep.subr.mxu0 %v245
    %2706 = vmatpush1.msra.mxu0 %v244
    %2707 = vmatprep.subr.mxu0 %v249
    %2708 = vmatpush1.msra.mxu0 %v248
    %2709 = vmatprep.subr.mxu0 %v253
    %2710 = vmatpush1.msra.mxu0 %v252
    %2711 = vmatprep.subr.mxu0 %v257
    %2712 = vmatpush1.msra.mxu0 %v256
    %2713 = vmatprep.subr.mxu0 %v261
    %2714 = vmatpush1.msra.mxu0 %v260
    %2715 = vmatprep.subr.mxu0 %v265
    %2716 = vmatpush1.msra.mxu0 %v264
    %2717 = vmatprep.subr.mxu0 %v269
    %2718 = vmatpush1.msra.mxu0 %v268
    %2719 = vmatprep.subr.mxu0 %v273
    %2720 = vmatpush1.msra.mxu0 %v272
    %2721 = vmatprep.subr.mxu0 0.0
    %2722 = vmatpush1.msra.mxu0 0.0
    %2723 = vmatprep.subr.mxu0 0.0
    %2724 = vmatpush1.msra.mxu0 0.0
    %2725 = vmatprep.subr.mxu0 0.0
    %2726 = vmatpush1.msra.mxu0 0.0
    %2727 = vmatprep.subr.mxu0 0.0
    %2728 = vmatpush1.msra.mxu0 0.0
    %2729 = vmatprep.subr.mxu0 0.0
    %2730 = vmatpush1.msra.mxu0 0.0
    %2731 = vmatprep.subr.mxu0 0.0
    %2732 = vmatpush1.msra.mxu0 0.0
    %2733 = vmatprep.subr.mxu0 0.0
    %2734 = vmatpush1.msra.mxu0 0.0
    %2735 = vmatprep.subr.mxu0 0.0
    %2736 = vmatpush1.msra.mxu0 0.0
    %2737 = vmatprep.subr.mxu0 0.0
    %2738 = vmatpush1.msra.mxu0 0.0
    %2739 = vmatprep.subr.mxu0 0.0
    %2740 = vmatpush1.msra.mxu0 0.0
    %2741 = vmatprep.subr.mxu0 0.0
    %2742 = vmatpush1.msra.mxu0 0.0
    %2743 = vmatprep.subr.mxu0 0.0
    %2744 = vmatpush1.msra.mxu0 0.0
    %2745 = vmatprep.subr.mxu0 0.0
    %2746 = vmatpush1.msra.mxu0 0.0
    %2747 = vmatprep.subr.mxu0 0.0
    %2748 = vmatpush1.msra.mxu0 0.0
    %2749 = vmatprep.subr.mxu0 0.0
    %2750 = vmatpush1.msra.mxu0 0.0
    %2751 = vmatprep.subr.mxu0 0.0
    %2752 = vmatpush1.msra.mxu0 0.0
    %2753 = vmatprep.mubr.f32.mxu0 0.0
    %2754 = vmatmul.mubr.f32.gmra.mrb[0].mxu0 %v2617
    %v2755 = vpop.f32.mrb[0].mxu0
    %v2756 = vadd.f32 0.0, %v2755
    %v2757 = vpop.f32.mrb[0].mxu0
    %v2758 = vadd.f32 0.0, %v2757
    %2759 = vdwg.mxu0
    %v2760 = vadd.f32 %v2033, %v2685
    %v2761 = vadd.f32 %v2035, %v2687
    %v2762 = vadd.f32 %v2104, %v2756
    %v2763 = vadd.f32 %v2106, %v2758
    %v2764 = vxor.u32 %v2760, 2147483648
    %v2765 = vmul.f32 %v2764, 1.442695
    %v2766 = vpow.pop %v2765
    %v2767 = vadd.f32 %v2766, 1.0
    %v2768 = vrcp.pop %v2767
    %v2769 = vmul.f32 1.0, %v2768
    %v2770 = vxor.u32 %v2761, 2147483648
    %v2771 = vmul.f32 %v2770, 1.442695
    %v2772 = vpow.pop %v2771
    %v2773 = vadd.f32 %v2772, 1.0
    %v2774 = vrcp.pop %v2773
    %v2775 = vmul.f32 1.0, %v2774
    %v2776 = vtanh.pop %v2762
    %v2777 = vxor.u32 %v2763, 2147483648
    %v2778 = vmul.f32 %v2777, 1.442695
    %v2779 = vpow.pop %v2778
    %v2780 = vadd.f32 %v2779, 1.0
    %v2781 = vrcp.pop %v2780
    %v2782 = vmul.f32 1.0, %v2781
    %v2783 = vmul.f32 %v2775, %v2615
    %v2784 = vmul.f32 %v2769, %v2776
    %v2785 = vadd.f32 %v2783, %v2784
    %v2786 = vtanh.pop %v2785
    %v2787 = vmul.f32 %v2782, %v2786
    %2788 = vmatprep.subr.mxu0 %v211
    %2789 = vmatpush1.msra.mxu0 %v210
    %2790 = vmatprep.subr.mxu0 %v215
    %2791 = vmatpush1.msra.mxu0 %v214
    %2792 = vmatprep.subr.mxu0 %v219
    %2793 = vmatpush1.msra.mxu0 %v218
    %2794 = vmatprep.subr.mxu0 %v223
    %2795 = vmatpush1.msra.mxu0 %v222
    %2796 = vmatprep.subr.mxu0 %v227
    %2797 = vmatpush1.msra.mxu0 %v226
    %2798 = vmatprep.subr.mxu0 %v231
    %2799 = vmatpush1.msra.mxu0 %v230
    %2800 = vmatprep.subr.mxu0 %v235
    %2801 = vmatpush1.msra.mxu0 %v234
    %2802 = vmatprep.subr.mxu0 %v239
    %2803 = vmatpush1.msra.mxu0 %v238
    %2804 = vmatprep.subr.mxu0 %v243
    %2805 = vmatpush1.msra.mxu0 %v242
    %2806 = vmatprep.subr.mxu0 %v247
    %2807 = vmatpush1.msra.mxu0 %v246
    %2808 = vmatprep.subr.mxu0 %v251
    %2809 = vmatpush1.msra.mxu0 %v250
    %2810 = vmatprep.subr.mxu0 %v255
    %2811 = vmatpush1.msra.mxu0 %v254
    %2812 = vmatprep.subr.mxu0 %v259
    %2813 = vmatpush1.msra.mxu0 %v258
    %2814 = vmatprep.subr.mxu0 %v263
    %2815 = vmatpush1.msra.mxu0 %v262
    %2816 = vmatprep.subr.mxu0 %v267
    %2817 = vmatpush1.msra.mxu0 %v266
    %2818 = vmatprep.subr.mxu0 %v271
    %2819 = vmatpush1.msra.mxu0 %v270
    %2820 = vmatprep.subr.mxu0 0.0
    %2821 = vmatpush1.msra.mxu0 0.0
    %2822 = vmatprep.subr.mxu0 0.0
    %2823 = vmatpush1.msra.mxu0 0.0
    %2824 = vmatprep.subr.mxu0 0.0
    %2825 = vmatpush1.msra.mxu0 0.0
    %2826 = vmatprep.subr.mxu0 0.0
    %2827 = vmatpush1.msra.mxu0 0.0
    %2828 = vmatprep.subr.mxu0 0.0
    %2829 = vmatpush1.msra.mxu0 0.0
    %2830 = vmatprep.subr.mxu0 0.0
    %2831 = vmatpush1.msra.mxu0 0.0
    %2832 = vmatprep.subr.mxu0 0.0
    %2833 = vmatpush1.msra.mxu0 0.0
    %2834 = vmatprep.subr.mxu0 0.0
    %2835 = vmatpush1.msra.mxu0 0.0
    %2836 = vmatprep.subr.mxu0 0.0
    %2837 = vmatpush1.msra.mxu0 0.0
    %2838 = vmatprep.subr.mxu0 0.0
    %2839 = vmatpush1.msra.mxu0 0.0
    %2840 = vmatprep.subr.mxu0 0.0
    %2841 = vmatpush1.msra.mxu0 0.0
    %2842 = vmatprep.subr.mxu0 0.0
    %2843 = vmatpush1.msra.mxu0 0.0
    %2844 = vmatprep.subr.mxu0 0.0
    %2845 = vmatpush1.msra.mxu0 0.0
    %2846 = vmatprep.subr.mxu0 0.0
    %2847 = vmatpush1.msra.mxu0 0.0
    %2848 = vmatprep.subr.mxu0 0.0
    %2849 = vmatpush1.msra.mxu0 0.0
    %2850 = vmatprep.subr.mxu0 0.0
    %2851 = vmatpush1.msra.mxu0 0.0
    %2852 = vmatprep.mubr.f32.mxu0 0.0
    %2853 = vmatmul.mubr.f32.gmra.mrb[0].mxu0 %v2787
    %v2854 = vpop.f32.mrb[0].mxu0
    %v2855 = vadd.f32 0.0, %v2854
    %v2856 = vpop.f32.mrb[0].mxu0
    %v2857 = vadd.f32 0.0, %v2856
    %2858 = vdwg.mxu0
    %2859 = vmatprep.subr.mxu0 %v213
    %2860 = vmatpush1.msra.mxu0 %v212
    %2861 = vmatprep.subr.mxu0 %v217
    %2862 = vmatpush1.msra.mxu0 %v216
    %2863 = vmatprep.subr.mxu0 %v221
    %2864 = vmatpush1.msra.mxu0 %v220
    %2865 = vmatprep.subr.mxu0 %v225
    %2866 = vmatpush1.msra.mxu0 %v224
    %2867 = vmatprep.subr.mxu0 %v229
    %2868 = vmatpush1.msra.mxu0 %v228
    %2869 = vmatprep.subr.mxu0 %v233
    %2870 = vmatpush1.msra.mxu0 %v232
    %2871 = vmatprep.subr.mxu0 %v237
    %2872 = vmatpush1.msra.mxu0 %v236
    %2873 = vmatprep.subr.mxu0 %v241
    %2874 = vmatpush1.msra.mxu0 %v240
    %2875 = vmatprep.subr.mxu0 %v245
    %2876 = vmatpush1.msra.mxu0 %v244
    %2877 = vmatprep.subr.mxu0 %v249
    %2878 = vmatpush1.msra.mxu0 %v248
    %2879 = vmatprep.subr.mxu0 %v253
    %2880 = vmatpush1.msra.mxu0 %v252
    %2881 = vmatprep.subr.mxu0 %v257
    %2882 = vmatpush1.msra.mxu0 %v256
    %2883 = vmatprep.subr.mxu0 %v261
    %2884 = vmatpush1.msra.mxu0 %v260
    %2885 = vmatprep.subr.mxu0 %v265
    %2886 = vmatpush1.msra.mxu0 %v264
    %2887 = vmatprep.subr.mxu0 %v269
    %2888 = vmatpush1.msra.mxu0 %v268
    %2889 = vmatprep.subr.mxu0 %v273
    %2890 = vmatpush1.msra.mxu0 %v272
    %2891 = vmatprep.subr.mxu0 0.0
    %2892 = vmatpush1.msra.mxu0 0.0
    %2893 = vmatprep.subr.mxu0 0.0
    %2894 = vmatpush1.msra.mxu0 0.0
    %2895 = vmatprep.subr.mxu0 0.0
    %2896 = vmatpush1.msra.mxu0 0.0
    %2897 = vmatprep.subr.mxu0 0.0
    %2898 = vmatpush1.msra.mxu0 0.0
    %2899 = vmatprep.subr.mxu0 0.0
    %2900 = vmatpush1.msra.mxu0 0.0
    %2901 = vmatprep.subr.mxu0 0.0
    %2902 = vmatpush1.msra.mxu0 0.0
    %2903 = vmatprep.subr.mxu0 0.0
    %2904 = vmatpush1.msra.mxu0 0.0
    %2905 = vmatprep.subr.mxu0 0.0
    %2906 = vmatpush1.msra.mxu0 0.0
    %2907 = vmatprep.subr.mxu0 0.0
    %2908 = vmatpush1.msra.mxu0 0.0
    %2909 = vmatprep.subr.mxu0 0.0
    %2910 = vmatpush1.msra.mxu0 0.0
    %2911 = vmatprep.subr.mxu0 0.0
    %2912 = vmatpush1.msra.mxu0 0.0
    %2913 = vmatprep.subr.mxu0 0.0
    %2914 = vmatpush1.msra.mxu0 0.0
    %2915 = vmatprep.subr.mxu0 0.0
    %2916 = vmatpush1.msra.mxu0 0.0
    %2917 = vmatprep.subr.mxu0 0.0
    %2918 = vmatpush1.msra.mxu0 0.0
    %2919 = vmatprep.subr.mxu0 0.0
    %2920 = vmatpush1.msra.mxu0 0.0
    %2921 = vmatprep.subr.mxu0 0.0
    %2922 = vmatpush1.msra.mxu0 0.0
    %2923 = vmatprep.mubr.f32.mxu0 0.0
    %2924 = vmatmul.mubr.f32.gmra.mrb[0].mxu0 %v2787
    %v2925 = vpop.f32.mrb[0].mxu0
    %v2926 = vadd.f32 0.0, %v2925
    %v2927 = vpop.f32.mrb[0].mxu0
    %v2928 = vadd.f32 0.0, %v2927
    %2929 = vdwg.mxu0
    %v2930 = vadd.f32 %v2033, %v2855
    %v2931 = vadd.f32 %v2035, %v2857
    %v2932 = vadd.f32 %v2104, %v2926
    %v2933 = vadd.f32 %v2106, %v2928
    %v2934 = vxor.u32 %v2930, 2147483648
    %v2935 = vmul.f32 %v2934, 1.442695
    %v2936 = vpow.pop %v2935
    %v2937 = vadd.f32 %v2936, 1.0
    %v2938 = vrcp.pop %v2937
    %v2939 = vmul.f32 1.0, %v2938
    %v2940 = vxor.u32 %v2931, 2147483648
    %v2941 = vmul.f32 %v2940, 1.442695
    %v2942 = vpow.pop %v2941
    %v2943 = vadd.f32 %v2942, 1.0
    %v2944 = vrcp.pop %v2943
    %v2945 = vmul.f32 1.0, %v2944
    %v2946 = vtanh.pop %v2932
    %v2947 = vxor.u32 %v2933, 2147483648
    %v2948 = vmul.f32 %v2947, 1.442695
    %v2949 = vpow.pop %v2948
    %v2950 = vadd.f32 %v2949, 1.0
    %v2951 = vrcp.pop %v2950
    %v2952 = vmul.f32 1.0, %v2951
    %v2953 = vmul.f32 %v2945, %v2785
    %v2954 = vmul.f32 %v2939, %v2946
    %v2955 = vadd.f32 %v2953, %v2954
    %v2956 = vtanh.pop %v2955
    %v2957 = vmul.f32 %v2952, %v2956
    %v2959 = vlaneseq
    %v2960 = vshrl.u32 %v2959, 7
    %v2961 = vsub.s32 0, %v2960
    %v2962 = vrot.slane %v291, %v2961
    %2964 = vmatprep.subr.mxu0 0.0
    %2965 = vmatpush1.msra.mxu0 %v275
    %2966 = vmatprep.subr.mxu0 0.0
    %2967 = vmatpush1.msra.mxu0 %v276
    %2968 = vmatprep.subr.mxu0 0.0
    %2969 = vmatpush1.msra.mxu0 %v277
    %2970 = vmatprep.subr.mxu0 0.0
    %2971 = vmatpush1.msra.mxu0 %v278
    %2972 = vmatprep.subr.mxu0 0.0
    %2973 = vmatpush1.msra.mxu0 %v279
    %2974 = vmatprep.subr.mxu0 0.0
    %2975 = vmatpush1.msra.mxu0 %v280
    %2976 = vmatprep.subr.mxu0 0.0
    %2977 = vmatpush1.msra.mxu0 %v281
    %2978 = vmatprep.subr.mxu0 0.0
    %2979 = vmatpush1.msra.mxu0 %v282
    %2980 = vmatprep.subr.mxu0 0.0
    %2981 = vmatpush1.msra.mxu0 %v283
    %2982 = vmatprep.subr.mxu0 0.0
    %2983 = vmatpush1.msra.mxu0 %v284
    %2984 = vmatprep.subr.mxu0 0.0
    %2985 = vmatpush1.msra.mxu0 %v285
    %2986 = vmatprep.subr.mxu0 0.0
    %2987 = vmatpush1.msra.mxu0 %v286
    %2988 = vmatprep.subr.mxu0 0.0
    %2989 = vmatpush1.msra.mxu0 %v287
    %2990 = vmatprep.subr.mxu0 0.0
    %2991 = vmatpush1.msra.mxu0 %v288
    %2992 = vmatprep.subr.mxu0 0.0
    %2993 = vmatpush1.msra.mxu0 %v289
    %2994 = vmatprep.subr.mxu0 0.0
    %2995 = vmatpush1.msra.mxu0 %v290
    %2996 = vmatprep.subr.mxu0 0.0
    %2997 = vmatpush1.msra.mxu0 0.0
    %2998 = vmatprep.subr.mxu0 0.0
    %2999 = vmatpush1.msra.mxu0 0.0
    %3000 = vmatprep.subr.mxu0 0.0
    %3001 = vmatpush1.msra.mxu0 0.0
    %3002 = vmatprep.subr.mxu0 0.0
    %3003 = vmatpush1.msra.mxu0 0.0
    %3004 = vmatprep.subr.mxu0 0.0
    %3005 = vmatpush1.msra.mxu0 0.0
    %3006 = vmatprep.subr.mxu0 0.0
    %3007 = vmatpush1.msra.mxu0 0.0
    %3008 = vmatprep.subr.mxu0 0.0
    %3009 = vmatpush1.msra.mxu0 0.0
    %3010 = vmatprep.subr.mxu0 0.0
    %3011 = vmatpush1.msra.mxu0 0.0
    %3012 = vmatprep.subr.mxu0 0.0
    %3013 = vmatpush1.msra.mxu0 0.0
    %3014 = vmatprep.subr.mxu0 0.0
    %3015 = vmatpush1.msra.mxu0 0.0
    %3016 = vmatprep.subr.mxu0 0.0
    %3017 = vmatpush1.msra.mxu0 0.0
    %3018 = vmatprep.subr.mxu0 0.0
    %3019 = vmatpush1.msra.mxu0 0.0
    %3020 = vmatprep.subr.mxu0 0.0
    %3021 = vmatpush1.msra.mxu0 0.0
    %3022 = vmatprep.subr.mxu0 0.0
    %3023 = vmatpush1.msra.mxu0 0.0
    %3024 = vmatprep.subr.mxu0 0.0
    %3025 = vmatpush1.msra.mxu0 0.0
    %3026 = vmatprep.subr.mxu0 0.0
    %3027 = vmatpush1.msra.mxu0 0.0
    %3028 = vmatprep.mubr.f32.mxu0 0.0
    %3029 = vmatmul.mubr.f32.gmra.mrb[0].mxu0 %v2277
    %v3030 = vpop.f32.mrb[0].mxu0
    %v3031 = vadd.f32 %v2962, %v3030
    %v3032 = vpop.f32.mrb[0].mxu0
    %3033 = vmatprep.mubr.f32.mxu0 0.0
    %3034 = vmatmul.mubr.f32.gmra.mrb[0].mxu0 %v2447
    %v3035 = vpop.f32.mrb[0].mxu0
    %v3036 = vadd.f32 %v2962, %v3035
    %v3037 = vpop.f32.mrb[0].mxu0
    %3038 = vmatprep.mubr.f32.mxu0 0.0
    %3039 = vmatmul.mubr.f32.gmra.mrb[0].mxu0 %v2617
    %v3040 = vpop.f32.mrb[0].mxu0
    %v3041 = vadd.f32 %v2962, %v3040
    %v3042 = vpop.f32.mrb[0].mxu0
    %3043 = vmatprep.mubr.f32.mxu0 0.0
    %3044 = vmatmul.mubr.f32.gmra.mrb[0].mxu0 %v2787
    %v3045 = vpop.f32.mrb[0].mxu0
    %v3046 = vadd.f32 %v2962, %v3045
    %v3047 = vpop.f32.mrb[0].mxu0
    %3048 = vmatprep.mubr.f32.mxu0 0.0
    %3049 = vmatmul.mubr.f32.gmra.mrb[0].mxu0 %v2957
    %v3050 = vpop.f32.mrb[0].mxu0
    %v3051 = vadd.f32 %v2962, %v3050
    %v3052 = vpop.f32.mrb[0].mxu0
    %3053 = vdwg.mxu0
    %vm3054 = vcmask 80896
    %v3055 = vsel %vm3054, %v3031, -inf
    %3056 = vmax.xlane.f32.xlu0 %v3055
    %v3057 = vpop.xlane.xlu0 %3056
    %v3058 = vsel %vm3054, %v3036, -inf
    %3059 = vmax.xlane.f32.xlu0 %v3058
    %v3060 = vpop.xlane.xlu0 %3059
    %v3061 = vsel %vm3054, %v3041, -inf
    %3062 = vmax.xlane.f32.xlu0 %v3061
    %v3063 = vpop.xlane.xlu0 %3062
    %v3064 = vsel %vm3054, %v3046, -inf
    %3065 = vmax.xlane.f32.xlu0 %v3064
    %v3066 = vpop.xlane.xlu0 %3065
    %v3067 = vsel %vm3054, %v3051, -inf
    %3068 = vmax.xlane.f32.xlu0 %v3067
    %v3069 = vpop.xlane.xlu0 %3068
    %v3070 = vsub.f32 %v3031, %v3057
    %v3071 = vsub.f32 %v3036, %v3060
    %v3072 = vsub.f32 %v3041, %v3063
    %v3073 = vsub.f32 %v3046, %v3066
    %v3074 = vsub.f32 %v3051, %v3069
    %v3075 = vmul.f32 %v3070, 1.442695
    %v3076 = vpow.pop %v3075
    %v3077 = vmul.f32 %v3071, 1.442695
    %v3078 = vpow.pop %v3077
    %v3079 = vmul.f32 %v3072, 1.442695
    %v3080 = vpow.pop %v3079
    %v3081 = vmul.f32 %v3073, 1.442695
    %v3082 = vpow.pop %v3081
    %v3083 = vmul.f32 %v3074, 1.442695
    %v3084 = vpow.pop %v3083
    %v3085 = vsel %vm3054, %v3076, 0.0
    %3086 = vadd.xlane.f32.xlu0 %v3085
    %v3087 = vpop.xlane.xlu0 %3086
    %v3088 = vsel %vm3054, %v3078, 0.0
    %3089 = vadd.xlane.f32.xlu0 %v3088
    %v3090 = vpop.xlane.xlu0 %3089
    %v3091 = vsel %vm3054, %v3080, 0.0
    %3092 = vadd.xlane.f32.xlu0 %v3091
    %v3093 = vpop.xlane.xlu0 %3092
    %v3094 = vsel %vm3054, %v3082, 0.0
    %3095 = vadd.xlane.f32.xlu0 %v3094
    %v3096 = vpop.xlane.xlu0 %3095
    %v3097 = vsel %vm3054, %v3084, 0.0
    %3098 = vadd.xlane.f32.xlu0 %v3097
    %v3099 = vpop.xlane.xlu0 %3098
    %v3100 = vlog2.pop %v3087
    %v3101 = vmul.f32 %v3100, 0.6931472
    %v3102 = vlog2.pop %v3090
    %v3103 = vmul.f32 %v3102, 0.6931472
    %v3104 = vlog2.pop %v3093
    %v3105 = vmul.f32 %v3104, 0.6931472
    %v3106 = vlog2.pop %v3096
    %v3107 = vmul.f32 %v3106, 0.6931472
    %v3108 = vlog2.pop %v3099
    %v3109 = vmul.f32 %v3108, 0.6931472
    %v3110 = vsub.f32 %v3070, %v3101
    %v3111 = vsub.f32 %v3071, %v3103
    %v3112 = vsub.f32 %v3072, %v3105
    %v3113 = vsub.f32 %v3073, %v3107
    %v3114 = vsub.f32 %v3074, %v3109
    %3115 = vst.msk [vmem:[%s9] sm:$0xff] %vm3054, %v3110
    %3116 = vst.msk [vmem:[%s9 + $0x8] sm:$0xff] %vm3054, %v3111
    %3117 = vst.msk [vmem:[%s9 + $0x10] sm:$0xff] %vm3054, %v3112
    %3118 = vst.msk [vmem:[%s9 + $0x18] sm:$0xff] %vm3054, %v3113
    %3119 = vst.msk [vmem:[%s9 + $0x20] sm:$0xff] %vm3054, %v3114
    // Predicated region
    $region50: #{tpu_custom_call.1} parent=1 // pred_check
      _
    $region51: #{tpu_custom_call.1} parent=1 // pred_check_branch
      %3121 = sbr.rel (0) target = $region53
    $region52: #{tpu_custom_call.1} parent=1 // pred_region
      _
    $region53: #{tpu_custom_call.1} parent=1 // pred_fallthru
      _
    // Predicated region
    $region54: #{tpu_custom_call.1} parent=1 // pred_check
      _
    $region55: #{tpu_custom_call.1} parent=1 // pred_check_branch
      %3123 = sbr.rel (0) target = $region57
    $region56: #{tpu_custom_call.1} parent=1 // pred_region
      _
    $region57: #{tpu_custom_call.1} parent=1 // pred_fallthru
      _
    %3124 = vsyncpa [#allocation3], 1
    %3125 = vsyncpa [#allocation5], 1

</llo_original>
